<compile_context>
chip_gen: v7x
topology: tpu7x:2x2x1
jax: 0.10.0
libtpu: 0.0.40
codegen_flags: <defaults>
</compile_context>

<pallas_src>
import functools

import jax
import jax.numpy as jnp
from jax import lax
from jax.experimental import pallas as pl
from jax.experimental.pallas import tpu as pltpu

L = 512          # feature dim after feature_extractor_part
D = 128          # attention hidden dim
K = 1            # number of attention heads (fixed to 1 in the module)
IN_DIM = 1024    # instance feature dim
NUM_CLASSES = 4  # cfgs['num_classes']


def _round_up(n, m):
    return ((n + m - 1) // m) * m


# ---------------------------------------------------------------------------
# Fused kernel: grid over instance tiles ("arbitrary" axis), flash-style
# online-softmax carry (m / l / acc) in VMEM scratch.  Weights use constant
# index_maps so they stay VMEM-resident across the grid loop.
# ---------------------------------------------------------------------------
def gated_attention_kernel(x_ref, w1_ref, b1_ref, wvu_ref, bvu_ref,
                           ww_ref, bw_ref, wc_ref, bc_ref,
                           y_ref, attn_ref,
                           m_scr, l_scr, acc_scr,
                           *, n_real, tile_n):
    i = pl.program_id(0)

    @pl.when(i == 0)
    def _init():
        m_scr[...] = jnp.full_like(m_scr, -1e30)
        l_scr[...] = jnp.zeros_like(l_scr)
        acc_scr[...] = jnp.zeros_like(acc_scr)

    cdt = w1_ref.dtype               # MXU input dtype (bf16 default); accum is f32.
    ragged = (n_real % tile_n) != 0  # static Python bool: last tile overhangs N.

    # --- per-instance MLP ----------------------------------------------------
    x = x_ref[...].astype(cdt)                                        # (TN, 1024)
    h = jnp.dot(x, w1_ref[...], preferred_element_type=jnp.float32) + b1_ref[...]
    h = jnp.maximum(h, 0.0)                                           # ReLU, f32 (TN, L)
    if ragged:
        # Zero padded/OOB rows so garbage reads can never reach the p @ H matmul.
        row = lax.broadcasted_iota(jnp.int32, (tile_n, 1), 0) + i * tile_n
        h = jnp.where(row < n_real, h, 0.0)

    h_mm = h.astype(cdt)                                              # (TN, L)

    # Fused V/U projection: one (TN, 512) @ (512, 256) GEMM, then static lane slices.
    vu = jnp.dot(h_mm, wvu_ref[...],
                 preferred_element_type=jnp.float32) + bvu_ref[...]   # (TN, 2D)
    v = jnp.tanh(vu[:, :D])
    u = jax.nn.sigmoid(vu[:, D:])
    g = (v * u).astype(cdt)                                           # (TN, D)

    # (1, D) . (TN, D)^T -> (1, TN): lane-dense attention-logit row
    # (no K=1-wide output column, no transpose of g).
    logit_row = lax.dot_general(ww_ref[...], g, (((1,), (1,)), ((), ())),
                                preferred_element_type=jnp.float32) + bw_ref[...]
    if ragged:
        col = lax.broadcasted_iota(jnp.int32, (1, tile_n), 1) + i * tile_n
        logit_row = jnp.where(col < n_real, logit_row, -1e30)

    # Stash raw logits in the VMEM-resident attention output block (128-aligned
    # dynamic-start store); normalized in place at the last grid step.
    start = pl.multiple_of(i * tile_n, tile_n)
    attn_ref[:, pl.ds(start, tile_n)] = logit_row

    # --- online softmax accumulation of softmax(logits) @ H -------------------
    m_old = m_scr[...]                                                # (1, 1)
    m_new = jnp.maximum(m_old, jnp.max(logit_row, axis=-1, keepdims=True))
    alpha = jnp.exp(m_old - m_new)                                    # (1, 1)
    p = jnp.exp(logit_row - m_new)                                    # (1, TN) f32
    l_scr[...] = alpha * l_scr[...] + jnp.sum(p, axis=-1, keepdims=True)
    acc_scr[...] = alpha * acc_scr[...] + jnp.dot(
        p.astype(cdt), h_mm, preferred_element_type=jnp.float32)      # bf16 MXU lane
    m_scr[...] = m_new

    # --- finalize: normalize attention, pool, classify ------------------------
    @pl.when(i == pl.num_programs(0) - 1)
    def _finalize():
        inv_l = pl.reciprocal(l_scr[...], approx=False)               # (1, 1)
        attn_ref[...] = jnp.exp(attn_ref[...] - m_scr[...]) * inv_l   # (1, N_pad)
        m_pool = (acc_scr[...] * inv_l).astype(cdt)                   # (1, L)
        y_ref[...] = jax.nn.sigmoid(
            jnp.dot(m_pool, wc_ref[...],
                    preferred_element_type=jnp.float32) + bc_ref[...])


def gated_attention_forward(x, params, *, mxu_dtype=jnp.bfloat16, tile_n=None):
    """Returns (y (1, NUM_CLASSES) f32, attn (1, N) f32)."""
    x = x.reshape(-1, IN_DIM)          # mirrors x.view(-1, 1024)
    N = x.shape[0]
    if tile_n is None:
        tile_n = min(1024, _round_up(N, 128))
    tile_n = _round_up(tile_n, 128)    # lane/vreg-aligned attention-row stores
    num_tiles = (N + tile_n - 1) // tile_n
    N_pad = num_tiles * tile_n

    (w1, b1, wv, bv, wu, bu, ww, bw, wc, bc) = params
    # Fuse V/U projections into one (L, 2D) weight -> full 256-wide MXU on v6e/v7x.
    wvu = jnp.concatenate([wv, wu], axis=1).astype(mxu_dtype)
    bvu = jnp.concatenate([bv, bu], axis=1)
    w1 = w1.astype(mxu_dtype)
    ww = ww.astype(mxu_dtype)
    wc = wc.astype(mxu_dtype)
    # NOTE: x is NOT cast or padded here — that would double its HBM traffic.
    # The per-tile cast + ragged-row masking happen inside the kernel.

    full = lambda arr: pl.BlockSpec(arr.shape, lambda i: (0,) * arr.ndim)
    kernel = functools.partial(gated_attention_kernel, n_real=N, tile_n=tile_n)

    y, attn_pad = pl.pallas_call(
        kernel,
        out_shape=(jax.ShapeDtypeStruct((1, NUM_CLASSES), jnp.float32),
                   jax.ShapeDtypeStruct((1, N_pad), jnp.float32)),
        grid_spec=pltpu.PrefetchScalarGridSpec(
            num_scalar_prefetch=0,
            grid=(num_tiles,),
            in_specs=[
                pl.BlockSpec((tile_n, IN_DIM), lambda i: (i, 0)),
                full(w1), full(b1), full(wvu), full(bvu),
                full(ww), full(bw), full(wc), full(bc),
            ],
            out_specs=[
                pl.BlockSpec((1, NUM_CLASSES), lambda i: (0, 0)),
                pl.BlockSpec((1, N_pad), lambda i: (0, 0)),
            ],
            scratch_shapes=[
                pltpu.VMEM((1, 1), jnp.float32),   # running max  m
                pltpu.VMEM((1, 1), jnp.float32),   # running denom l
                pltpu.VMEM((1, L), jnp.float32),   # running softmax(logit) @ H
            ],
        ),
        # Single carried-reduction axis -> sequential ("arbitrary").
        # 48 MiB scoped VMEM: tile_n=1024 f32 x-tile (4 MiB x2) + bf16 weights (x2)
        # + temporaries ~20 MiB, with headroom even on v7x (64 MiB physical).
        compiler_params=pltpu.CompilerParams(
            dimension_semantics=("arbitrary",),
            vmem_limit_bytes=48 * 1024 * 1024,
        ),
    )(x, w1, b1, wvu, bvu, ww, bw, wc, bc)

    attn = attn_pad[:, :N] if N_pad != N else attn_pad
    return y, attn


# ---------------------------------------------------------------------------
# Pure-JAX reference (HIGHEST-precision matmuls) for correctness checking.
# ---------------------------------------------------------------------------
def reference_forward(x, params):
    (w1, b1, wv, bv, wu, bu, ww, bw, wc, bc) = params
    hp = lax.Precision.HIGHEST
    h = jnp.maximum(jnp.dot(x, w1, precision=hp) + b1, 0.0)
    v = jnp.tanh(jnp.dot(h, wv, precision=hp) + bv)
    u = jax.nn.sigmoid(jnp.dot(h, wu, precision=hp) + bu)
    logit = jnp.dot(v * u, ww.T, precision=hp) + bw               # (N, 1)
    attn = jax.nn.softmax(logit.T, axis=1)                        # (1, N)
    m = jnp.dot(attn, h, precision=hp)                            # (1, L)
    y = jax.nn.sigmoid(jnp.dot(m, wc, precision=hp) + bc)
    return y, attn


def init_params(key):
    ks = jax.random.split(key, 5)
    scale = 0.02
    w1 = scale * jax.random.normal(ks[0], (IN_DIM, L), jnp.float32)
    b1 = jnp.zeros((1, L), jnp.float32)
    wv = scale * jax.random.normal(ks[1], (L, D), jnp.float32)
    bv = jnp.zeros((1, D), jnp.float32)
    wu = scale * jax.random.normal(ks[2], (L, D), jnp.float32)
    bu = jnp.zeros((1, D), jnp.float32)
    ww = scale * jax.random.normal(ks[3], (K, D), jnp.float32)    # PyTorch (out, in) layout
    bw = jnp.zeros((1, K), jnp.float32)
    wc = scale * jax.random.normal(ks[4], (L * K, NUM_CLASSES), jnp.float32)
    bc = jnp.zeros((1, NUM_CLASSES), jnp.float32)
    return (w1, b1, wv, bv, wu, bu, ww, bw, wc, bc)


if __name__ == "__main__":
    key = jax.random.PRNGKey(0)
    kx, kp = jax.random.split(key)
    params = init_params(kp)

    # ---- small bag, f32 MXU path, single (ragged, masked) tile ----
    N = 16
    x = jax.random.normal(kx, (N, IN_DIM), jnp.float32)
    y, attn = gated_attention_forward(x, params, mxu_dtype=jnp.float32)
    jax.block_until_ready((y, attn))
    y_ref, attn_ref = reference_forward(x, params)
    assert y.shape == (1, NUM_CLASSES) and attn.shape == (K, N)
    assert jnp.allclose(y, y_ref, atol=2e-4, rtol=2e-4)
    assert jnp.allclose(attn, attn_ref, atol=2e-4, rtol=2e-4)
    assert jnp.allclose(jnp.sum(attn), 1.0, atol=1e-4)

    # ---- non-multiple bag size, multi-tile + ragged-masking path, f32 ----
    N2 = 300
    x2 = jax.random.normal(kx, (N2, IN_DIM), jnp.float32)
    y2, attn2 = gated_attention_forward(x2, params, mxu_dtype=jnp.float32, tile_n=128)
    jax.block_until_ready((y2, attn2))
    y2_ref, attn2_ref = reference_forward(x2, params)
    assert y2.shape == (1, NUM_CLASSES) and attn2.shape == (K, N2)
    assert jnp.allclose(y2, y2_ref, atol=2e-4, rtol=2e-4)
    assert jnp.allclose(attn2, attn2_ref, atol=2e-4, rtol=2e-4)
    assert jnp.allclose(jnp.sum(attn2), 1.0, atol=1e-4)

    # ---- default path (bf16 MXU, f32 accumulation), loose tolerance ----
    yb, attnb = gated_attention_forward(x2, params)
    jax.block_until_ready((yb, attnb))
    assert yb.shape == (1, NUM_CLASSES) and attnb.shape == (K, N2)
    assert jnp.allclose(yb, y2_ref, atol=3e-2)
    assert jnp.allclose(attnb, attn2_ref, atol=3e-2)
    assert jnp.allclose(jnp.sum(attnb), 1.0, atol=1e-3)

    print("KERNEL_OK")
</pallas_src>

<mosaic_0001>
module attributes {stable_mosaic.version = 11 : i64} {
  func.func @gated_attention_kernel(%arg0: i32, %arg1: memref<128x1024xf32, #tpu.memory_space<vmem>>, %arg2: memref<1024x512xf32, #tpu.memory_space<vmem>>, %arg3: memref<1x512xf32, #tpu.memory_space<vmem>>, %arg4: memref<512x256xf32, #tpu.memory_space<vmem>>, %arg5: memref<1x256xf32, #tpu.memory_space<vmem>>, %arg6: memref<1x128xf32, #tpu.memory_space<vmem>>, %arg7: memref<1x1xf32, #tpu.memory_space<vmem>>, %arg8: memref<512x4xf32, #tpu.memory_space<vmem>>, %arg9: memref<1x4xf32, #tpu.memory_space<vmem>>, %arg10: memref<1x4xf32, #tpu.memory_space<vmem>>, %arg11: memref<1x128xf32, #tpu.memory_space<vmem>>, %arg12: memref<1x1xf32, #tpu.memory_space<vmem>>, %arg13: memref<1x1xf32, #tpu.memory_space<vmem>>, %arg14: memref<1x512xf32, #tpu.memory_space<vmem>>) attributes {dimension_semantics = [#tpu.dimension_semantics<arbitrary>], iteration_bounds = array<i64: 1>, scalar_prefetch = 0 : i64, scratch_operands = 3 : i64, tpu.core_type = #tpu.core_type<tc>, window_params = [{transform_indices = @transform_0, window_bounds = array<i64: 128, 1024>}, {pipeline_mode = #tpu.pipeline_mode<synchronous>, transform_indices = @transform_1, window_bounds = array<i64: 1024, 512>}, {pipeline_mode = #tpu.pipeline_mode<synchronous>, transform_indices = @transform_2, window_bounds = array<i64: 1, 512>}, {pipeline_mode = #tpu.pipeline_mode<synchronous>, transform_indices = @transform_3, window_bounds = array<i64: 512, 256>}, {pipeline_mode = #tpu.pipeline_mode<synchronous>, transform_indices = @transform_4, window_bounds = array<i64: 1, 256>}, {pipeline_mode = #tpu.pipeline_mode<synchronous>, transform_indices = @transform_5, window_bounds = array<i64: 1, 128>}, {pipeline_mode = #tpu.pipeline_mode<synchronous>, transform_indices = @transform_6, window_bounds = array<i64: 1, 1>}, {pipeline_mode = #tpu.pipeline_mode<synchronous>, transform_indices = @transform_7, window_bounds = array<i64: 512, 4>}, {pipeline_mode = #tpu.pipeline_mode<synchronous>, transform_indices = @transform_8, window_bounds = array<i64: 1, 4>}, {pipeline_mode = #tpu.pipeline_mode<synchronous>, transform_indices = @transform_9, window_bounds = array<i64: 1, 4>}, {pipeline_mode = #tpu.pipeline_mode<synchronous>, transform_indices = @transform_10, window_bounds = array<i64: 1, 128>}]} {
    %c0_i32 = arith.constant 0 : i32
    %0 = arith.cmpi eq, %arg0, %c0_i32 : i32
    %1 = arith.extui %0 : i1 to i32
    %c0_i32_0 = arith.constant 0 : i32
    %2 = arith.cmpi ne, %1, %c0_i32_0 : i32
    scf.if %2 {
      %cst_41 = arith.constant -1.000000e+30 : f32
      %77 = vector.broadcast %cst_41 : f32 to vector<1x1xf32>
      %c0_42 = arith.constant 0 : index
      %c0_43 = arith.constant 0 : index
      %78 = vector.load %arg12[%c0_42, %c0_43] : memref<1x1xf32, #tpu.memory_space<vmem>>, vector<1x1xf32>
      tpu.vector_store %arg12[%c0_42, %c0_43], %77 {strides = array<i32>} : memref<1x1xf32, #tpu.memory_space<vmem>>, vector<1x1xf32>,
      %cst_44 = arith.constant 0.000000e+00 : f32
      %79 = vector.broadcast %cst_44 : f32 to vector<1x1xf32>
      %c0_45 = arith.constant 0 : index
      %c0_46 = arith.constant 0 : index
      %80 = vector.load %arg13[%c0_45, %c0_46] : memref<1x1xf32, #tpu.memory_space<vmem>>, vector<1x1xf32>
      tpu.vector_store %arg13[%c0_45, %c0_46], %79 {strides = array<i32>} : memref<1x1xf32, #tpu.memory_space<vmem>>, vector<1x1xf32>,
      %cst_47 = arith.constant 0.000000e+00 : f32
      %81 = vector.broadcast %cst_47 : f32 to vector<1x512xf32>
      %c0_48 = arith.constant 0 : index
      %c0_49 = arith.constant 0 : index
      %82 = vector.load %arg14[%c0_48, %c0_49] : memref<1x512xf32, #tpu.memory_space<vmem>>, vector<1x512xf32>
      tpu.vector_store %arg14[%c0_48, %c0_49], %81 {strides = array<i32>} : memref<1x512xf32, #tpu.memory_space<vmem>>, vector<1x512xf32>,
    } else {
    }
    %c0 = arith.constant 0 : index
    %c0_1 = arith.constant 0 : index
    %3 = vector.load %arg1[%c0, %c0_1] : memref<128x1024xf32, #tpu.memory_space<vmem>>, vector<128x1024xf32>
    %c0_2 = arith.constant 0 : index
    %c0_3 = arith.constant 0 : index
    %4 = vector.load %arg2[%c0_2, %c0_3] : memref<1024x512xf32, #tpu.memory_space<vmem>>, vector<1024x512xf32>
    %cst = arith.constant dense<0.000000e+00> : vector<128x512xf32>
    %5 = tpu.matmul %3, %4, %cst {dimension_numbers = #tpu.dot_dimension_numbers<[1], [0], [0], [1], [0, 0, 1, 1], [], []>} : vector<128x1024xf32>, vector<1024x512xf32>, vector<128x512xf32> -> vector<128x512xf32>
    %c0_4 = arith.constant 0 : index
    %c0_5 = arith.constant 0 : index
    %6 = vector.load %arg3[%c0_4, %c0_5] : memref<1x512xf32, #tpu.memory_space<vmem>>, vector<1x512xf32>
    %7 = vector.broadcast %6 : vector<1x512xf32> to vector<128x512xf32>
    %8 = arith.addf %5, %7 : vector<128x512xf32>
    %cst_6 = arith.constant 0.000000e+00 : f32
    %9 = vector.broadcast %cst_6 : f32 to vector<128x512xf32>
    %10 = arith.maximumf %8, %9 : vector<128x512xf32>
    %11 = tpu.iota {dimensions = array<i32: 0>} : vector<128x1xi32>
    %c128_i32 = arith.constant 128 : i32
    %12 = arith.muli %arg0, %c128_i32 : i32
    %13 = vector.broadcast %12 : i32 to vector<128x1xi32>
    %14 = arith.addi %11, %13 : vector<128x1xi32>
    %c16_i32 = arith.constant 16 : i32
    %15 = vector.broadcast %c16_i32 : i32 to vector<128x1xi32>
    %16 = arith.cmpi slt, %14, %15 : vector<128x1xi32>
    %cst_7 = arith.constant 0.000000e+00 : f32
    %17 = vector.shape_cast %16 : vector<128x1xi1> to vector<128x1xi1>
    %18 = vector.broadcast %17 : vector<128x1xi1> to vector<128x512xi1>
    %19 = vector.broadcast %cst_7 : f32 to vector<128x512xf32>
    %20 = arith.select %18, %10, %19 : vector<128x512xi1>, vector<128x512xf32>
    %c0_8 = arith.constant 0 : index
    %c0_9 = arith.constant 0 : index
    %21 = vector.load %arg4[%c0_8, %c0_9] : memref<512x256xf32, #tpu.memory_space<vmem>>, vector<512x256xf32>
    %cst_10 = arith.constant dense<0.000000e+00> : vector<128x256xf32>
    %22 = tpu.matmul %20, %21, %cst_10 {dimension_numbers = #tpu.dot_dimension_numbers<[1], [0], [0], [1], [0, 0, 1, 1], [], []>} : vector<128x512xf32>, vector<512x256xf32>, vector<128x256xf32> -> vector<128x256xf32>
    %c0_11 = arith.constant 0 : index
    %c0_12 = arith.constant 0 : index
    %23 = vector.load %arg5[%c0_11, %c0_12] : memref<1x256xf32, #tpu.memory_space<vmem>>, vector<1x256xf32>
    %24 = vector.broadcast %23 : vector<1x256xf32> to vector<128x256xf32>
    %25 = arith.addf %22, %24 : vector<128x256xf32>
    %26 = vector.extract_strided_slice %25 {offsets = [0, 0], sizes = [128, 128], strides = [1, 1]} : vector<128x256xf32> to vector<128x128xf32>
    %27 = math.tanh %26 : vector<128x128xf32>
    %28 = vector.extract_strided_slice %25 {offsets = [0, 128], sizes = [128, 128], strides = [1, 1]} : vector<128x256xf32> to vector<128x128xf32>
    %29 = arith.negf %28 : vector<128x128xf32>
    %30 = math.exp %29 : vector<128x128xf32>
    %cst_13 = arith.constant 1.000000e+00 : f32
    %31 = vector.broadcast %cst_13 : f32 to vector<128x128xf32>
    %32 = arith.addf %31, %30 : vector<128x128xf32>
    %33 = arith.divf %31, %32 : vector<128x128xf32>
    %34 = arith.mulf %27, %33 : vector<128x128xf32>
    %c0_14 = arith.constant 0 : index
    %c0_15 = arith.constant 0 : index
    %35 = vector.load %arg6[%c0_14, %c0_15] : memref<1x128xf32, #tpu.memory_space<vmem>>, vector<1x128xf32>
    %cst_16 = arith.constant dense<0.000000e+00> : vector<1x128xf32>
    %36 = tpu.matmul %35, %34, %cst_16 {dimension_numbers = #tpu.dot_dimension_numbers<[1], [1], [0], [0], [0, 0, 1, 0], [], []>} : vector<1x128xf32>, vector<128x128xf32>, vector<1x128xf32> -> vector<1x128xf32>
    %c0_17 = arith.constant 0 : index
    %c0_18 = arith.constant 0 : index
    %37 = vector.load %arg7[%c0_17, %c0_18] : memref<1x1xf32, #tpu.memory_space<vmem>>, vector<1x1xf32>
    %38 = vector.broadcast %37 : vector<1x1xf32> to vector<1x128xf32>
    %39 = arith.addf %36, %38 : vector<1x128xf32>
    %40 = tpu.iota {dimensions = array<i32: 1>} : vector<1x128xi32>
    %c128_i32_19 = arith.constant 128 : i32
    %41 = arith.muli %arg0, %c128_i32_19 : i32
    %42 = vector.broadcast %41 : i32 to vector<1x128xi32>
    %43 = arith.addi %40, %42 : vector<1x128xi32>
    %c16_i32_20 = arith.constant 16 : i32
    %44 = vector.broadcast %c16_i32_20 : i32 to vector<1x128xi32>
    %45 = arith.cmpi slt, %43, %44 : vector<1x128xi32>
    %cst_21 = arith.constant -1.000000e+30 : f32
    %46 = vector.broadcast %cst_21 : f32 to vector<1x128xf32>
    %47 = arith.select %45, %39, %46 : vector<1x128xi1>, vector<1x128xf32>
    %c128_i32_22 = arith.constant 128 : i32
    %48 = arith.muli %arg0, %c128_i32_22 : i32
    %49 = tpu.assume_multiple %48, 128 : i32
    %c0_23 = arith.constant 0 : index
    %50 = arith.index_cast %49 : i32 to index
    %51 = vector.load %arg11[%c0_23, %50] : memref<1x128xf32, #tpu.memory_space<vmem>>, vector<1x128xf32>
    tpu.vector_store %arg11[%c0_23, %50], %47 {strides = array<i32>} : memref<1x128xf32, #tpu.memory_space<vmem>>, vector<1x128xf32>,
    %c0_24 = arith.constant 0 : index
    %c0_25 = arith.constant 0 : index
    %52 = vector.load %arg12[%c0_24, %c0_25] : memref<1x1xf32, #tpu.memory_space<vmem>>, vector<1x1xf32>
    %cst_26 = arith.constant dense<0xFF800000> : vector<1xf32>
    %53 = vector.multi_reduction <maximumf>, %47, %cst_26 [1] : vector<1x128xf32> to vector<1xf32>
    %54 = vector.shape_cast %53 : vector<1xf32> to vector<1x1xf32>
    %55 = arith.maximumf %52, %54 : vector<1x1xf32>
    %56 = arith.subf %52, %55 : vector<1x1xf32>
    %57 = math.exp %56 : vector<1x1xf32>
    %58 = vector.broadcast %55 : vector<1x1xf32> to vector<1x128xf32>
    %59 = arith.subf %47, %58 : vector<1x128xf32>
    %60 = math.exp %59 : vector<1x128xf32>
    %c0_27 = arith.constant 0 : index
    %c0_28 = arith.constant 0 : index
    %61 = vector.load %arg13[%c0_27, %c0_28] : memref<1x1xf32, #tpu.memory_space<vmem>>, vector<1x1xf32>
    %62 = arith.mulf %57, %61 : vector<1x1xf32>
    %cst_29 = arith.constant dense<0.000000e+00> : vector<1xf32>
    %63 = vector.multi_reduction <add>, %60, %cst_29 [1] : vector<1x128xf32> to vector<1xf32>
    %64 = vector.shape_cast %63 : vector<1xf32> to vector<1x1xf32>
    %65 = arith.addf %62, %64 : vector<1x1xf32>
    %c0_30 = arith.constant 0 : index
    %c0_31 = arith.constant 0 : index
    %66 = vector.load %arg13[%c0_30, %c0_31] : memref<1x1xf32, #tpu.memory_space<vmem>>, vector<1x1xf32>
    tpu.vector_store %arg13[%c0_30, %c0_31], %65 {strides = array<i32>} : memref<1x1xf32, #tpu.memory_space<vmem>>, vector<1x1xf32>,
    %c0_32 = arith.constant 0 : index
    %c0_33 = arith.constant 0 : index
    %67 = vector.load %arg14[%c0_32, %c0_33] : memref<1x512xf32, #tpu.memory_space<vmem>>, vector<1x512xf32>
    %68 = vector.broadcast %57 : vector<1x1xf32> to vector<1x512xf32>
    %69 = arith.mulf %68, %67 : vector<1x512xf32>
    %cst_34 = arith.constant dense<0.000000e+00> : vector<1x512xf32>
    %70 = tpu.matmul %60, %20, %cst_34 {dimension_numbers = #tpu.dot_dimension_numbers<[1], [0], [0], [1], [0, 0, 1, 1], [], []>} : vector<1x128xf32>, vector<128x512xf32>, vector<1x512xf32> -> vector<1x512xf32>
    %71 = arith.addf %69, %70 : vector<1x512xf32>
    %c0_35 = arith.constant 0 : index
    %c0_36 = arith.constant 0 : index
    %72 = vector.load %arg14[%c0_35, %c0_36] : memref<1x512xf32, #tpu.memory_space<vmem>>, vector<1x512xf32>
    tpu.vector_store %arg14[%c0_35, %c0_36], %71 {strides = array<i32>} : memref<1x512xf32, #tpu.memory_space<vmem>>, vector<1x512xf32>,
    %c0_37 = arith.constant 0 : index
    %c0_38 = arith.constant 0 : index
    %73 = vector.load %arg12[%c0_37, %c0_38] : memref<1x1xf32, #tpu.memory_space<vmem>>, vector<1x1xf32>
    tpu.vector_store %arg12[%c0_37, %c0_38], %55 {strides = array<i32>} : memref<1x1xf32, #tpu.memory_space<vmem>>, vector<1x1xf32>,
    %c0_i32_39 = arith.constant 0 : i32
    %74 = arith.cmpi eq, %arg0, %c0_i32_39 : i32
    %75 = arith.extui %74 : i1 to i32
    %c0_i32_40 = arith.constant 0 : i32
    %76 = arith.cmpi ne, %75, %c0_i32_40 : i32
    scf.if %76 {
      %c0_41 = arith.constant 0 : index
      %c0_42 = arith.constant 0 : index
      %77 = vector.load %arg13[%c0_41, %c0_42] : memref<1x1xf32, #tpu.memory_space<vmem>>, vector<1x1xf32>
      %78 = tpu.reciprocal %77 : vector<1x1xf32> -> vector<1x1xf32>
      %c0_43 = arith.constant 0 : index
      %c0_44 = arith.constant 0 : index
      %79 = vector.load %arg11[%c0_43, %c0_44] : memref<1x128xf32, #tpu.memory_space<vmem>>, vector<1x128xf32>
      %c0_45 = arith.constant 0 : index
      %c0_46 = arith.constant 0 : index
      %80 = vector.load %arg12[%c0_45, %c0_46] : memref<1x1xf32, #tpu.memory_space<vmem>>, vector<1x1xf32>
      %81 = vector.broadcast %80 : vector<1x1xf32> to vector<1x128xf32>
      %82 = arith.subf %79, %81 : vector<1x128xf32>
      %83 = math.exp %82 : vector<1x128xf32>
      %84 = vector.broadcast %78 : vector<1x1xf32> to vector<1x128xf32>
      %85 = arith.mulf %83, %84 : vector<1x128xf32>
      %c0_47 = arith.constant 0 : index
      %c0_48 = arith.constant 0 : index
      %86 = vector.load %arg11[%c0_47, %c0_48] : memref<1x128xf32, #tpu.memory_space<vmem>>, vector<1x128xf32>
      tpu.vector_store %arg11[%c0_47, %c0_48], %85 {strides = array<i32>} : memref<1x128xf32, #tpu.memory_space<vmem>>, vector<1x128xf32>,
      %c0_49 = arith.constant 0 : index
      %c0_50 = arith.constant 0 : index
      %87 = vector.load %arg14[%c0_49, %c0_50] : memref<1x512xf32, #tpu.memory_space<vmem>>, vector<1x512xf32>
      %88 = vector.broadcast %78 : vector<1x1xf32> to vector<1x512xf32>
      %89 = arith.mulf %87, %88 : vector<1x512xf32>
      %c0_51 = arith.constant 0 : index
      %c0_52 = arith.constant 0 : index
      %90 = vector.load %arg8[%c0_51, %c0_52] : memref<512x4xf32, #tpu.memory_space<vmem>>, vector<512x4xf32>
      %cst_53 = arith.constant dense<0.000000e+00> : vector<1x4xf32>
      %91 = tpu.matmul %89, %90, %cst_53 {dimension_numbers = #tpu.dot_dimension_numbers<[1], [0], [0], [1], [0, 0, 1, 1], [], []>} : vector<1x512xf32>, vector<512x4xf32>, vector<1x4xf32> -> vector<1x4xf32>
      %c0_54 = arith.constant 0 : index
      %c0_55 = arith.constant 0 : index
      %92 = vector.load %arg9[%c0_54, %c0_55] : memref<1x4xf32, #tpu.memory_space<vmem>>, vector<1x4xf32>
      %93 = arith.addf %91, %92 : vector<1x4xf32>
      %94 = arith.negf %93 : vector<1x4xf32>
      %95 = math.exp %94 : vector<1x4xf32>
      %cst_56 = arith.constant 1.000000e+00 : f32
      %96 = vector.broadcast %cst_56 : f32 to vector<1x4xf32>
      %97 = arith.addf %96, %95 : vector<1x4xf32>
      %98 = arith.divf %96, %97 : vector<1x4xf32>
      %c0_57 = arith.constant 0 : index
      %c0_58 = arith.constant 0 : index
      %99 = vector.load %arg10[%c0_57, %c0_58] : memref<1x4xf32, #tpu.memory_space<vmem>>, vector<1x4xf32>
      tpu.vector_store %arg10[%c0_57, %c0_58], %98 {strides = array<i32>} : memref<1x4xf32, #tpu.memory_space<vmem>>, vector<1x4xf32>,
    } else {
    }
    return
  }
  func.func @transform_0(%arg0: i32) -> (i32, i32) {
    %c0_i32 = arith.constant 0 : i32
    %c0_i32_0 = arith.constant 0 : i32
    return %arg0, %c0_i32 : i32, i32
  }
  func.func @transform_1(%arg0: i32) -> (i32, i32) {
    %c0_i32 = arith.constant 0 : i32
    %c0_i32_0 = arith.constant 0 : i32
    %c0_i32_1 = arith.constant 0 : i32
    return %c0_i32, %c0_i32_0 : i32, i32
  }
  func.func @transform_2(%arg0: i32) -> (i32, i32) {
    %c0_i32 = arith.constant 0 : i32
    %c0_i32_0 = arith.constant 0 : i32
    %c0_i32_1 = arith.constant 0 : i32
    return %c0_i32, %c0_i32_0 : i32, i32
  }
  func.func @transform_3(%arg0: i32) -> (i32, i32) {
    %c0_i32 = arith.constant 0 : i32
    %c0_i32_0 = arith.constant 0 : i32
    %c0_i32_1 = arith.constant 0 : i32
    return %c0_i32, %c0_i32_0 : i32, i32
  }
  func.func @transform_4(%arg0: i32) -> (i32, i32) {
    %c0_i32 = arith.constant 0 : i32
    %c0_i32_0 = arith.constant 0 : i32
    %c0_i32_1 = arith.constant 0 : i32
    return %c0_i32, %c0_i32_0 : i32, i32
  }
  func.func @transform_5(%arg0: i32) -> (i32, i32) {
    %c0_i32 = arith.constant 0 : i32
    %c0_i32_0 = arith.constant 0 : i32
    %c0_i32_1 = arith.constant 0 : i32
    return %c0_i32, %c0_i32_0 : i32, i32
  }
  func.func @transform_6(%arg0: i32) -> (i32, i32) {
    %c0_i32 = arith.constant 0 : i32
    %c0_i32_0 = arith.constant 0 : i32
    %c0_i32_1 = arith.constant 0 : i32
    return %c0_i32, %c0_i32_0 : i32, i32
  }
  func.func @transform_7(%arg0: i32) -> (i32, i32) {
    %c0_i32 = arith.constant 0 : i32
    %c0_i32_0 = arith.constant 0 : i32
    %c0_i32_1 = arith.constant 0 : i32
    return %c0_i32, %c0_i32_0 : i32, i32
  }
  func.func @transform_8(%arg0: i32) -> (i32, i32) {
    %c0_i32 = arith.constant 0 : i32
    %c0_i32_0 = arith.constant 0 : i32
    %c0_i32_1 = arith.constant 0 : i32
    return %c0_i32, %c0_i32_0 : i32, i32
  }
  func.func @transform_9(%arg0: i32) -> (i32, i32) {
    %c0_i32 = arith.constant 0 : i32
    %c0_i32_0 = arith.constant 0 : i32
    %c0_i32_1 = arith.constant 0 : i32
    return %c0_i32, %c0_i32_0 : i32, i32
  }
  func.func @transform_10(%arg0: i32) -> (i32, i32) {
    %c0_i32 = arith.constant 0 : i32
    %c0_i32_0 = arith.constant 0 : i32
    %c0_i32_1 = arith.constant 0 : i32
    return %c0_i32, %c0_i32_0 : i32, i32
  }
}

</mosaic_0001>

<llo_original>
// kernel: tpu_custom_call.1
$region0: #{tpu_custom_call.1}
  #allocation0 [shape = 'u32[]', space=smem, size = 0x4, offset = 0x4, fixed_abs, tag = 'smem constant byte address 0x4 - core index']
  #allocation1 [shape = 'u32[144,128]{1,0:T(1,128)}', space=vmem, size = 0x12000, scoped, tag = 'internal scratch']
  #allocation2 [shape = 'f32[1,1]{1,0:T(1,128)}', space=vmem, size = 0x200, scoped, tag = 'scratch operand']
  #allocation3 [shape = 'f32[1,1]{1,0:T(1,128)}', space=vmem, size = 0x200, scoped, tag = 'scratch operand']
  #allocation4 [shape = 'f32[1,512]{1,0:T(1,128)}', space=vmem, size = 0x800, scoped, tag = 'scratch operand']
  #allocation5 [shape = 'f32[1,1]{1,0:T(1,128)S(1)}', space=vmem, size = 0x200, scoped, tag = 'scoped memory for tpu_custom_call.1']
  %s0 = inlined_call_operand.hbm [shape: f32[16,1024], index: 0, kind: input, shape index: {}]
  %s1 = inlined_call_operand.hbm [shape: f32[1024,512], index: 1, kind: input, shape index: {}]
  %s2 = inlined_call_operand.hbm [shape: f32[1,512], index: 2, kind: input, shape index: {}]
  %s3 = inlined_call_operand.hbm [shape: f32[512,256], index: 3, kind: input, shape index: {}]
  %s4 = inlined_call_operand.hbm [shape: f32[1,256], index: 4, kind: input, shape index: {}]
  %s5 = inlined_call_operand.hbm [shape: f32[1,128], index: 5, kind: input, shape index: {}]
  %s6 = inlined_call_operand.<no memory space> [shape: f32[1,1], index: 6, kind: input, shape index: {}]
  %s7 = inlined_call_operand.vmem [shape: f32[512,4], index: 7, kind: input, shape index: {}]
  %s8 = inlined_call_operand.hbm [shape: f32[1,4], index: 8, kind: input, shape index: {}]
  %s9 = inlined_call_operand.hbm [shape: f32[1,4], index: 9, kind: output, shape index: {0}]
  %s10 = inlined_call_operand.hbm [shape: f32[1,128], index: 10, kind: output, shape index: {1}]
  %11 = xla_tuple %s9, %s10
  %s12 = sld [smem:[#allocation0]]
  $region90: #{tpu_custom_call.1} parent=0
    _
  %s14 = ssub.s32 1, %s12
  %s15 = scalar_select 0, %s14, %s12
  %v16 = vstv %s6
  %17 = vst [vmem:[#allocation5] sm:$0x1] %v16
  $region1: #{tpu_custom_call.1} parent=0
    #allocation6 [shape = 'u8[524288]{0}', space=vmem, size = 0x80000, scoped, tag = 'input window, operand 0, single buffered']
    #allocation7 [shape = 's32[1]{0}', space=sflag, size = 0x4, scoped, tag = 'scoped memory for tpu_custom_call.1']
    #allocation8 [shape = 's32[1]{0}', space=sflag, size = 0x4, scoped, tag = 'scoped memory for tpu_custom_call.1']
    #allocation9 [shape = 'u8[2097152]{0}', space=vmem, size = 0x200000, scoped, tag = 'input window, operand 1, single buffered']
    #allocation10 [shape = 's32[1]{0}', space=sflag, size = 0x4, scoped, tag = 'scoped memory for tpu_custom_call.1']
    #allocation11 [shape = 'u8[2048]{0}', space=vmem, size = 0x800, scoped, tag = 'input window, operand 2, single buffered']
    #allocation12 [shape = 'u8[524288]{0}', space=vmem, size = 0x80000, scoped, tag = 'input window, operand 3, single buffered']
    #allocation13 [shape = 's32[1]{0}', space=sflag, size = 0x4, scoped, tag = 'scoped memory for tpu_custom_call.1']
    #allocation14 [shape = 'u8[1024]{0}', space=vmem, size = 0x400, scoped, tag = 'input window, operand 4, single buffered']
    #allocation15 [shape = 'u8[512]{0}', space=vmem, size = 0x400, scoped, tag = 'input window, operand 5, single buffered']
    #allocation16 [shape = 's32[1]{0}', space=sflag, size = 0x4, scoped, tag = 'scoped memory for tpu_custom_call.1']
    #allocation17 [shape = 'u8[512]{0}', space=vmem, size = 0x400, scoped, tag = 'input window, operand 8, single buffered']
    #allocation18 [shape = 'u8[512]{0}', space=vmem, size = 0x400, scoped, tag = 'output window, operand 0, single buffered']
    #allocation19 [shape = 'u8[512]{0}', space=vmem, size = 0x400, scoped, tag = 'output window, operand 1, single buffered']
    #allocation20 [shape = 's32[1]{0}', space=sflag, size = 0x4, scoped, tag = 'scoped memory for tpu_custom_call.1']
    %18 = vsyncpa [#allocation7], 0
    %19 = vsyncpa [#allocation10], 0
    %20 = vsyncpa [#allocation13], 0
    %21 = vsyncpa [#allocation16], 0
    %22 = vsyncpa [#allocation8], 0
    %23 = vsyncpa [#allocation20], 0
    // Predicated region
    $region2: #{tpu_custom_call.1} parent=1 // pred_check
      _
    $region3: #{tpu_custom_call.1} parent=1 // pred_check_branch
      %25 = sbr.rel (0) target = $region5
    $region4: #{tpu_custom_call.1} parent=1 // pred_region
      %s27 = ssub.s32 16384, 2048
      %28 = vsyncadd [#allocation7], %s27
      %s29 = sshll.u32 [#allocation6], 4
      %s30 = int_to_ptr.vmem [resolvable:$true] %s29
      %35 = dma.hbm_to_vmem [thread:$0]  %s0, 2048, %s30, [#allocation7], 1024, 1024, 64
    $region5: #{tpu_custom_call.1} parent=1 // pred_fallthru
      _
    // Predicated region
    $region6: #{tpu_custom_call.1} parent=1 // pred_check
      _
    $region7: #{tpu_custom_call.1} parent=1 // pred_check_branch
      %37 = sbr.rel (0) target = $region9
    $region8: #{tpu_custom_call.1} parent=1 // pred_region
      %s39 = ssub.s32 65536, 65536
      %40 = vsyncadd [#allocation10], %s39
      %s41 = sshll.u32 [#allocation9], 4
      %s42 = int_to_ptr.vmem [resolvable:$true] %s41
      %47 = dma.hbm_to_vmem [thread:$0]  %s1, 65536, %s42, [#allocation10], 512, 512, 32
    $region9: #{tpu_custom_call.1} parent=1 // pred_fallthru
      _
    // Predicated region
    $region10: #{tpu_custom_call.1} parent=1 // pred_check
      _
    $region11: #{tpu_custom_call.1} parent=1 // pred_check_branch
      %49 = sbr.rel (0) target = $region13
    $region12: #{tpu_custom_call.1} parent=1 // pred_region
      %s51 = ssub.s32 64, 64
      %52 = vsyncadd [#allocation10], %s51
      %s54 = sshll.u32 [#allocation11], 4
      %s55 = int_to_ptr.vmem [resolvable:$true] %s54
      %57 = dma.hbm_to_vmem [thread:$0]  %s2, 64, %s55, [#allocation10]
    $region13: #{tpu_custom_call.1} parent=1 // pred_fallthru
      _
    // Predicated region
    $region14: #{tpu_custom_call.1} parent=1 // pred_check
      _
    $region15: #{tpu_custom_call.1} parent=1 // pred_check_branch
      %59 = sbr.rel (0) target = $region17
    $region16: #{tpu_custom_call.1} parent=1 // pred_region
      %s61 = ssub.s32 16384, 16384
      %62 = vsyncadd [#allocation13], %s61
      %s63 = sshll.u32 [#allocation12], 4
      %s64 = int_to_ptr.vmem [resolvable:$true] %s63
      %69 = dma.hbm_to_vmem [thread:$0]  %s3, 16384, %s64, [#allocation13], 256, 256, 16
    $region17: #{tpu_custom_call.1} parent=1 // pred_fallthru
      _
    // Predicated region
    $region18: #{tpu_custom_call.1} parent=1 // pred_check
      _
    $region19: #{tpu_custom_call.1} parent=1 // pred_check_branch
      %71 = sbr.rel (0) target = $region21
    $region20: #{tpu_custom_call.1} parent=1 // pred_region
      %s73 = ssub.s32 32, 32
      %74 = vsyncadd [#allocation13], %s73
      %s76 = sshll.u32 [#allocation14], 4
      %s77 = int_to_ptr.vmem [resolvable:$true] %s76
      %79 = dma.hbm_to_vmem [thread:$0]  %s4, 32, %s77, [#allocation13]
    $region21: #{tpu_custom_call.1} parent=1 // pred_fallthru
      _
    // Predicated region
    $region22: #{tpu_custom_call.1} parent=1 // pred_check
      _
    $region23: #{tpu_custom_call.1} parent=1 // pred_check_branch
      %81 = sbr.rel (0) target = $region25
    $region24: #{tpu_custom_call.1} parent=1 // pred_region
      %s83 = ssub.s32 16, 16
      %84 = vsyncadd [#allocation16], %s83
      %s86 = sshll.u32 [#allocation15], 4
      %s87 = int_to_ptr.vmem [resolvable:$true] %s86
      %89 = dma.hbm_to_vmem [thread:$0]  %s5, 16, %s87, [#allocation16]
    $region25: #{tpu_custom_call.1} parent=1 // pred_fallthru
      _
    // Predicated region
    $region26: #{tpu_custom_call.1} parent=1 // pred_check
      _
    $region27: #{tpu_custom_call.1} parent=1 // pred_check_branch
      %91 = sbr.rel (0) target = $region29
    $region28: #{tpu_custom_call.1} parent=1 // pred_region
      _
    $region29: #{tpu_custom_call.1} parent=1 // pred_fallthru
      _
    // Predicated region
    $region30: #{tpu_custom_call.1} parent=1 // pred_check
      _
    $region31: #{tpu_custom_call.1} parent=1 // pred_check_branch
      %93 = sbr.rel (0) target = $region33
    $region32: #{tpu_custom_call.1} parent=1 // pred_region
      _
    $region33: #{tpu_custom_call.1} parent=1 // pred_fallthru
      _
    // Predicated region
    $region34: #{tpu_custom_call.1} parent=1 // pred_check
      _
    $region35: #{tpu_custom_call.1} parent=1 // pred_check_branch
      %95 = sbr.rel (0) target = $region37
    $region36: #{tpu_custom_call.1} parent=1 // pred_region
      %s97 = ssub.s32 16, 16
      %98 = vsyncadd [#allocation16], %s97
      %s100 = sshll.u32 [#allocation17], 4
      %s101 = int_to_ptr.vmem [resolvable:$true] %s100
      %103 = dma.hbm_to_vmem [thread:$0]  %s8, 16, %s101, [#allocation16]
    $region37: #{tpu_custom_call.1} parent=1 // pred_fallthru
      _
    // Predicated region
    $region38: #{tpu_custom_call.1} parent=1 // pred_check
      _
    $region39: #{tpu_custom_call.1} parent=1 // pred_check_branch
      %105 = sbr.rel (0) target = $region41
    $region40: #{tpu_custom_call.1} parent=1 // pred_region
      %106 = dma.done [#allocation7], 16384
    $region41: #{tpu_custom_call.1} parent=1 // pred_fallthru
      _
    // Predicated region
    $region42: #{tpu_custom_call.1} parent=1 // pred_check
      _
    $region43: #{tpu_custom_call.1} parent=1 // pred_check_branch
      %108 = sbr.rel (0) target = $region45
    $region44: #{tpu_custom_call.1} parent=1 // pred_region
      %109 = dma.done [#allocation10], 65536
    $region45: #{tpu_custom_call.1} parent=1 // pred_fallthru
      _
    // Predicated region
    $region46: #{tpu_custom_call.1} parent=1 // pred_check
      _
    $region47: #{tpu_custom_call.1} parent=1 // pred_check_branch
      %111 = sbr.rel (0) target = $region49
    $region48: #{tpu_custom_call.1} parent=1 // pred_region
      %112 = dma.done [#allocation10], 64
    $region49: #{tpu_custom_call.1} parent=1 // pred_fallthru
      _
    // Predicated region
    $region50: #{tpu_custom_call.1} parent=1 // pred_check
      _
    $region51: #{tpu_custom_call.1} parent=1 // pred_check_branch
      %114 = sbr.rel (0) target = $region53
    $region52: #{tpu_custom_call.1} parent=1 // pred_region
      %115 = dma.done [#allocation13], 16384
    $region53: #{tpu_custom_call.1} parent=1 // pred_fallthru
      _
    // Predicated region
    $region54: #{tpu_custom_call.1} parent=1 // pred_check
      _
    $region55: #{tpu_custom_call.1} parent=1 // pred_check_branch
      %117 = sbr.rel (0) target = $region57
    $region56: #{tpu_custom_call.1} parent=1 // pred_region
      %118 = dma.done [#allocation13], 32
    $region57: #{tpu_custom_call.1} parent=1 // pred_fallthru
      _
    // Predicated region
    $region58: #{tpu_custom_call.1} parent=1 // pred_check
      _
    $region59: #{tpu_custom_call.1} parent=1 // pred_check_branch
      %120 = sbr.rel (0) target = $region61
    $region60: #{tpu_custom_call.1} parent=1 // pred_region
      %121 = dma.done [#allocation16], 16
    $region61: #{tpu_custom_call.1} parent=1 // pred_fallthru
      _
    // Predicated region
    $region62: #{tpu_custom_call.1} parent=1 // pred_check
      _
    $region63: #{tpu_custom_call.1} parent=1 // pred_check_branch
      %123 = sbr.rel (0) target = $region65
    $region64: #{tpu_custom_call.1} parent=1 // pred_region
      %124 = dma.done [#allocation16], 16
    $region65: #{tpu_custom_call.1} parent=1 // pred_fallthru
      _
    %p125 = scmp.eq.s32.totalorder 0, 0
    // Predicated region
    $region66: #{tpu_custom_call.1} parent=1 // pred_check
      %p126 = pneg %p125
    $region67: #{tpu_custom_call.1} parent=1 // pred_check_branch
      %128 = sbr.rel (%p126) target = $region69
    $region68: #{tpu_custom_call.1} parent=1 // pred_region
      %vm129 = vcmask 0
      %130 = vst.msk [vmem:[#allocation2] sm:$0x1] %vm129, -1e+30
      %131 = vst.msk [vmem:[#allocation3] sm:$0x1] %vm129, 0.0
      %v132 = vlaneseq
      %vm133 = vcmp.ge.s32.totalorder %v132, 0
      %vm134 = vcmp.lt.s32.totalorder %v132, 512
      %vm135 = vmand %vm133, %vm134
      %136 = vst.msk [vmem:[#allocation4] sm:$0xf] %vm135, 0.0
    $region69: #{tpu_custom_call.1} parent=1 // pred_fallthru
      _
    %v137 = vld [vmem:[#allocation6] sm:$0xff]
    %v138 = vld [vmem:[#allocation6 + $0x8] sm:$0xff]
    %v139 = vld [vmem:[#allocation6 + $0x10] sm:$0xff]
    %v140 = vld [vmem:[#allocation6 + $0x18] sm:$0xff]
    %v141 = vld [vmem:[#allocation6 + $0x20] sm:$0xff]
    %v142 = vld [vmem:[#allocation6 + $0x28] sm:$0xff]
    %v143 = vld [vmem:[#allocation6 + $0x30] sm:$0xff]
    %v144 = vld [vmem:[#allocation6 + $0x38] sm:$0xff]
    %v145 = vld [vmem:[#allocation6 + $0x40] sm:$0xff]
    %v146 = vld [vmem:[#allocation6 + $0x48] sm:$0xff]
    %v147 = vld [vmem:[#allocation6 + $0x50] sm:$0xff]
    %v148 = vld [vmem:[#allocation6 + $0x58] sm:$0xff]
    %v149 = vld [vmem:[#allocation6 + $0x60] sm:$0xff]
    %v150 = vld [vmem:[#allocation6 + $0x68] sm:$0xff]
    %v151 = vld [vmem:[#allocation6 + $0x70] sm:$0xff]
    %v152 = vld [vmem:[#allocation6 + $0x78] sm:$0xff]
    %v153 = vld [vmem:[#allocation6 + $0x80] sm:$0xff]
    %v154 = vld [vmem:[#allocation6 + $0x88] sm:$0xff]
    %v155 = vld [vmem:[#allocation6 + $0x90] sm:$0xff]
    %v156 = vld [vmem:[#allocation6 + $0x98] sm:$0xff]
    %v157 = vld [vmem:[#allocation6 + $0xa0] sm:$0xff]
    %v158 = vld [vmem:[#allocation6 + $0xa8] sm:$0xff]
    %v159 = vld [vmem:[#allocation6 + $0xb0] sm:$0xff]
    %v160 = vld [vmem:[#allocation6 + $0xb8] sm:$0xff]
    %v161 = vld [vmem:[#allocation6 + $0xc0] sm:$0xff]
    %v162 = vld [vmem:[#allocation6 + $0xc8] sm:$0xff]
    %v163 = vld [vmem:[#allocation6 + $0xd0] sm:$0xff]
    %v164 = vld [vmem:[#allocation6 + $0xd8] sm:$0xff]
    %v165 = vld [vmem:[#allocation6 + $0xe0] sm:$0xff]
    %v166 = vld [vmem:[#allocation6 + $0xe8] sm:$0xff]
    %v167 = vld [vmem:[#allocation6 + $0xf0] sm:$0xff]
    %v168 = vld [vmem:[#allocation6 + $0xf8] sm:$0xff]
    %v169 = vld [vmem:[#allocation6 + $0x100] sm:$0xff]
    %v170 = vld [vmem:[#allocation6 + $0x108] sm:$0xff]
    %v171 = vld [vmem:[#allocation6 + $0x110] sm:$0xff]
    %v172 = vld [vmem:[#allocation6 + $0x118] sm:$0xff]
    %v173 = vld [vmem:[#allocation6 + $0x120] sm:$0xff]
    %v174 = vld [vmem:[#allocation6 + $0x128] sm:$0xff]
    %v175 = vld [vmem:[#allocation6 + $0x130] sm:$0xff]
    %v176 = vld [vmem:[#allocation6 + $0x138] sm:$0xff]
    %v177 = vld [vmem:[#allocation6 + $0x140] sm:$0xff]
    %v178 = vld [vmem:[#allocation6 + $0x148] sm:$0xff]
    %v179 = vld [vmem:[#allocation6 + $0x150] sm:$0xff]
    %v180 = vld [vmem:[#allocation6 + $0x158] sm:$0xff]
    %v181 = vld [vmem:[#allocation6 + $0x160] sm:$0xff]
    %v182 = vld [vmem:[#allocation6 + $0x168] sm:$0xff]
    %v183 = vld [vmem:[#allocation6 + $0x170] sm:$0xff]
    %v184 = vld [vmem:[#allocation6 + $0x178] sm:$0xff]
    %v185 = vld [vmem:[#allocation6 + $0x180] sm:$0xff]
    %v186 = vld [vmem:[#allocation6 + $0x188] sm:$0xff]
    %v187 = vld [vmem:[#allocation6 + $0x190] sm:$0xff]
    %v188 = vld [vmem:[#allocation6 + $0x198] sm:$0xff]
    %v189 = vld [vmem:[#allocation6 + $0x1a0] sm:$0xff]
    %v190 = vld [vmem:[#allocation6 + $0x1a8] sm:$0xff]
    %v191 = vld [vmem:[#allocation6 + $0x1b0] sm:$0xff]
    %v192 = vld [vmem:[#allocation6 + $0x1b8] sm:$0xff]
    %v193 = vld [vmem:[#allocation6 + $0x1c0] sm:$0xff]
    %v194 = vld [vmem:[#allocation6 + $0x1c8] sm:$0xff]
    %v195 = vld [vmem:[#allocation6 + $0x1d0] sm:$0xff]
    %v196 = vld [vmem:[#allocation6 + $0x1d8] sm:$0xff]
    %v197 = vld [vmem:[#allocation6 + $0x1e0] sm:$0xff]
    %v198 = vld [vmem:[#allocation6 + $0x1e8] sm:$0xff]
    %v199 = vld [vmem:[#allocation6 + $0x1f0] sm:$0xff]
    %v200 = vld [vmem:[#allocation6 + $0x1f8] sm:$0xff]
    %v201 = vld [vmem:[#allocation6 + $0x200] sm:$0xff]
    %v202 = vld [vmem:[#allocation6 + $0x208] sm:$0xff]
    %v203 = vld [vmem:[#allocation6 + $0x210] sm:$0xff]
    %v204 = vld [vmem:[#allocation6 + $0x218] sm:$0xff]
    %v205 = vld [vmem:[#allocation6 + $0x220] sm:$0xff]
    %v206 = vld [vmem:[#allocation6 + $0x228] sm:$0xff]
    %v207 = vld [vmem:[#allocation6 + $0x230] sm:$0xff]
    %v208 = vld [vmem:[#allocation6 + $0x238] sm:$0xff]
    %v209 = vld [vmem:[#allocation6 + $0x240] sm:$0xff]
    %v210 = vld [vmem:[#allocation6 + $0x248] sm:$0xff]
    %v211 = vld [vmem:[#allocation6 + $0x250] sm:$0xff]
    %v212 = vld [vmem:[#allocation6 + $0x258] sm:$0xff]
    %v213 = vld [vmem:[#allocation6 + $0x260] sm:$0xff]
    %v214 = vld [vmem:[#allocation6 + $0x268] sm:$0xff]
    %v215 = vld [vmem:[#allocation6 + $0x270] sm:$0xff]
    %v216 = vld [vmem:[#allocation6 + $0x278] sm:$0xff]
    %v217 = vld [vmem:[#allocation6 + $0x280] sm:$0xff]
    %v218 = vld [vmem:[#allocation6 + $0x288] sm:$0xff]
    %v219 = vld [vmem:[#allocation6 + $0x290] sm:$0xff]
    %v220 = vld [vmem:[#allocation6 + $0x298] sm:$0xff]
    %v221 = vld [vmem:[#allocation6 + $0x2a0] sm:$0xff]
    %v222 = vld [vmem:[#allocation6 + $0x2a8] sm:$0xff]
    %v223 = vld [vmem:[#allocation6 + $0x2b0] sm:$0xff]
    %v224 = vld [vmem:[#allocation6 + $0x2b8] sm:$0xff]
    %v225 = vld [vmem:[#allocation6 + $0x2c0] sm:$0xff]
    %v226 = vld [vmem:[#allocation6 + $0x2c8] sm:$0xff]
    %v227 = vld [vmem:[#allocation6 + $0x2d0] sm:$0xff]
    %v228 = vld [vmem:[#allocation6 + $0x2d8] sm:$0xff]
    %v229 = vld [vmem:[#allocation6 + $0x2e0] sm:$0xff]
    %v230 = vld [vmem:[#allocation6 + $0x2e8] sm:$0xff]
    %v231 = vld [vmem:[#allocation6 + $0x2f0] sm:$0xff]
    %v232 = vld [vmem:[#allocation6 + $0x2f8] sm:$0xff]
    %v233 = vld [vmem:[#allocation6 + $0x300] sm:$0xff]
    %v234 = vld [vmem:[#allocation6 + $0x308] sm:$0xff]
    %v235 = vld [vmem:[#allocation6 + $0x310] sm:$0xff]
    %v236 = vld [vmem:[#allocation6 + $0x318] sm:$0xff]
    %v237 = vld [vmem:[#allocation6 + $0x320] sm:$0xff]
    %v238 = vld [vmem:[#allocation6 + $0x328] sm:$0xff]
    %v239 = vld [vmem:[#allocation6 + $0x330] sm:$0xff]
    %v240 = vld [vmem:[#allocation6 + $0x338] sm:$0xff]
    %v241 = vld [vmem:[#allocation6 + $0x340] sm:$0xff]
    %v242 = vld [vmem:[#allocation6 + $0x348] sm:$0xff]
    %v243 = vld [vmem:[#allocation6 + $0x350] sm:$0xff]
    %v244 = vld [vmem:[#allocation6 + $0x358] sm:$0xff]
    %v245 = vld [vmem:[#allocation6 + $0x360] sm:$0xff]
    %v246 = vld [vmem:[#allocation6 + $0x368] sm:$0xff]
    %v247 = vld [vmem:[#allocation6 + $0x370] sm:$0xff]
    %v248 = vld [vmem:[#allocation6 + $0x378] sm:$0xff]
    %v249 = vld [vmem:[#allocation6 + $0x380] sm:$0xff]
    %v250 = vld [vmem:[#allocation6 + $0x388] sm:$0xff]
    %v251 = vld [vmem:[#allocation6 + $0x390] sm:$0xff]
    %v252 = vld [vmem:[#allocation6 + $0x398] sm:$0xff]
    %v253 = vld [vmem:[#allocation6 + $0x3a0] sm:$0xff]
    %v254 = vld [vmem:[#allocation6 + $0x3a8] sm:$0xff]
    %v255 = vld [vmem:[#allocation6 + $0x3b0] sm:$0xff]
    %v256 = vld [vmem:[#allocation6 + $0x3b8] sm:$0xff]
    %v257 = vld [vmem:[#allocation6 + $0x3c0] sm:$0xff]
    %v258 = vld [vmem:[#allocation6 + $0x3c8] sm:$0xff]
    %v259 = vld [vmem:[#allocation6 + $0x3d0] sm:$0xff]
    %v260 = vld [vmem:[#allocation6 + $0x3d8] sm:$0xff]
    %v261 = vld [vmem:[#allocation6 + $0x3e0] sm:$0xff]
    %v262 = vld [vmem:[#allocation6 + $0x3e8] sm:$0xff]
    %v263 = vld [vmem:[#allocation6 + $0x3f0] sm:$0xff]
    %v264 = vld [vmem:[#allocation6 + $0x3f8] sm:$0xff]
    %v265 = vld [vmem:[#allocation9] sm:$0xff]
    %v266 = vld [vmem:[#allocation9 + $0x8] sm:$0xff]
    %v267 = vld [vmem:[#allocation9 + $0x10] sm:$0xff]
    %v268 = vld [vmem:[#allocation9 + $0x18] sm:$0xff]
    %v269 = vld [vmem:[#allocation9 + $0x20] sm:$0xff]
    %v270 = vld [vmem:[#allocation9 + $0x28] sm:$0xff]
    %v271 = vld [vmem:[#allocation9 + $0x30] sm:$0xff]
    %v272 = vld [vmem:[#allocation9 + $0x38] sm:$0xff]
    %v273 = vld [vmem:[#allocation9 + $0x40] sm:$0xff]
    %v274 = vld [vmem:[#allocation9 + $0x48] sm:$0xff]
    %v275 = vld [vmem:[#allocation9 + $0x50] sm:$0xff]
    %v276 = vld [vmem:[#allocation9 + $0x58] sm:$0xff]
    %v277 = vld [vmem:[#allocation9 + $0x60] sm:$0xff]
    %v278 = vld [vmem:[#allocation9 + $0x68] sm:$0xff]
    %v279 = vld [vmem:[#allocation9 + $0x70] sm:$0xff]
    %v280 = vld [vmem:[#allocation9 + $0x78] sm:$0xff]
    %v281 = vld [vmem:[#allocation9 + $0x80] sm:$0xff]
    %v282 = vld [vmem:[#allocation9 + $0x88] sm:$0xff]
    %v283 = vld [vmem:[#allocation9 + $0x90] sm:$0xff]
    %v284 = vld [vmem:[#allocation9 + $0x98] sm:$0xff]
    %v285 = vld [vmem:[#allocation9 + $0xa0] sm:$0xff]
    %v286 = vld [vmem:[#allocation9 + $0xa8] sm:$0xff]
    %v287 = vld [vmem:[#allocation9 + $0xb0] sm:$0xff]
    %v288 = vld [vmem:[#allocation9 + $0xb8] sm:$0xff]
    %v289 = vld [vmem:[#allocation9 + $0xc0] sm:$0xff]
    %v290 = vld [vmem:[#allocation9 + $0xc8] sm:$0xff]
    %v291 = vld [vmem:[#allocation9 + $0xd0] sm:$0xff]
    %v292 = vld [vmem:[#allocation9 + $0xd8] sm:$0xff]
    %v293 = vld [vmem:[#allocation9 + $0xe0] sm:$0xff]
    %v294 = vld [vmem:[#allocation9 + $0xe8] sm:$0xff]
    %v295 = vld [vmem:[#allocation9 + $0xf0] sm:$0xff]
    %v296 = vld [vmem:[#allocation9 + $0xf8] sm:$0xff]
    %v297 = vld [vmem:[#allocation9 + $0x100] sm:$0xff]
    %v298 = vld [vmem:[#allocation9 + $0x108] sm:$0xff]
    %v299 = vld [vmem:[#allocation9 + $0x110] sm:$0xff]
    %v300 = vld [vmem:[#allocation9 + $0x118] sm:$0xff]
    %v301 = vld [vmem:[#allocation9 + $0x120] sm:$0xff]
    %v302 = vld [vmem:[#allocation9 + $0x128] sm:$0xff]
    %v303 = vld [vmem:[#allocation9 + $0x130] sm:$0xff]
    %v304 = vld [vmem:[#allocation9 + $0x138] sm:$0xff]
    %v305 = vld [vmem:[#allocation9 + $0x140] sm:$0xff]
    %v306 = vld [vmem:[#allocation9 + $0x148] sm:$0xff]
    %v307 = vld [vmem:[#allocation9 + $0x150] sm:$0xff]
    %v308 = vld [vmem:[#allocation9 + $0x158] sm:$0xff]
    %v309 = vld [vmem:[#allocation9 + $0x160] sm:$0xff]
    %v310 = vld [vmem:[#allocation9 + $0x168] sm:$0xff]
    %v311 = vld [vmem:[#allocation9 + $0x170] sm:$0xff]
    %v312 = vld [vmem:[#allocation9 + $0x178] sm:$0xff]
    %v313 = vld [vmem:[#allocation9 + $0x180] sm:$0xff]
    %v314 = vld [vmem:[#allocation9 + $0x188] sm:$0xff]
    %v315 = vld [vmem:[#allocation9 + $0x190] sm:$0xff]
    %v316 = vld [vmem:[#allocation9 + $0x198] sm:$0xff]
    %v317 = vld [vmem:[#allocation9 + $0x1a0] sm:$0xff]
    %v318 = vld [vmem:[#allocation9 + $0x1a8] sm:$0xff]
    %v319 = vld [vmem:[#allocation9 + $0x1b0] sm:$0xff]
    %v320 = vld [vmem:[#allocation9 + $0x1b8] sm:$0xff]
    %v321 = vld [vmem:[#allocation9 + $0x1c0] sm:$0xff]
    %v322 = vld [vmem:[#allocation9 + $0x1c8] sm:$0xff]
    %v323 = vld [vmem:[#allocation9 + $0x1d0] sm:$0xff]
    %v324 = vld [vmem:[#allocation9 + $0x1d8] sm:$0xff]
    %v325 = vld [vmem:[#allocation9 + $0x1e0] sm:$0xff]
    %v326 = vld [vmem:[#allocation9 + $0x1e8] sm:$0xff]
    %v327 = vld [vmem:[#allocation9 + $0x1f0] sm:$0xff]
    %v328 = vld [vmem:[#allocation9 + $0x1f8] sm:$0xff]
    %v329 = vld [vmem:[#allocation9 + $0x200] sm:$0xff]
    %v330 = vld [vmem:[#allocation9 + $0x208] sm:$0xff]
    %v331 = vld [vmem:[#allocation9 + $0x210] sm:$0xff]
    %v332 = vld [vmem:[#allocation9 + $0x218] sm:$0xff]
    %v333 = vld [vmem:[#allocation9 + $0x220] sm:$0xff]
    %v334 = vld [vmem:[#allocation9 + $0x228] sm:$0xff]
    %v335 = vld [vmem:[#allocation9 + $0x230] sm:$0xff]
    %v336 = vld [vmem:[#allocation9 + $0x238] sm:$0xff]
    %v337 = vld [vmem:[#allocation9 + $0x240] sm:$0xff]
    %v338 = vld [vmem:[#allocation9 + $0x248] sm:$0xff]
    %v339 = vld [vmem:[#allocation9 + $0x250] sm:$0xff]
    %v340 = vld [vmem:[#allocation9 + $0x258] sm:$0xff]
    %v341 = vld [vmem:[#allocation9 + $0x260] sm:$0xff]
    %v342 = vld [vmem:[#allocation9 + $0x268] sm:$0xff]
    %v343 = vld [vmem:[#allocation9 + $0x270] sm:$0xff]
    %v344 = vld [vmem:[#allocation9 + $0x278] sm:$0xff]
    %v345 = vld [vmem:[#allocation9 + $0x280] sm:$0xff]
    %v346 = vld [vmem:[#allocation9 + $0x288] sm:$0xff]
    %v347 = vld [vmem:[#allocation9 + $0x290] sm:$0xff]
    %v348 = vld [vmem:[#allocation9 + $0x298] sm:$0xff]
    %v349 = vld [vmem:[#allocation9 + $0x2a0] sm:$0xff]
    %v350 = vld [vmem:[#allocation9 + $0x2a8] sm:$0xff]
    %v351 = vld [vmem:[#allocation9 + $0x2b0] sm:$0xff]
    %v352 = vld [vmem:[#allocation9 + $0x2b8] sm:$0xff]
    %v353 = vld [vmem:[#allocation9 + $0x2c0] sm:$0xff]
    %v354 = vld [vmem:[#allocation9 + $0x2c8] sm:$0xff]
    %v355 = vld [vmem:[#allocation9 + $0x2d0] sm:$0xff]
    %v356 = vld [vmem:[#allocation9 + $0x2d8] sm:$0xff]
    %v357 = vld [vmem:[#allocation9 + $0x2e0] sm:$0xff]
    %v358 = vld [vmem:[#allocation9 + $0x2e8] sm:$0xff]
    %v359 = vld [vmem:[#allocation9 + $0x2f0] sm:$0xff]
    %v360 = vld [vmem:[#allocation9 + $0x2f8] sm:$0xff]
    %v361 = vld [vmem:[#allocation9 + $0x300] sm:$0xff]
    %v362 = vld [vmem:[#allocation9 + $0x308] sm:$0xff]
    %v363 = vld [vmem:[#allocation9 + $0x310] sm:$0xff]
    %v364 = vld [vmem:[#allocation9 + $0x318] sm:$0xff]
    %v365 = vld [vmem:[#allocation9 + $0x320] sm:$0xff]
    %v366 = vld [vmem:[#allocation9 + $0x328] sm:$0xff]
    %v367 = vld [vmem:[#allocation9 + $0x330] sm:$0xff]
    %v368 = vld [vmem:[#allocation9 + $0x338] sm:$0xff]
    %v369 = vld [vmem:[#allocation9 + $0x340] sm:$0xff]
    %v370 = vld [vmem:[#allocation9 + $0x348] sm:$0xff]
    %v371 = vld [vmem:[#allocation9 + $0x350] sm:$0xff]
    %v372 = vld [vmem:[#allocation9 + $0x358] sm:$0xff]
    %v373 = vld [vmem:[#allocation9 + $0x360] sm:$0xff]
    %v374 = vld [vmem:[#allocation9 + $0x368] sm:$0xff]
    %v375 = vld [vmem:[#allocation9 + $0x370] sm:$0xff]
    %v376 = vld [vmem:[#allocation9 + $0x378] sm:$0xff]
    %v377 = vld [vmem:[#allocation9 + $0x380] sm:$0xff]
    %v378 = vld [vmem:[#allocation9 + $0x388] sm:$0xff]
    %v379 = vld [vmem:[#allocation9 + $0x390] sm:$0xff]
    %v380 = vld [vmem:[#allocation9 + $0x398] sm:$0xff]
    %v381 = vld [vmem:[#allocation9 + $0x3a0] sm:$0xff]
    %v382 = vld [vmem:[#allocation9 + $0x3a8] sm:$0xff]
    %v383 = vld [vmem:[#allocation9 + $0x3b0] sm:$0xff]
    %v384 = vld [vmem:[#allocation9 + $0x3b8] sm:$0xff]
    %v385 = vld [vmem:[#allocation9 + $0x3c0] sm:$0xff]
    %v386 = vld [vmem:[#allocation9 + $0x3c8] sm:$0xff]
    %v387 = vld [vmem:[#allocation9 + $0x3d0] sm:$0xff]
    %v388 = vld [vmem:[#allocation9 + $0x3d8] sm:$0xff]
    %v389 = vld [vmem:[#allocation9 + $0x3e0] sm:$0xff]
    %v390 = vld [vmem:[#allocation9 + $0x3e8] sm:$0xff]
    %v391 = vld [vmem:[#allocation9 + $0x3f0] sm:$0xff]
    %v392 = vld [vmem:[#allocation9 + $0x3f8] sm:$0xff]
    %v393 = vld [vmem:[#allocation9 + $0x400] sm:$0xff]
    %v394 = vld [vmem:[#allocation9 + $0x408] sm:$0xff]
    %v395 = vld [vmem:[#allocation9 + $0x410] sm:$0xff]
    %v396 = vld [vmem:[#allocation9 + $0x418] sm:$0xff]
    %v397 = vld [vmem:[#allocation9 + $0x420] sm:$0xff]
    %v398 = vld [vmem:[#allocation9 + $0x428] sm:$0xff]
    %v399 = vld [vmem:[#allocation9 + $0x430] sm:$0xff]
    %v400 = vld [vmem:[#allocation9 + $0x438] sm:$0xff]
    %v401 = vld [vmem:[#allocation9 + $0x440] sm:$0xff]
    %v402 = vld [vmem:[#allocation9 + $0x448] sm:$0xff]
    %v403 = vld [vmem:[#allocation9 + $0x450] sm:$0xff]
    %v404 = vld [vmem:[#allocation9 + $0x458] sm:$0xff]
    %v405 = vld [vmem:[#allocation9 + $0x460] sm:$0xff]
    %v406 = vld [vmem:[#allocation9 + $0x468] sm:$0xff]
    %v407 = vld [vmem:[#allocation9 + $0x470] sm:$0xff]
    %v408 = vld [vmem:[#allocation9 + $0x478] sm:$0xff]
    %v409 = vld [vmem:[#allocation9 + $0x480] sm:$0xff]
    %v410 = vld [vmem:[#allocation9 + $0x488] sm:$0xff]
    %v411 = vld [vmem:[#allocation9 + $0x490] sm:$0xff]
    %v412 = vld [vmem:[#allocation9 + $0x498] sm:$0xff]
    %v413 = vld [vmem:[#allocation9 + $0x4a0] sm:$0xff]
    %v414 = vld [vmem:[#allocation9 + $0x4a8] sm:$0xff]
    %v415 = vld [vmem:[#allocation9 + $0x4b0] sm:$0xff]
    %v416 = vld [vmem:[#allocation9 + $0x4b8] sm:$0xff]
    %v417 = vld [vmem:[#allocation9 + $0x4c0] sm:$0xff]
    %v418 = vld [vmem:[#allocation9 + $0x4c8] sm:$0xff]
    %v419 = vld [vmem:[#allocation9 + $0x4d0] sm:$0xff]
    %v420 = vld [vmem:[#allocation9 + $0x4d8] sm:$0xff]
    %v421 = vld [vmem:[#allocation9 + $0x4e0] sm:$0xff]
    %v422 = vld [vmem:[#allocation9 + $0x4e8] sm:$0xff]
    %v423 = vld [vmem:[#allocation9 + $0x4f0] sm:$0xff]
    %v424 = vld [vmem:[#allocation9 + $0x4f8] sm:$0xff]
    %v425 = vld [vmem:[#allocation9 + $0x500] sm:$0xff]
    %v426 = vld [vmem:[#allocation9 + $0x508] sm:$0xff]
    %v427 = vld [vmem:[#allocation9 + $0x510] sm:$0xff]
    %v428 = vld [vmem:[#allocation9 + $0x518] sm:$0xff]
    %v429 = vld [vmem:[#allocation9 + $0x520] sm:$0xff]
    %v430 = vld [vmem:[#allocation9 + $0x528] sm:$0xff]
    %v431 = vld [vmem:[#allocation9 + $0x530] sm:$0xff]
    %v432 = vld [vmem:[#allocation9 + $0x538] sm:$0xff]
    %v433 = vld [vmem:[#allocation9 + $0x540] sm:$0xff]
    %v434 = vld [vmem:[#allocation9 + $0x548] sm:$0xff]
    %v435 = vld [vmem:[#allocation9 + $0x550] sm:$0xff]
    %v436 = vld [vmem:[#allocation9 + $0x558] sm:$0xff]
    %v437 = vld [vmem:[#allocation9 + $0x560] sm:$0xff]
    %v438 = vld [vmem:[#allocation9 + $0x568] sm:$0xff]
    %v439 = vld [vmem:[#allocation9 + $0x570] sm:$0xff]
    %v440 = vld [vmem:[#allocation9 + $0x578] sm:$0xff]
    %v441 = vld [vmem:[#allocation9 + $0x580] sm:$0xff]
    %v442 = vld [vmem:[#allocation9 + $0x588] sm:$0xff]
    %v443 = vld [vmem:[#allocation9 + $0x590] sm:$0xff]
    %v444 = vld [vmem:[#allocation9 + $0x598] sm:$0xff]
    %v445 = vld [vmem:[#allocation9 + $0x5a0] sm:$0xff]
    %v446 = vld [vmem:[#allocation9 + $0x5a8] sm:$0xff]
    %v447 = vld [vmem:[#allocation9 + $0x5b0] sm:$0xff]
    %v448 = vld [vmem:[#allocation9 + $0x5b8] sm:$0xff]
    %v449 = vld [vmem:[#allocation9 + $0x5c0] sm:$0xff]
    %v450 = vld [vmem:[#allocation9 + $0x5c8] sm:$0xff]
    %v451 = vld [vmem:[#allocation9 + $0x5d0] sm:$0xff]
    %v452 = vld [vmem:[#allocation9 + $0x5d8] sm:$0xff]
    %v453 = vld [vmem:[#allocation9 + $0x5e0] sm:$0xff]
    %v454 = vld [vmem:[#allocation9 + $0x5e8] sm:$0xff]
    %v455 = vld [vmem:[#allocation9 + $0x5f0] sm:$0xff]
    %v456 = vld [vmem:[#allocation9 + $0x5f8] sm:$0xff]
    %v457 = vld [vmem:[#allocation9 + $0x600] sm:$0xff]
    %v458 = vld [vmem:[#allocation9 + $0x608] sm:$0xff]
    %v459 = vld [vmem:[#allocation9 + $0x610] sm:$0xff]
    %v460 = vld [vmem:[#allocation9 + $0x618] sm:$0xff]
    %v461 = vld [vmem:[#allocation9 + $0x620] sm:$0xff]
    %v462 = vld [vmem:[#allocation9 + $0x628] sm:$0xff]
    %v463 = vld [vmem:[#allocation9 + $0x630] sm:$0xff]
    %v464 = vld [vmem:[#allocation9 + $0x638] sm:$0xff]
    %v465 = vld [vmem:[#allocation9 + $0x640] sm:$0xff]
    %v466 = vld [vmem:[#allocation9 + $0x648] sm:$0xff]
    %v467 = vld [vmem:[#allocation9 + $0x650] sm:$0xff]
    %v468 = vld [vmem:[#allocation9 + $0x658] sm:$0xff]
    %v469 = vld [vmem:[#allocation9 + $0x660] sm:$0xff]
    %v470 = vld [vmem:[#allocation9 + $0x668] sm:$0xff]
    %v471 = vld [vmem:[#allocation9 + $0x670] sm:$0xff]
    %v472 = vld [vmem:[#allocation9 + $0x678] sm:$0xff]
    %v473 = vld [vmem:[#allocation9 + $0x680] sm:$0xff]
    %v474 = vld [vmem:[#allocation9 + $0x688] sm:$0xff]
    %v475 = vld [vmem:[#allocation9 + $0x690] sm:$0xff]
    %v476 = vld [vmem:[#allocation9 + $0x698] sm:$0xff]
    %v477 = vld [vmem:[#allocation9 + $0x6a0] sm:$0xff]
    %v478 = vld [vmem:[#allocation9 + $0x6a8] sm:$0xff]
    %v479 = vld [vmem:[#allocation9 + $0x6b0] sm:$0xff]
    %v480 = vld [vmem:[#allocation9 + $0x6b8] sm:$0xff]
    %v481 = vld [vmem:[#allocation9 + $0x6c0] sm:$0xff]
    %v482 = vld [vmem:[#allocation9 + $0x6c8] sm:$0xff]
    %v483 = vld [vmem:[#allocation9 + $0x6d0] sm:$0xff]
    %v484 = vld [vmem:[#allocation9 + $0x6d8] sm:$0xff]
    %v485 = vld [vmem:[#allocation9 + $0x6e0] sm:$0xff]
    %v486 = vld [vmem:[#allocation9 + $0x6e8] sm:$0xff]
    %v487 = vld [vmem:[#allocation9 + $0x6f0] sm:$0xff]
    %v488 = vld [vmem:[#allocation9 + $0x6f8] sm:$0xff]
    %v489 = vld [vmem:[#allocation9 + $0x700] sm:$0xff]
    %v490 = vld [vmem:[#allocation9 + $0x708] sm:$0xff]
    %v491 = vld [vmem:[#allocation9 + $0x710] sm:$0xff]
    %v492 = vld [vmem:[#allocation9 + $0x718] sm:$0xff]
    %v493 = vld [vmem:[#allocation9 + $0x720] sm:$0xff]
    %v494 = vld [vmem:[#allocation9 + $0x728] sm:$0xff]
    %v495 = vld [vmem:[#allocation9 + $0x730] sm:$0xff]
    %v496 = vld [vmem:[#allocation9 + $0x738] sm:$0xff]
    %v497 = vld [vmem:[#allocation9 + $0x740] sm:$0xff]
    %v498 = vld [vmem:[#allocation9 + $0x748] sm:$0xff]
    %v499 = vld [vmem:[#allocation9 + $0x750] sm:$0xff]
    %v500 = vld [vmem:[#allocation9 + $0x758] sm:$0xff]
    %v501 = vld [vmem:[#allocation9 + $0x760] sm:$0xff]
    %v502 = vld [vmem:[#allocation9 + $0x768] sm:$0xff]
    %v503 = vld [vmem:[#allocation9 + $0x770] sm:$0xff]
    %v504 = vld [vmem:[#allocation9 + $0x778] sm:$0xff]
    %v505 = vld [vmem:[#allocation9 + $0x780] sm:$0xff]
    %v506 = vld [vmem:[#allocation9 + $0x788] sm:$0xff]
    %v507 = vld [vmem:[#allocation9 + $0x790] sm:$0xff]
    %v508 = vld [vmem:[#allocation9 + $0x798] sm:$0xff]
    %v509 = vld [vmem:[#allocation9 + $0x7a0] sm:$0xff]
    %v510 = vld [vmem:[#allocation9 + $0x7a8] sm:$0xff]
    %v511 = vld [vmem:[#allocation9 + $0x7b0] sm:$0xff]
    %v512 = vld [vmem:[#allocation9 + $0x7b8] sm:$0xff]
    %v513 = vld [vmem:[#allocation9 + $0x7c0] sm:$0xff]
    %v514 = vld [vmem:[#allocation9 + $0x7c8] sm:$0xff]
    %v515 = vld [vmem:[#allocation9 + $0x7d0] sm:$0xff]
    %v516 = vld [vmem:[#allocation9 + $0x7d8] sm:$0xff]
    %v517 = vld [vmem:[#allocation9 + $0x7e0] sm:$0xff]
    %v518 = vld [vmem:[#allocation9 + $0x7e8] sm:$0xff]
    %v519 = vld [vmem:[#allocation9 + $0x7f0] sm:$0xff]
    %v520 = vld [vmem:[#allocation9 + $0x7f8] sm:$0xff]
    %v521 = vld [vmem:[#allocation9 + $0x800] sm:$0xff]
    %v522 = vld [vmem:[#allocation9 + $0x808] sm:$0xff]
    %v523 = vld [vmem:[#allocation9 + $0x810] sm:$0xff]
    %v524 = vld [vmem:[#allocation9 + $0x818] sm:$0xff]
    %v525 = vld [vmem:[#allocation9 + $0x820] sm:$0xff]
    %v526 = vld [vmem:[#allocation9 + $0x828] sm:$0xff]
    %v527 = vld [vmem:[#allocation9 + $0x830] sm:$0xff]
    %v528 = vld [vmem:[#allocation9 + $0x838] sm:$0xff]
    %v529 = vld [vmem:[#allocation9 + $0x840] sm:$0xff]
    %v530 = vld [vmem:[#allocation9 + $0x848] sm:$0xff]
    %v531 = vld [vmem:[#allocation9 + $0x850] sm:$0xff]
    %v532 = vld [vmem:[#allocation9 + $0x858] sm:$0xff]
    %v533 = vld [vmem:[#allocation9 + $0x860] sm:$0xff]
    %v534 = vld [vmem:[#allocation9 + $0x868] sm:$0xff]
    %v535 = vld [vmem:[#allocation9 + $0x870] sm:$0xff]
    %v536 = vld [vmem:[#allocation9 + $0x878] sm:$0xff]
    %v537 = vld [vmem:[#allocation9 + $0x880] sm:$0xff]
    %v538 = vld [vmem:[#allocation9 + $0x888] sm:$0xff]
    %v539 = vld [vmem:[#allocation9 + $0x890] sm:$0xff]
    %v540 = vld [vmem:[#allocation9 + $0x898] sm:$0xff]
    %v541 = vld [vmem:[#allocation9 + $0x8a0] sm:$0xff]
    %v542 = vld [vmem:[#allocation9 + $0x8a8] sm:$0xff]
    %v543 = vld [vmem:[#allocation9 + $0x8b0] sm:$0xff]
    %v544 = vld [vmem:[#allocation9 + $0x8b8] sm:$0xff]
    %v545 = vld [vmem:[#allocation9 + $0x8c0] sm:$0xff]
    %v546 = vld [vmem:[#allocation9 + $0x8c8] sm:$0xff]
    %v547 = vld [vmem:[#allocation9 + $0x8d0] sm:$0xff]
    %v548 = vld [vmem:[#allocation9 + $0x8d8] sm:$0xff]
    %v549 = vld [vmem:[#allocation9 + $0x8e0] sm:$0xff]
    %v550 = vld [vmem:[#allocation9 + $0x8e8] sm:$0xff]
    %v551 = vld [vmem:[#allocation9 + $0x8f0] sm:$0xff]
    %v552 = vld [vmem:[#allocation9 + $0x8f8] sm:$0xff]
    %v553 = vld [vmem:[#allocation9 + $0x900] sm:$0xff]
    %v554 = vld [vmem:[#allocation9 + $0x908] sm:$0xff]
    %v555 = vld [vmem:[#allocation9 + $0x910] sm:$0xff]
    %v556 = vld [vmem:[#allocation9 + $0x918] sm:$0xff]
    %v557 = vld [vmem:[#allocation9 + $0x920] sm:$0xff]
    %v558 = vld [vmem:[#allocation9 + $0x928] sm:$0xff]
    %v559 = vld [vmem:[#allocation9 + $0x930] sm:$0xff]
    %v560 = vld [vmem:[#allocation9 + $0x938] sm:$0xff]
    %v561 = vld [vmem:[#allocation9 + $0x940] sm:$0xff]
    %v562 = vld [vmem:[#allocation9 + $0x948] sm:$0xff]
    %v563 = vld [vmem:[#allocation9 + $0x950] sm:$0xff]
    %v564 = vld [vmem:[#allocation9 + $0x958] sm:$0xff]
    %v565 = vld [vmem:[#allocation9 + $0x960] sm:$0xff]
    %v566 = vld [vmem:[#allocation9 + $0x968] sm:$0xff]
    %v567 = vld [vmem:[#allocation9 + $0x970] sm:$0xff]
    %v568 = vld [vmem:[#allocation9 + $0x978] sm:$0xff]
    %v569 = vld [vmem:[#allocation9 + $0x980] sm:$0xff]
    %v570 = vld [vmem:[#allocation9 + $0x988] sm:$0xff]
    %v571 = vld [vmem:[#allocation9 + $0x990] sm:$0xff]
    %v572 = vld [vmem:[#allocation9 + $0x998] sm:$0xff]
    %v573 = vld [vmem:[#allocation9 + $0x9a0] sm:$0xff]
    %v574 = vld [vmem:[#allocation9 + $0x9a8] sm:$0xff]
    %v575 = vld [vmem:[#allocation9 + $0x9b0] sm:$0xff]
    %v576 = vld [vmem:[#allocation9 + $0x9b8] sm:$0xff]
    %v577 = vld [vmem:[#allocation9 + $0x9c0] sm:$0xff]
    %v578 = vld [vmem:[#allocation9 + $0x9c8] sm:$0xff]
    %v579 = vld [vmem:[#allocation9 + $0x9d0] sm:$0xff]
    %v580 = vld [vmem:[#allocation9 + $0x9d8] sm:$0xff]
    %v581 = vld [vmem:[#allocation9 + $0x9e0] sm:$0xff]
    %v582 = vld [vmem:[#allocation9 + $0x9e8] sm:$0xff]
    %v583 = vld [vmem:[#allocation9 + $0x9f0] sm:$0xff]
    %v584 = vld [vmem:[#allocation9 + $0x9f8] sm:$0xff]
    %v585 = vld [vmem:[#allocation9 + $0xa00] sm:$0xff]
    %v586 = vld [vmem:[#allocation9 + $0xa08] sm:$0xff]
    %v587 = vld [vmem:[#allocation9 + $0xa10] sm:$0xff]
    %v588 = vld [vmem:[#allocation9 + $0xa18] sm:$0xff]
    %v589 = vld [vmem:[#allocation9 + $0xa20] sm:$0xff]
    %v590 = vld [vmem:[#allocation9 + $0xa28] sm:$0xff]
    %v591 = vld [vmem:[#allocation9 + $0xa30] sm:$0xff]
    %v592 = vld [vmem:[#allocation9 + $0xa38] sm:$0xff]
    %v593 = vld [vmem:[#allocation9 + $0xa40] sm:$0xff]
    %v594 = vld [vmem:[#allocation9 + $0xa48] sm:$0xff]
    %v595 = vld [vmem:[#allocation9 + $0xa50] sm:$0xff]
    %v596 = vld [vmem:[#allocation9 + $0xa58] sm:$0xff]
    %v597 = vld [vmem:[#allocation9 + $0xa60] sm:$0xff]
    %v598 = vld [vmem:[#allocation9 + $0xa68] sm:$0xff]
    %v599 = vld [vmem:[#allocation9 + $0xa70] sm:$0xff]
    %v600 = vld [vmem:[#allocation9 + $0xa78] sm:$0xff]
    %v601 = vld [vmem:[#allocation9 + $0xa80] sm:$0xff]
    %v602 = vld [vmem:[#allocation9 + $0xa88] sm:$0xff]
    %v603 = vld [vmem:[#allocation9 + $0xa90] sm:$0xff]
    %v604 = vld [vmem:[#allocation9 + $0xa98] sm:$0xff]
    %v605 = vld [vmem:[#allocation9 + $0xaa0] sm:$0xff]
    %v606 = vld [vmem:[#allocation9 + $0xaa8] sm:$0xff]
    %v607 = vld [vmem:[#allocation9 + $0xab0] sm:$0xff]
    %v608 = vld [vmem:[#allocation9 + $0xab8] sm:$0xff]
    %v609 = vld [vmem:[#allocation9 + $0xac0] sm:$0xff]
    %v610 = vld [vmem:[#allocation9 + $0xac8] sm:$0xff]
    %v611 = vld [vmem:[#allocation9 + $0xad0] sm:$0xff]
    %v612 = vld [vmem:[#allocation9 + $0xad8] sm:$0xff]
    %v613 = vld [vmem:[#allocation9 + $0xae0] sm:$0xff]
    %v614 = vld [vmem:[#allocation9 + $0xae8] sm:$0xff]
    %v615 = vld [vmem:[#allocation9 + $0xaf0] sm:$0xff]
    %v616 = vld [vmem:[#allocation9 + $0xaf8] sm:$0xff]
    %v617 = vld [vmem:[#allocation9 + $0xb00] sm:$0xff]
    %v618 = vld [vmem:[#allocation9 + $0xb08] sm:$0xff]
    %v619 = vld [vmem:[#allocation9 + $0xb10] sm:$0xff]
    %v620 = vld [vmem:[#allocation9 + $0xb18] sm:$0xff]
    %v621 = vld [vmem:[#allocation9 + $0xb20] sm:$0xff]
    %v622 = vld [vmem:[#allocation9 + $0xb28] sm:$0xff]
    %v623 = vld [vmem:[#allocation9 + $0xb30] sm:$0xff]
    %v624 = vld [vmem:[#allocation9 + $0xb38] sm:$0xff]
    %v625 = vld [vmem:[#allocation9 + $0xb40] sm:$0xff]
    %v626 = vld [vmem:[#allocation9 + $0xb48] sm:$0xff]
    %v627 = vld [vmem:[#allocation9 + $0xb50] sm:$0xff]
    %v628 = vld [vmem:[#allocation9 + $0xb58] sm:$0xff]
    %v629 = vld [vmem:[#allocation9 + $0xb60] sm:$0xff]
    %v630 = vld [vmem:[#allocation9 + $0xb68] sm:$0xff]
    %v631 = vld [vmem:[#allocation9 + $0xb70] sm:$0xff]
    %v632 = vld [vmem:[#allocation9 + $0xb78] sm:$0xff]
    %v633 = vld [vmem:[#allocation9 + $0xb80] sm:$0xff]
    %v634 = vld [vmem:[#allocation9 + $0xb88] sm:$0xff]
    %v635 = vld [vmem:[#allocation9 + $0xb90] sm:$0xff]
    %v636 = vld [vmem:[#allocation9 + $0xb98] sm:$0xff]
    %v637 = vld [vmem:[#allocation9 + $0xba0] sm:$0xff]
    %v638 = vld [vmem:[#allocation9 + $0xba8] sm:$0xff]
    %v639 = vld [vmem:[#allocation9 + $0xbb0] sm:$0xff]
    %v640 = vld [vmem:[#allocation9 + $0xbb8] sm:$0xff]
    %v641 = vld [vmem:[#allocation9 + $0xbc0] sm:$0xff]
    %v642 = vld [vmem:[#allocation9 + $0xbc8] sm:$0xff]
    %v643 = vld [vmem:[#allocation9 + $0xbd0] sm:$0xff]
    %v644 = vld [vmem:[#allocation9 + $0xbd8] sm:$0xff]
    %v645 = vld [vmem:[#allocation9 + $0xbe0] sm:$0xff]
    %v646 = vld [vmem:[#allocation9 + $0xbe8] sm:$0xff]
    %v647 = vld [vmem:[#allocation9 + $0xbf0] sm:$0xff]
    %v648 = vld [vmem:[#allocation9 + $0xbf8] sm:$0xff]
    %v649 = vld [vmem:[#allocation9 + $0xc00] sm:$0xff]
    %v650 = vld [vmem:[#allocation9 + $0xc08] sm:$0xff]
    %v651 = vld [vmem:[#allocation9 + $0xc10] sm:$0xff]
    %v652 = vld [vmem:[#allocation9 + $0xc18] sm:$0xff]
    %v653 = vld [vmem:[#allocation9 + $0xc20] sm:$0xff]
    %v654 = vld [vmem:[#allocation9 + $0xc28] sm:$0xff]
    %v655 = vld [vmem:[#allocation9 + $0xc30] sm:$0xff]
    %v656 = vld [vmem:[#allocation9 + $0xc38] sm:$0xff]
    %v657 = vld [vmem:[#allocation9 + $0xc40] sm:$0xff]
    %v658 = vld [vmem:[#allocation9 + $0xc48] sm:$0xff]
    %v659 = vld [vmem:[#allocation9 + $0xc50] sm:$0xff]
    %v660 = vld [vmem:[#allocation9 + $0xc58] sm:$0xff]
    %v661 = vld [vmem:[#allocation9 + $0xc60] sm:$0xff]
    %v662 = vld [vmem:[#allocation9 + $0xc68] sm:$0xff]
    %v663 = vld [vmem:[#allocation9 + $0xc70] sm:$0xff]
    %v664 = vld [vmem:[#allocation9 + $0xc78] sm:$0xff]
    %v665 = vld [vmem:[#allocation9 + $0xc80] sm:$0xff]
    %v666 = vld [vmem:[#allocation9 + $0xc88] sm:$0xff]
    %v667 = vld [vmem:[#allocation9 + $0xc90] sm:$0xff]
    %v668 = vld [vmem:[#allocation9 + $0xc98] sm:$0xff]
    %v669 = vld [vmem:[#allocation9 + $0xca0] sm:$0xff]
    %v670 = vld [vmem:[#allocation9 + $0xca8] sm:$0xff]
    %v671 = vld [vmem:[#allocation9 + $0xcb0] sm:$0xff]
    %v672 = vld [vmem:[#allocation9 + $0xcb8] sm:$0xff]
    %v673 = vld [vmem:[#allocation9 + $0xcc0] sm:$0xff]
    %v674 = vld [vmem:[#allocation9 + $0xcc8] sm:$0xff]
    %v675 = vld [vmem:[#allocation9 + $0xcd0] sm:$0xff]
    %v676 = vld [vmem:[#allocation9 + $0xcd8] sm:$0xff]
    %v677 = vld [vmem:[#allocation9 + $0xce0] sm:$0xff]
    %v678 = vld [vmem:[#allocation9 + $0xce8] sm:$0xff]
    %v679 = vld [vmem:[#allocation9 + $0xcf0] sm:$0xff]
    %v680 = vld [vmem:[#allocation9 + $0xcf8] sm:$0xff]
    %v681 = vld [vmem:[#allocation9 + $0xd00] sm:$0xff]
    %v682 = vld [vmem:[#allocation9 + $0xd08] sm:$0xff]
    %v683 = vld [vmem:[#allocation9 + $0xd10] sm:$0xff]
    %v684 = vld [vmem:[#allocation9 + $0xd18] sm:$0xff]
    %v685 = vld [vmem:[#allocation9 + $0xd20] sm:$0xff]
    %v686 = vld [vmem:[#allocation9 + $0xd28] sm:$0xff]
    %v687 = vld [vmem:[#allocation9 + $0xd30] sm:$0xff]
    %v688 = vld [vmem:[#allocation9 + $0xd38] sm:$0xff]
    %v689 = vld [vmem:[#allocation9 + $0xd40] sm:$0xff]
    %v690 = vld [vmem:[#allocation9 + $0xd48] sm:$0xff]
    %v691 = vld [vmem:[#allocation9 + $0xd50] sm:$0xff]
    %v692 = vld [vmem:[#allocation9 + $0xd58] sm:$0xff]
    %v693 = vld [vmem:[#allocation9 + $0xd60] sm:$0xff]
    %v694 = vld [vmem:[#allocation9 + $0xd68] sm:$0xff]
    %v695 = vld [vmem:[#allocation9 + $0xd70] sm:$0xff]
    %v696 = vld [vmem:[#allocation9 + $0xd78] sm:$0xff]
    %v697 = vld [vmem:[#allocation9 + $0xd80] sm:$0xff]
    %v698 = vld [vmem:[#allocation9 + $0xd88] sm:$0xff]
    %v699 = vld [vmem:[#allocation9 + $0xd90] sm:$0xff]
    %v700 = vld [vmem:[#allocation9 + $0xd98] sm:$0xff]
    %v701 = vld [vmem:[#allocation9 + $0xda0] sm:$0xff]
    %v702 = vld [vmem:[#allocation9 + $0xda8] sm:$0xff]
    %v703 = vld [vmem:[#allocation9 + $0xdb0] sm:$0xff]
    %v704 = vld [vmem:[#allocation9 + $0xdb8] sm:$0xff]
    %v705 = vld [vmem:[#allocation9 + $0xdc0] sm:$0xff]
    %v706 = vld [vmem:[#allocation9 + $0xdc8] sm:$0xff]
    %v707 = vld [vmem:[#allocation9 + $0xdd0] sm:$0xff]
    %v708 = vld [vmem:[#allocation9 + $0xdd8] sm:$0xff]
    %v709 = vld [vmem:[#allocation9 + $0xde0] sm:$0xff]
    %v710 = vld [vmem:[#allocation9 + $0xde8] sm:$0xff]
    %v711 = vld [vmem:[#allocation9 + $0xdf0] sm:$0xff]
    %v712 = vld [vmem:[#allocation9 + $0xdf8] sm:$0xff]
    %v713 = vld [vmem:[#allocation9 + $0xe00] sm:$0xff]
    %v714 = vld [vmem:[#allocation9 + $0xe08] sm:$0xff]
    %v715 = vld [vmem:[#allocation9 + $0xe10] sm:$0xff]
    %v716 = vld [vmem:[#allocation9 + $0xe18] sm:$0xff]
    %v717 = vld [vmem:[#allocation9 + $0xe20] sm:$0xff]
    %v718 = vld [vmem:[#allocation9 + $0xe28] sm:$0xff]
    %v719 = vld [vmem:[#allocation9 + $0xe30] sm:$0xff]
    %v720 = vld [vmem:[#allocation9 + $0xe38] sm:$0xff]
    %v721 = vld [vmem:[#allocation9 + $0xe40] sm:$0xff]
    %v722 = vld [vmem:[#allocation9 + $0xe48] sm:$0xff]
    %v723 = vld [vmem:[#allocation9 + $0xe50] sm:$0xff]
    %v724 = vld [vmem:[#allocation9 + $0xe58] sm:$0xff]
    %v725 = vld [vmem:[#allocation9 + $0xe60] sm:$0xff]
    %v726 = vld [vmem:[#allocation9 + $0xe68] sm:$0xff]
    %v727 = vld [vmem:[#allocation9 + $0xe70] sm:$0xff]
    %v728 = vld [vmem:[#allocation9 + $0xe78] sm:$0xff]
    %v729 = vld [vmem:[#allocation9 + $0xe80] sm:$0xff]
    %v730 = vld [vmem:[#allocation9 + $0xe88] sm:$0xff]
    %v731 = vld [vmem:[#allocation9 + $0xe90] sm:$0xff]
    %v732 = vld [vmem:[#allocation9 + $0xe98] sm:$0xff]
    %v733 = vld [vmem:[#allocation9 + $0xea0] sm:$0xff]
    %v734 = vld [vmem:[#allocation9 + $0xea8] sm:$0xff]
    %v735 = vld [vmem:[#allocation9 + $0xeb0] sm:$0xff]
    %v736 = vld [vmem:[#allocation9 + $0xeb8] sm:$0xff]
    %v737 = vld [vmem:[#allocation9 + $0xec0] sm:$0xff]
    %v738 = vld [vmem:[#allocation9 + $0xec8] sm:$0xff]
    %v739 = vld [vmem:[#allocation9 + $0xed0] sm:$0xff]
    %v740 = vld [vmem:[#allocation9 + $0xed8] sm:$0xff]
    %v741 = vld [vmem:[#allocation9 + $0xee0] sm:$0xff]
    %v742 = vld [vmem:[#allocation9 + $0xee8] sm:$0xff]
    %v743 = vld [vmem:[#allocation9 + $0xef0] sm:$0xff]
    %v744 = vld [vmem:[#allocation9 + $0xef8] sm:$0xff]
    %v745 = vld [vmem:[#allocation9 + $0xf00] sm:$0xff]
    %v746 = vld [vmem:[#allocation9 + $0xf08] sm:$0xff]
    %v747 = vld [vmem:[#allocation9 + $0xf10] sm:$0xff]
    %v748 = vld [vmem:[#allocation9 + $0xf18] sm:$0xff]
    %v749 = vld [vmem:[#allocation9 + $0xf20] sm:$0xff]
    %v750 = vld [vmem:[#allocation9 + $0xf28] sm:$0xff]
    %v751 = vld [vmem:[#allocation9 + $0xf30] sm:$0xff]
    %v752 = vld [vmem:[#allocation9 + $0xf38] sm:$0xff]
    %v753 = vld [vmem:[#allocation9 + $0xf40] sm:$0xff]
    %v754 = vld [vmem:[#allocation9 + $0xf48] sm:$0xff]
    %v755 = vld [vmem:[#allocation9 + $0xf50] sm:$0xff]
    %v756 = vld [vmem:[#allocation9 + $0xf58] sm:$0xff]
    %v757 = vld [vmem:[#allocation9 + $0xf60] sm:$0xff]
    %v758 = vld [vmem:[#allocation9 + $0xf68] sm:$0xff]
    %v759 = vld [vmem:[#allocation9 + $0xf70] sm:$0xff]
    %v760 = vld [vmem:[#allocation9 + $0xf78] sm:$0xff]
    %v761 = vld [vmem:[#allocation9 + $0xf80] sm:$0xff]
    %v762 = vld [vmem:[#allocation9 + $0xf88] sm:$0xff]
    %v763 = vld [vmem:[#allocation9 + $0xf90] sm:$0xff]
    %v764 = vld [vmem:[#allocation9 + $0xf98] sm:$0xff]
    %v765 = vld [vmem:[#allocation9 + $0xfa0] sm:$0xff]
    %v766 = vld [vmem:[#allocation9 + $0xfa8] sm:$0xff]
    %v767 = vld [vmem:[#allocation9 + $0xfb0] sm:$0xff]
    %v768 = vld [vmem:[#allocation9 + $0xfb8] sm:$0xff]
    %v769 = vld [vmem:[#allocation9 + $0xfc0] sm:$0xff]
    %v770 = vld [vmem:[#allocation9 + $0xfc8] sm:$0xff]
    %v771 = vld [vmem:[#allocation9 + $0xfd0] sm:$0xff]
    %v772 = vld [vmem:[#allocation9 + $0xfd8] sm:$0xff]
    %v773 = vld [vmem:[#allocation9 + $0xfe0] sm:$0xff]
    %v774 = vld [vmem:[#allocation9 + $0xfe8] sm:$0xff]
    %v775 = vld [vmem:[#allocation9 + $0xff0] sm:$0xff]
    %v776 = vld [vmem:[#allocation9 + $0xff8] sm:$0xff]
    %v777 = vld [vmem:[#allocation11] sm:$0xf]
    %v779 = vlaneseq
    %v780 = vshrl.u32 %v779, 7
    %v781 = vsub.s32 0, %v780
    %v782 = vrot.slane %v777, %v781
    %v783 = vlaneseq
    %v784 = vshrl.u32 %v783, 7
    %v785 = vsub.s32 1, %v784
    %v786 = vrot.slane %v777, %v785
    %v787 = vlaneseq
    %v788 = vshrl.u32 %v787, 7
    %v789 = vsub.s32 2, %v788
    %v790 = vrot.slane %v777, %v789
    %v791 = vlaneseq
    %v792 = vshrl.u32 %v791, 7
    %v793 = vsub.s32 3, %v792
    %v794 = vrot.slane %v777, %v793
    %799 = vmatprep.subr.mxu0 %v266
    %800 = vmatpush1.msra.mxu0 %v265
    %801 = vmatprep.subr.mxu0 %v270
    %802 = vmatpush1.msra.mxu0 %v269
    %803 = vmatprep.subr.mxu0 %v274
    %804 = vmatpush1.msra.mxu0 %v273
    %805 = vmatprep.subr.mxu0 %v278
    %806 = vmatpush1.msra.mxu0 %v277
    %807 = vmatprep.subr.mxu0 %v282
    %808 = vmatpush1.msra.mxu0 %v281
    %809 = vmatprep.subr.mxu0 %v286
    %810 = vmatpush1.msra.mxu0 %v285
    %811 = vmatprep.subr.mxu0 %v290
    %812 = vmatpush1.msra.mxu0 %v289
    %813 = vmatprep.subr.mxu0 %v294
    %814 = vmatpush1.msra.mxu0 %v293
    %815 = vmatprep.subr.mxu0 %v298
    %816 = vmatpush1.msra.mxu0 %v297
    %817 = vmatprep.subr.mxu0 %v302
    %818 = vmatpush1.msra.mxu0 %v301
    %819 = vmatprep.subr.mxu0 %v306
    %820 = vmatpush1.msra.mxu0 %v305
    %821 = vmatprep.subr.mxu0 %v310
    %822 = vmatpush1.msra.mxu0 %v309
    %823 = vmatprep.subr.mxu0 %v314
    %824 = vmatpush1.msra.mxu0 %v313
    %825 = vmatprep.subr.mxu0 %v318
    %826 = vmatpush1.msra.mxu0 %v317
    %827 = vmatprep.subr.mxu0 %v322
    %828 = vmatpush1.msra.mxu0 %v321
    %829 = vmatprep.subr.mxu0 %v326
    %830 = vmatpush1.msra.mxu0 %v325
    %831 = vmatprep.subr.mxu0 %v330
    %832 = vmatpush1.msra.mxu0 %v329
    %833 = vmatprep.subr.mxu0 %v334
    %834 = vmatpush1.msra.mxu0 %v333
    %835 = vmatprep.subr.mxu0 %v338
    %836 = vmatpush1.msra.mxu0 %v337
    %837 = vmatprep.subr.mxu0 %v342
    %838 = vmatpush1.msra.mxu0 %v341
    %839 = vmatprep.subr.mxu0 %v346
    %840 = vmatpush1.msra.mxu0 %v345
    %841 = vmatprep.subr.mxu0 %v350
    %842 = vmatpush1.msra.mxu0 %v349
    %843 = vmatprep.subr.mxu0 %v354
    %844 = vmatpush1.msra.mxu0 %v353
    %845 = vmatprep.subr.mxu0 %v358
    %846 = vmatpush1.msra.mxu0 %v357
    %847 = vmatprep.subr.mxu0 %v362
    %848 = vmatpush1.msra.mxu0 %v361
    %849 = vmatprep.subr.mxu0 %v366
    %850 = vmatpush1.msra.mxu0 %v365
    %851 = vmatprep.subr.mxu0 %v370
    %852 = vmatpush1.msra.mxu0 %v369
    %853 = vmatprep.subr.mxu0 %v374
    %854 = vmatpush1.msra.mxu0 %v373
    %855 = vmatprep.subr.mxu0 %v378
    %856 = vmatpush1.msra.mxu0 %v377
    %857 = vmatprep.subr.mxu0 %v382
    %858 = vmatpush1.msra.mxu0 %v381
    %859 = vmatprep.subr.mxu0 %v386
    %860 = vmatpush1.msra.mxu0 %v385
    %861 = vmatprep.subr.mxu0 %v390
    %862 = vmatpush1.msra.mxu0 %v389
    %863 = vmatprep.mubr.f32.mxu0 %v138
    %864 = vmatmul.mubr.f32.gmra.mrb[0].mxu0 %v137
    %v865 = vpop.f32.mrb[0].mxu0
    %v866 = vadd.f32 %v782, %v865
    %v867 = vpop.f32.mrb[0].mxu0
    %v868 = vadd.f32 %v786, %v867
    %869 = vmatprep.mubr.f32.mxu0 %v146
    %870 = vmatmul.mubr.f32.gmra.mrb[0].mxu0 %v145
    %v871 = vpop.f32.mrb[0].mxu0
    %v872 = vadd.f32 %v782, %v871
    %v873 = vpop.f32.mrb[0].mxu0
    %v874 = vadd.f32 %v786, %v873
    %875 = vmatprep.mubr.f32.mxu0 %v154
    %876 = vmatmul.mubr.f32.gmra.mrb[0].mxu0 %v153
    %v877 = vpop.f32.mrb[0].mxu0
    %v878 = vadd.f32 %v782, %v877
    %v879 = vpop.f32.mrb[0].mxu0
    %v880 = vadd.f32 %v786, %v879
    %881 = vmatprep.mubr.f32.mxu0 %v162
    %882 = vmatmul.mubr.f32.gmra.mrb[0].mxu0 %v161
    %v883 = vpop.f32.mrb[0].mxu0
    %v884 = vadd.f32 %v782, %v883
    %v885 = vpop.f32.mrb[0].mxu0
    %v886 = vadd.f32 %v786, %v885
    %887 = vmatprep.mubr.f32.mxu0 %v170
    %888 = vmatmul.mubr.f32.gmra.mrb[0].mxu0 %v169
    %v889 = vpop.f32.mrb[0].mxu0
    %v890 = vadd.f32 %v782, %v889
    %v891 = vpop.f32.mrb[0].mxu0
    %v892 = vadd.f32 %v786, %v891
    %893 = vmatprep.mubr.f32.mxu0 %v178
    %894 = vmatmul.mubr.f32.gmra.mrb[0].mxu0 %v177
    %v895 = vpop.f32.mrb[0].mxu0
    %v896 = vadd.f32 %v782, %v895
    %v897 = vpop.f32.mrb[0].mxu0
    %v898 = vadd.f32 %v786, %v897
    %899 = vmatprep.mubr.f32.mxu0 %v186
    %900 = vmatmul.mubr.f32.gmra.mrb[0].mxu0 %v185
    %v901 = vpop.f32.mrb[0].mxu0
    %v902 = vadd.f32 %v782, %v901
    %v903 = vpop.f32.mrb[0].mxu0
    %v904 = vadd.f32 %v786, %v903
    %905 = vmatprep.mubr.f32.mxu0 %v194
    %906 = vmatmul.mubr.f32.gmra.mrb[0].mxu0 %v193
    %v907 = vpop.f32.mrb[0].mxu0
    %v908 = vadd.f32 %v782, %v907
    %v909 = vpop.f32.mrb[0].mxu0
    %v910 = vadd.f32 %v786, %v909
    %911 = vmatprep.mubr.f32.mxu0 %v202
    %912 = vmatmul.mubr.f32.gmra.mrb[0].mxu0 %v201
    %v913 = vpop.f32.mrb[0].mxu0
    %v914 = vadd.f32 %v782, %v913
    %v915 = vpop.f32.mrb[0].mxu0
    %v916 = vadd.f32 %v786, %v915
    %917 = vmatprep.mubr.f32.mxu0 %v210
    %918 = vmatmul.mubr.f32.gmra.mrb[0].mxu0 %v209
    %v919 = vpop.f32.mrb[0].mxu0
    %v920 = vadd.f32 %v782, %v919
    %v921 = vpop.f32.mrb[0].mxu0
    %v922 = vadd.f32 %v786, %v921
    %923 = vmatprep.mubr.f32.mxu0 %v218
    %924 = vmatmul.mubr.f32.gmra.mrb[0].mxu0 %v217
    %v925 = vpop.f32.mrb[0].mxu0
    %v926 = vadd.f32 %v782, %v925
    %v927 = vpop.f32.mrb[0].mxu0
    %v928 = vadd.f32 %v786, %v927
    %929 = vmatprep.mubr.f32.mxu0 %v226
    %930 = vmatmul.mubr.f32.gmra.mrb[0].mxu0 %v225
    %v931 = vpop.f32.mrb[0].mxu0
    %v932 = vadd.f32 %v782, %v931
    %v933 = vpop.f32.mrb[0].mxu0
    %v934 = vadd.f32 %v786, %v933
    %935 = vmatprep.mubr.f32.mxu0 %v234
    %936 = vmatmul.mubr.f32.gmra.mrb[0].mxu0 %v233
    %v937 = vpop.f32.mrb[0].mxu0
    %v938 = vadd.f32 %v782, %v937
    %v939 = vpop.f32.mrb[0].mxu0
    %v940 = vadd.f32 %v786, %v939
    %941 = vmatprep.mubr.f32.mxu0 %v242
    %942 = vmatmul.mubr.f32.gmra.mrb[0].mxu0 %v241
    %v943 = vpop.f32.mrb[0].mxu0
    %v944 = vadd.f32 %v782, %v943
    %v945 = vpop.f32.mrb[0].mxu0
    %v946 = vadd.f32 %v786, %v945
    %947 = vmatprep.mubr.f32.mxu0 %v250
    %948 = vmatmul.mubr.f32.gmra.mrb[0].mxu0 %v249
    %v949 = vpop.f32.mrb[0].mxu0
    %v950 = vadd.f32 %v782, %v949
    %v951 = vpop.f32.mrb[0].mxu0
    %v952 = vadd.f32 %v786, %v951
    %953 = vmatprep.mubr.f32.mxu0 %v258
    %954 = vmatmul.mubr.f32.gmra.mrb[0].mxu0 %v257
    %v955 = vpop.f32.mrb[0].mxu0
    %v956 = vadd.f32 %v782, %v955
    %v957 = vpop.f32.mrb[0].mxu0
    %v958 = vadd.f32 %v786, %v957
    %959 = vdwg.mxu0
    %960 = vmatprep.subr.mxu0 %v394
    %961 = vmatpush1.msra.mxu0 %v393
    %962 = vmatprep.subr.mxu0 %v398
    %963 = vmatpush1.msra.mxu0 %v397
    %964 = vmatprep.subr.mxu0 %v402
    %965 = vmatpush1.msra.mxu0 %v401
    %966 = vmatprep.subr.mxu0 %v406
    %967 = vmatpush1.msra.mxu0 %v405
    %968 = vmatprep.subr.mxu0 %v410
    %969 = vmatpush1.msra.mxu0 %v409
    %970 = vmatprep.subr.mxu0 %v414
    %971 = vmatpush1.msra.mxu0 %v413
    %972 = vmatprep.subr.mxu0 %v418
    %973 = vmatpush1.msra.mxu0 %v417
    %974 = vmatprep.subr.mxu0 %v422
    %975 = vmatpush1.msra.mxu0 %v421
    %976 = vmatprep.subr.mxu0 %v426
    %977 = vmatpush1.msra.mxu0 %v425
    %978 = vmatprep.subr.mxu0 %v430
    %979 = vmatpush1.msra.mxu0 %v429
    %980 = vmatprep.subr.mxu0 %v434
    %981 = vmatpush1.msra.mxu0 %v433
    %982 = vmatprep.subr.mxu0 %v438
    %983 = vmatpush1.msra.mxu0 %v437
    %984 = vmatprep.subr.mxu0 %v442
    %985 = vmatpush1.msra.mxu0 %v441
    %986 = vmatprep.subr.mxu0 %v446
    %987 = vmatpush1.msra.mxu0 %v445
    %988 = vmatprep.subr.mxu0 %v450
    %989 = vmatpush1.msra.mxu0 %v449
    %990 = vmatprep.subr.mxu0 %v454
    %991 = vmatpush1.msra.mxu0 %v453
    %992 = vmatprep.subr.mxu0 %v458
    %993 = vmatpush1.msra.mxu0 %v457
    %994 = vmatprep.subr.mxu0 %v462
    %995 = vmatpush1.msra.mxu0 %v461
    %996 = vmatprep.subr.mxu0 %v466
    %997 = vmatpush1.msra.mxu0 %v465
    %998 = vmatprep.subr.mxu0 %v470
    %999 = vmatpush1.msra.mxu0 %v469
    %1000 = vmatprep.subr.mxu0 %v474
    %1001 = vmatpush1.msra.mxu0 %v473
    %1002 = vmatprep.subr.mxu0 %v478
    %1003 = vmatpush1.msra.mxu0 %v477
    %1004 = vmatprep.subr.mxu0 %v482
    %1005 = vmatpush1.msra.mxu0 %v481
    %1006 = vmatprep.subr.mxu0 %v486
    %1007 = vmatpush1.msra.mxu0 %v485
    %1008 = vmatprep.subr.mxu0 %v490
    %1009 = vmatpush1.msra.mxu0 %v489
    %1010 = vmatprep.subr.mxu0 %v494
    %1011 = vmatpush1.msra.mxu0 %v493
    %1012 = vmatprep.subr.mxu0 %v498
    %1013 = vmatpush1.msra.mxu0 %v497
    %1014 = vmatprep.subr.mxu0 %v502
    %1015 = vmatpush1.msra.mxu0 %v501
    %1016 = vmatprep.subr.mxu0 %v506
    %1017 = vmatpush1.msra.mxu0 %v505
    %1018 = vmatprep.subr.mxu0 %v510
    %1019 = vmatpush1.msra.mxu0 %v509
    %1020 = vmatprep.subr.mxu0 %v514
    %1021 = vmatpush1.msra.mxu0 %v513
    %1022 = vmatprep.subr.mxu0 %v518
    %1023 = vmatpush1.msra.mxu0 %v517
    %1024 = vmatprep.mubr.f32.mxu0 %v140
    %1025 = vmatmul.mubr.f32.gmra.mrb[0].mxu0 %v139
    %v1026 = vpop.f32.mrb[0].mxu0
    %v1027 = vadd.f32 %v866, %v1026
    %v1028 = vpop.f32.mrb[0].mxu0
    %v1029 = vadd.f32 %v868, %v1028
    %1030 = vmatprep.mubr.f32.mxu0 %v148
    %1031 = vmatmul.mubr.f32.gmra.mrb[0].mxu0 %v147
    %v1032 = vpop.f32.mrb[0].mxu0
    %v1033 = vadd.f32 %v872, %v1032
    %v1034 = vpop.f32.mrb[0].mxu0
    %v1035 = vadd.f32 %v874, %v1034
    %1036 = vmatprep.mubr.f32.mxu0 %v156
    %1037 = vmatmul.mubr.f32.gmra.mrb[0].mxu0 %v155
    %v1038 = vpop.f32.mrb[0].mxu0
    %v1039 = vadd.f32 %v878, %v1038
    %v1040 = vpop.f32.mrb[0].mxu0
    %v1041 = vadd.f32 %v880, %v1040
    %1042 = vmatprep.mubr.f32.mxu0 %v164
    %1043 = vmatmul.mubr.f32.gmra.mrb[0].mxu0 %v163
    %v1044 = vpop.f32.mrb[0].mxu0
    %v1045 = vadd.f32 %v884, %v1044
    %v1046 = vpop.f32.mrb[0].mxu0
    %v1047 = vadd.f32 %v886, %v1046
    %1048 = vmatprep.mubr.f32.mxu0 %v172
    %1049 = vmatmul.mubr.f32.gmra.mrb[0].mxu0 %v171
    %v1050 = vpop.f32.mrb[0].mxu0
    %v1051 = vadd.f32 %v890, %v1050
    %v1052 = vpop.f32.mrb[0].mxu0
    %v1053 = vadd.f32 %v892, %v1052
    %1054 = vmatprep.mubr.f32.mxu0 %v180
    %1055 = vmatmul.mubr.f32.gmra.mrb[0].mxu0 %v179
    %v1056 = vpop.f32.mrb[0].mxu0
    %v1057 = vadd.f32 %v896, %v1056
    %v1058 = vpop.f32.mrb[0].mxu0
    %v1059 = vadd.f32 %v898, %v1058
    %1060 = vmatprep.mubr.f32.mxu0 %v188
    %1061 = vmatmul.mubr.f32.gmra.mrb[0].mxu0 %v187
    %v1062 = vpop.f32.mrb[0].mxu0
    %v1063 = vadd.f32 %v902, %v1062
    %v1064 = vpop.f32.mrb[0].mxu0
    %v1065 = vadd.f32 %v904, %v1064
    %1066 = vmatprep.mubr.f32.mxu0 %v196
    %1067 = vmatmul.mubr.f32.gmra.mrb[0].mxu0 %v195
    %v1068 = vpop.f32.mrb[0].mxu0
    %v1069 = vadd.f32 %v908, %v1068
    %v1070 = vpop.f32.mrb[0].mxu0
    %v1071 = vadd.f32 %v910, %v1070
    %1072 = vmatprep.mubr.f32.mxu0 %v204
    %1073 = vmatmul.mubr.f32.gmra.mrb[0].mxu0 %v203
    %v1074 = vpop.f32.mrb[0].mxu0
    %v1075 = vadd.f32 %v914, %v1074
    %v1076 = vpop.f32.mrb[0].mxu0
    %v1077 = vadd.f32 %v916, %v1076
    %1078 = vmatprep.mubr.f32.mxu0 %v212
    %1079 = vmatmul.mubr.f32.gmra.mrb[0].mxu0 %v211
    %v1080 = vpop.f32.mrb[0].mxu0
    %v1081 = vadd.f32 %v920, %v1080
    %v1082 = vpop.f32.mrb[0].mxu0
    %v1083 = vadd.f32 %v922, %v1082
    %1084 = vmatprep.mubr.f32.mxu0 %v220
    %1085 = vmatmul.mubr.f32.gmra.mrb[0].mxu0 %v219
    %v1086 = vpop.f32.mrb[0].mxu0
    %v1087 = vadd.f32 %v926, %v1086
    %v1088 = vpop.f32.mrb[0].mxu0
    %v1089 = vadd.f32 %v928, %v1088
    %1090 = vmatprep.mubr.f32.mxu0 %v228
    %1091 = vmatmul.mubr.f32.gmra.mrb[0].mxu0 %v227
    %v1092 = vpop.f32.mrb[0].mxu0
    %v1093 = vadd.f32 %v932, %v1092
    %v1094 = vpop.f32.mrb[0].mxu0
    %v1095 = vadd.f32 %v934, %v1094
    %1096 = vmatprep.mubr.f32.mxu0 %v236
    %1097 = vmatmul.mubr.f32.gmra.mrb[0].mxu0 %v235
    %v1098 = vpop.f32.mrb[0].mxu0
    %v1099 = vadd.f32 %v938, %v1098
    %v1100 = vpop.f32.mrb[0].mxu0
    %v1101 = vadd.f32 %v940, %v1100
    %1102 = vmatprep.mubr.f32.mxu0 %v244
    %1103 = vmatmul.mubr.f32.gmra.mrb[0].mxu0 %v243
    %v1104 = vpop.f32.mrb[0].mxu0
    %v1105 = vadd.f32 %v944, %v1104
    %v1106 = vpop.f32.mrb[0].mxu0
    %v1107 = vadd.f32 %v946, %v1106
    %1108 = vmatprep.mubr.f32.mxu0 %v252
    %1109 = vmatmul.mubr.f32.gmra.mrb[0].mxu0 %v251
    %v1110 = vpop.f32.mrb[0].mxu0
    %v1111 = vadd.f32 %v950, %v1110
    %v1112 = vpop.f32.mrb[0].mxu0
    %v1113 = vadd.f32 %v952, %v1112
    %1114 = vmatprep.mubr.f32.mxu0 %v260
    %1115 = vmatmul.mubr.f32.gmra.mrb[0].mxu0 %v259
    %v1116 = vpop.f32.mrb[0].mxu0
    %v1117 = vadd.f32 %v956, %v1116
    %v1118 = vpop.f32.mrb[0].mxu0
    %v1119 = vadd.f32 %v958, %v1118
    %1120 = vdwg.mxu0
    %1121 = vmatprep.subr.mxu0 %v522
    %1122 = vmatpush1.msra.mxu0 %v521
    %1123 = vmatprep.subr.mxu0 %v526
    %1124 = vmatpush1.msra.mxu0 %v525
    %1125 = vmatprep.subr.mxu0 %v530
    %1126 = vmatpush1.msra.mxu0 %v529
    %1127 = vmatprep.subr.mxu0 %v534
    %1128 = vmatpush1.msra.mxu0 %v533
    %1129 = vmatprep.subr.mxu0 %v538
    %1130 = vmatpush1.msra.mxu0 %v537
    %1131 = vmatprep.subr.mxu0 %v542
    %1132 = vmatpush1.msra.mxu0 %v541
    %1133 = vmatprep.subr.mxu0 %v546
    %1134 = vmatpush1.msra.mxu0 %v545
    %1135 = vmatprep.subr.mxu0 %v550
    %1136 = vmatpush1.msra.mxu0 %v549
    %1137 = vmatprep.subr.mxu0 %v554
    %1138 = vmatpush1.msra.mxu0 %v553
    %1139 = vmatprep.subr.mxu0 %v558
    %1140 = vmatpush1.msra.mxu0 %v557
    %1141 = vmatprep.subr.mxu0 %v562
    %1142 = vmatpush1.msra.mxu0 %v561
    %1143 = vmatprep.subr.mxu0 %v566
    %1144 = vmatpush1.msra.mxu0 %v565
    %1145 = vmatprep.subr.mxu0 %v570
    %1146 = vmatpush1.msra.mxu0 %v569
    %1147 = vmatprep.subr.mxu0 %v574
    %1148 = vmatpush1.msra.mxu0 %v573
    %1149 = vmatprep.subr.mxu0 %v578
    %1150 = vmatpush1.msra.mxu0 %v577
    %1151 = vmatprep.subr.mxu0 %v582
    %1152 = vmatpush1.msra.mxu0 %v581
    %1153 = vmatprep.subr.mxu0 %v586
    %1154 = vmatpush1.msra.mxu0 %v585
    %1155 = vmatprep.subr.mxu0 %v590
    %1156 = vmatpush1.msra.mxu0 %v589
    %1157 = vmatprep.subr.mxu0 %v594
    %1158 = vmatpush1.msra.mxu0 %v593
    %1159 = vmatprep.subr.mxu0 %v598
    %1160 = vmatpush1.msra.mxu0 %v597
    %1161 = vmatprep.subr.mxu0 %v602
    %1162 = vmatpush1.msra.mxu0 %v601
    %1163 = vmatprep.subr.mxu0 %v606
    %1164 = vmatpush1.msra.mxu0 %v605
    %1165 = vmatprep.subr.mxu0 %v610
    %1166 = vmatpush1.msra.mxu0 %v609
    %1167 = vmatprep.subr.mxu0 %v614
    %1168 = vmatpush1.msra.mxu0 %v613
    %1169 = vmatprep.subr.mxu0 %v618
    %1170 = vmatpush1.msra.mxu0 %v617
    %1171 = vmatprep.subr.mxu0 %v622
    %1172 = vmatpush1.msra.mxu0 %v621
    %1173 = vmatprep.subr.mxu0 %v626
    %1174 = vmatpush1.msra.mxu0 %v625
    %1175 = vmatprep.subr.mxu0 %v630
    %1176 = vmatpush1.msra.mxu0 %v629
    %1177 = vmatprep.subr.mxu0 %v634
    %1178 = vmatpush1.msra.mxu0 %v633
    %1179 = vmatprep.subr.mxu0 %v638
    %1180 = vmatpush1.msra.mxu0 %v637
    %1181 = vmatprep.subr.mxu0 %v642
    %1182 = vmatpush1.msra.mxu0 %v641
    %1183 = vmatprep.subr.mxu0 %v646
    %1184 = vmatpush1.msra.mxu0 %v645
    %1185 = vmatprep.mubr.f32.mxu0 %v142
    %1186 = vmatmul.mubr.f32.gmra.mrb[0].mxu0 %v141
    %v1187 = vpop.f32.mrb[0].mxu0
    %v1188 = vadd.f32 %v1027, %v1187
    %v1189 = vpop.f32.mrb[0].mxu0
    %v1190 = vadd.f32 %v1029, %v1189
    %1191 = vmatprep.mubr.f32.mxu0 %v150
    %1192 = vmatmul.mubr.f32.gmra.mrb[0].mxu0 %v149
    %v1193 = vpop.f32.mrb[0].mxu0
    %v1194 = vadd.f32 %v1033, %v1193
    %v1195 = vpop.f32.mrb[0].mxu0
    %v1196 = vadd.f32 %v1035, %v1195
    %1197 = vmatprep.mubr.f32.mxu0 %v158
    %1198 = vmatmul.mubr.f32.gmra.mrb[0].mxu0 %v157
    %v1199 = vpop.f32.mrb[0].mxu0
    %v1200 = vadd.f32 %v1039, %v1199
    %v1201 = vpop.f32.mrb[0].mxu0
    %v1202 = vadd.f32 %v1041, %v1201
    %1203 = vmatprep.mubr.f32.mxu0 %v166
    %1204 = vmatmul.mubr.f32.gmra.mrb[0].mxu0 %v165
    %v1205 = vpop.f32.mrb[0].mxu0
    %v1206 = vadd.f32 %v1045, %v1205
    %v1207 = vpop.f32.mrb[0].mxu0
    %v1208 = vadd.f32 %v1047, %v1207
    %1209 = vmatprep.mubr.f32.mxu0 %v174
    %1210 = vmatmul.mubr.f32.gmra.mrb[0].mxu0 %v173
    %v1211 = vpop.f32.mrb[0].mxu0
    %v1212 = vadd.f32 %v1051, %v1211
    %v1213 = vpop.f32.mrb[0].mxu0
    %v1214 = vadd.f32 %v1053, %v1213
    %1215 = vmatprep.mubr.f32.mxu0 %v182
    %1216 = vmatmul.mubr.f32.gmra.mrb[0].mxu0 %v181
    %v1217 = vpop.f32.mrb[0].mxu0
    %v1218 = vadd.f32 %v1057, %v1217
    %v1219 = vpop.f32.mrb[0].mxu0
    %v1220 = vadd.f32 %v1059, %v1219
    %1221 = vmatprep.mubr.f32.mxu0 %v190
    %1222 = vmatmul.mubr.f32.gmra.mrb[0].mxu0 %v189
    %v1223 = vpop.f32.mrb[0].mxu0
    %v1224 = vadd.f32 %v1063, %v1223
    %v1225 = vpop.f32.mrb[0].mxu0
    %v1226 = vadd.f32 %v1065, %v1225
    %1227 = vmatprep.mubr.f32.mxu0 %v198
    %1228 = vmatmul.mubr.f32.gmra.mrb[0].mxu0 %v197
    %v1229 = vpop.f32.mrb[0].mxu0
    %v1230 = vadd.f32 %v1069, %v1229
    %v1231 = vpop.f32.mrb[0].mxu0
    %v1232 = vadd.f32 %v1071, %v1231
    %1233 = vmatprep.mubr.f32.mxu0 %v206
    %1234 = vmatmul.mubr.f32.gmra.mrb[0].mxu0 %v205
    %v1235 = vpop.f32.mrb[0].mxu0
    %v1236 = vadd.f32 %v1075, %v1235
    %v1237 = vpop.f32.mrb[0].mxu0
    %v1238 = vadd.f32 %v1077, %v1237
    %1239 = vmatprep.mubr.f32.mxu0 %v214
    %1240 = vmatmul.mubr.f32.gmra.mrb[0].mxu0 %v213
    %v1241 = vpop.f32.mrb[0].mxu0
    %v1242 = vadd.f32 %v1081, %v1241
    %v1243 = vpop.f32.mrb[0].mxu0
    %v1244 = vadd.f32 %v1083, %v1243
    %1245 = vmatprep.mubr.f32.mxu0 %v222
    %1246 = vmatmul.mubr.f32.gmra.mrb[0].mxu0 %v221
    %v1247 = vpop.f32.mrb[0].mxu0
    %v1248 = vadd.f32 %v1087, %v1247
    %v1249 = vpop.f32.mrb[0].mxu0
    %v1250 = vadd.f32 %v1089, %v1249
    %1251 = vmatprep.mubr.f32.mxu0 %v230
    %1252 = vmatmul.mubr.f32.gmra.mrb[0].mxu0 %v229
    %v1253 = vpop.f32.mrb[0].mxu0
    %v1254 = vadd.f32 %v1093, %v1253
    %v1255 = vpop.f32.mrb[0].mxu0
    %v1256 = vadd.f32 %v1095, %v1255
    %1257 = vmatprep.mubr.f32.mxu0 %v238
    %1258 = vmatmul.mubr.f32.gmra.mrb[0].mxu0 %v237
    %v1259 = vpop.f32.mrb[0].mxu0
    %v1260 = vadd.f32 %v1099, %v1259
    %v1261 = vpop.f32.mrb[0].mxu0
    %v1262 = vadd.f32 %v1101, %v1261
    %1263 = vmatprep.mubr.f32.mxu0 %v246
    %1264 = vmatmul.mubr.f32.gmra.mrb[0].mxu0 %v245
    %v1265 = vpop.f32.mrb[0].mxu0
    %v1266 = vadd.f32 %v1105, %v1265
    %v1267 = vpop.f32.mrb[0].mxu0
    %v1268 = vadd.f32 %v1107, %v1267
    %1269 = vmatprep.mubr.f32.mxu0 %v254
    %1270 = vmatmul.mubr.f32.gmra.mrb[0].mxu0 %v253
    %v1271 = vpop.f32.mrb[0].mxu0
    %v1272 = vadd.f32 %v1111, %v1271
    %v1273 = vpop.f32.mrb[0].mxu0
    %v1274 = vadd.f32 %v1113, %v1273
    %1275 = vmatprep.mubr.f32.mxu0 %v262
    %1276 = vmatmul.mubr.f32.gmra.mrb[0].mxu0 %v261
    %v1277 = vpop.f32.mrb[0].mxu0
    %v1278 = vadd.f32 %v1117, %v1277
    %v1279 = vpop.f32.mrb[0].mxu0
    %v1280 = vadd.f32 %v1119, %v1279
    %1281 = vdwg.mxu0
    %1282 = vmatprep.subr.mxu0 %v650
    %1283 = vmatpush1.msra.mxu0 %v649
    %1284 = vmatprep.subr.mxu0 %v654
    %1285 = vmatpush1.msra.mxu0 %v653
    %1286 = vmatprep.subr.mxu0 %v658
    %1287 = vmatpush1.msra.mxu0 %v657
    %1288 = vmatprep.subr.mxu0 %v662
    %1289 = vmatpush1.msra.mxu0 %v661
    %1290 = vmatprep.subr.mxu0 %v666
    %1291 = vmatpush1.msra.mxu0 %v665
    %1292 = vmatprep.subr.mxu0 %v670
    %1293 = vmatpush1.msra.mxu0 %v669
    %1294 = vmatprep.subr.mxu0 %v674
    %1295 = vmatpush1.msra.mxu0 %v673
    %1296 = vmatprep.subr.mxu0 %v678
    %1297 = vmatpush1.msra.mxu0 %v677
    %1298 = vmatprep.subr.mxu0 %v682
    %1299 = vmatpush1.msra.mxu0 %v681
    %1300 = vmatprep.subr.mxu0 %v686
    %1301 = vmatpush1.msra.mxu0 %v685
    %1302 = vmatprep.subr.mxu0 %v690
    %1303 = vmatpush1.msra.mxu0 %v689
    %1304 = vmatprep.subr.mxu0 %v694
    %1305 = vmatpush1.msra.mxu0 %v693
    %1306 = vmatprep.subr.mxu0 %v698
    %1307 = vmatpush1.msra.mxu0 %v697
    %1308 = vmatprep.subr.mxu0 %v702
    %1309 = vmatpush1.msra.mxu0 %v701
    %1310 = vmatprep.subr.mxu0 %v706
    %1311 = vmatpush1.msra.mxu0 %v705
    %1312 = vmatprep.subr.mxu0 %v710
    %1313 = vmatpush1.msra.mxu0 %v709
    %1314 = vmatprep.subr.mxu0 %v714
    %1315 = vmatpush1.msra.mxu0 %v713
    %1316 = vmatprep.subr.mxu0 %v718
    %1317 = vmatpush1.msra.mxu0 %v717
    %1318 = vmatprep.subr.mxu0 %v722
    %1319 = vmatpush1.msra.mxu0 %v721
    %1320 = vmatprep.subr.mxu0 %v726
    %1321 = vmatpush1.msra.mxu0 %v725
    %1322 = vmatprep.subr.mxu0 %v730
    %1323 = vmatpush1.msra.mxu0 %v729
    %1324 = vmatprep.subr.mxu0 %v734
    %1325 = vmatpush1.msra.mxu0 %v733
    %1326 = vmatprep.subr.mxu0 %v738
    %1327 = vmatpush1.msra.mxu0 %v737
    %1328 = vmatprep.subr.mxu0 %v742
    %1329 = vmatpush1.msra.mxu0 %v741
    %1330 = vmatprep.subr.mxu0 %v746
    %1331 = vmatpush1.msra.mxu0 %v745
    %1332 = vmatprep.subr.mxu0 %v750
    %1333 = vmatpush1.msra.mxu0 %v749
    %1334 = vmatprep.subr.mxu0 %v754
    %1335 = vmatpush1.msra.mxu0 %v753
    %1336 = vmatprep.subr.mxu0 %v758
    %1337 = vmatpush1.msra.mxu0 %v757
    %1338 = vmatprep.subr.mxu0 %v762
    %1339 = vmatpush1.msra.mxu0 %v761
    %1340 = vmatprep.subr.mxu0 %v766
    %1341 = vmatpush1.msra.mxu0 %v765
    %1342 = vmatprep.subr.mxu0 %v770
    %1343 = vmatpush1.msra.mxu0 %v769
    %1344 = vmatprep.subr.mxu0 %v774
    %1345 = vmatpush1.msra.mxu0 %v773
    %1346 = vmatprep.mubr.f32.mxu0 %v144
    %1347 = vmatmul.mubr.f32.gmra.mrb[0].mxu0 %v143
    %v1348 = vpop.f32.mrb[0].mxu0
    %v1349 = vadd.f32 %v1188, %v1348
    %v1350 = vpop.f32.mrb[0].mxu0
    %v1351 = vadd.f32 %v1190, %v1350
    %1352 = vmatprep.mubr.f32.mxu0 %v152
    %1353 = vmatmul.mubr.f32.gmra.mrb[0].mxu0 %v151
    %v1354 = vpop.f32.mrb[0].mxu0
    %v1355 = vadd.f32 %v1194, %v1354
    %v1356 = vpop.f32.mrb[0].mxu0
    %v1357 = vadd.f32 %v1196, %v1356
    %1358 = vmatprep.mubr.f32.mxu0 %v160
    %1359 = vmatmul.mubr.f32.gmra.mrb[0].mxu0 %v159
    %v1360 = vpop.f32.mrb[0].mxu0
    %v1361 = vadd.f32 %v1200, %v1360
    %v1362 = vpop.f32.mrb[0].mxu0
    %v1363 = vadd.f32 %v1202, %v1362
    %1364 = vmatprep.mubr.f32.mxu0 %v168
    %1365 = vmatmul.mubr.f32.gmra.mrb[0].mxu0 %v167
    %v1366 = vpop.f32.mrb[0].mxu0
    %v1367 = vadd.f32 %v1206, %v1366
    %v1368 = vpop.f32.mrb[0].mxu0
    %v1369 = vadd.f32 %v1208, %v1368
    %1370 = vmatprep.mubr.f32.mxu0 %v176
    %1371 = vmatmul.mubr.f32.gmra.mrb[0].mxu0 %v175
    %v1372 = vpop.f32.mrb[0].mxu0
    %v1373 = vadd.f32 %v1212, %v1372
    %v1374 = vpop.f32.mrb[0].mxu0
    %v1375 = vadd.f32 %v1214, %v1374
    %1376 = vmatprep.mubr.f32.mxu0 %v184
    %1377 = vmatmul.mubr.f32.gmra.mrb[0].mxu0 %v183
    %v1378 = vpop.f32.mrb[0].mxu0
    %v1379 = vadd.f32 %v1218, %v1378
    %v1380 = vpop.f32.mrb[0].mxu0
    %v1381 = vadd.f32 %v1220, %v1380
    %1382 = vmatprep.mubr.f32.mxu0 %v192
    %1383 = vmatmul.mubr.f32.gmra.mrb[0].mxu0 %v191
    %v1384 = vpop.f32.mrb[0].mxu0
    %v1385 = vadd.f32 %v1224, %v1384
    %v1386 = vpop.f32.mrb[0].mxu0
    %v1387 = vadd.f32 %v1226, %v1386
    %1388 = vmatprep.mubr.f32.mxu0 %v200
    %1389 = vmatmul.mubr.f32.gmra.mrb[0].mxu0 %v199
    %v1390 = vpop.f32.mrb[0].mxu0
    %v1391 = vadd.f32 %v1230, %v1390
    %v1392 = vpop.f32.mrb[0].mxu0
    %v1393 = vadd.f32 %v1232, %v1392
    %1394 = vmatprep.mubr.f32.mxu0 %v208
    %1395 = vmatmul.mubr.f32.gmra.mrb[0].mxu0 %v207
    %v1396 = vpop.f32.mrb[0].mxu0
    %v1397 = vadd.f32 %v1236, %v1396
    %v1398 = vpop.f32.mrb[0].mxu0
    %v1399 = vadd.f32 %v1238, %v1398
    %1400 = vmatprep.mubr.f32.mxu0 %v216
    %1401 = vmatmul.mubr.f32.gmra.mrb[0].mxu0 %v215
    %v1402 = vpop.f32.mrb[0].mxu0
    %v1403 = vadd.f32 %v1242, %v1402
    %v1404 = vpop.f32.mrb[0].mxu0
    %v1405 = vadd.f32 %v1244, %v1404
    %1406 = vmatprep.mubr.f32.mxu0 %v224
    %1407 = vmatmul.mubr.f32.gmra.mrb[0].mxu0 %v223
    %v1408 = vpop.f32.mrb[0].mxu0
    %v1409 = vadd.f32 %v1248, %v1408
    %v1410 = vpop.f32.mrb[0].mxu0
    %v1411 = vadd.f32 %v1250, %v1410
    %1412 = vmatprep.mubr.f32.mxu0 %v232
    %1413 = vmatmul.mubr.f32.gmra.mrb[0].mxu0 %v231
    %v1414 = vpop.f32.mrb[0].mxu0
    %v1415 = vadd.f32 %v1254, %v1414
    %v1416 = vpop.f32.mrb[0].mxu0
    %v1417 = vadd.f32 %v1256, %v1416
    %1418 = vmatprep.mubr.f32.mxu0 %v240
    %1419 = vmatmul.mubr.f32.gmra.mrb[0].mxu0 %v239
    %v1420 = vpop.f32.mrb[0].mxu0
    %v1421 = vadd.f32 %v1260, %v1420
    %v1422 = vpop.f32.mrb[0].mxu0
    %v1423 = vadd.f32 %v1262, %v1422
    %1424 = vmatprep.mubr.f32.mxu0 %v248
    %1425 = vmatmul.mubr.f32.gmra.mrb[0].mxu0 %v247
    %v1426 = vpop.f32.mrb[0].mxu0
    %v1427 = vadd.f32 %v1266, %v1426
    %v1428 = vpop.f32.mrb[0].mxu0
    %v1429 = vadd.f32 %v1268, %v1428
    %1430 = vmatprep.mubr.f32.mxu0 %v256
    %1431 = vmatmul.mubr.f32.gmra.mrb[0].mxu0 %v255
    %v1432 = vpop.f32.mrb[0].mxu0
    %v1433 = vadd.f32 %v1272, %v1432
    %v1434 = vpop.f32.mrb[0].mxu0
    %v1435 = vadd.f32 %v1274, %v1434
    %1436 = vmatprep.mubr.f32.mxu0 %v264
    %1437 = vmatmul.mubr.f32.gmra.mrb[0].mxu0 %v263
    %v1438 = vpop.f32.mrb[0].mxu0
    %v1439 = vadd.f32 %v1278, %v1438
    %v1440 = vpop.f32.mrb[0].mxu0
    %v1441 = vadd.f32 %v1280, %v1440
    %1442 = vdwg.mxu0
    %1443 = vmatprep.subr.mxu0 %v268
    %1444 = vmatpush1.msra.mxu0 %v267
    %1445 = vmatprep.subr.mxu0 %v272
    %1446 = vmatpush1.msra.mxu0 %v271
    %1447 = vmatprep.subr.mxu0 %v276
    %1448 = vmatpush1.msra.mxu0 %v275
    %1449 = vmatprep.subr.mxu0 %v280
    %1450 = vmatpush1.msra.mxu0 %v279
    %1451 = vmatprep.subr.mxu0 %v284
    %1452 = vmatpush1.msra.mxu0 %v283
    %1453 = vmatprep.subr.mxu0 %v288
    %1454 = vmatpush1.msra.mxu0 %v287
    %1455 = vmatprep.subr.mxu0 %v292
    %1456 = vmatpush1.msra.mxu0 %v291
    %1457 = vmatprep.subr.mxu0 %v296
    %1458 = vmatpush1.msra.mxu0 %v295
    %1459 = vmatprep.subr.mxu0 %v300
    %1460 = vmatpush1.msra.mxu0 %v299
    %1461 = vmatprep.subr.mxu0 %v304
    %1462 = vmatpush1.msra.mxu0 %v303
    %1463 = vmatprep.subr.mxu0 %v308
    %1464 = vmatpush1.msra.mxu0 %v307
    %1465 = vmatprep.subr.mxu0 %v312
    %1466 = vmatpush1.msra.mxu0 %v311
    %1467 = vmatprep.subr.mxu0 %v316
    %1468 = vmatpush1.msra.mxu0 %v315
    %1469 = vmatprep.subr.mxu0 %v320
    %1470 = vmatpush1.msra.mxu0 %v319
    %1471 = vmatprep.subr.mxu0 %v324
    %1472 = vmatpush1.msra.mxu0 %v323
    %1473 = vmatprep.subr.mxu0 %v328
    %1474 = vmatpush1.msra.mxu0 %v327
    %1475 = vmatprep.subr.mxu0 %v332
    %1476 = vmatpush1.msra.mxu0 %v331
    %1477 = vmatprep.subr.mxu0 %v336
    %1478 = vmatpush1.msra.mxu0 %v335
    %1479 = vmatprep.subr.mxu0 %v340
    %1480 = vmatpush1.msra.mxu0 %v339
    %1481 = vmatprep.subr.mxu0 %v344
    %1482 = vmatpush1.msra.mxu0 %v343
    %1483 = vmatprep.subr.mxu0 %v348
    %1484 = vmatpush1.msra.mxu0 %v347
    %1485 = vmatprep.subr.mxu0 %v352
    %1486 = vmatpush1.msra.mxu0 %v351
    %1487 = vmatprep.subr.mxu0 %v356
    %1488 = vmatpush1.msra.mxu0 %v355
    %1489 = vmatprep.subr.mxu0 %v360
    %1490 = vmatpush1.msra.mxu0 %v359
    %1491 = vmatprep.subr.mxu0 %v364
    %1492 = vmatpush1.msra.mxu0 %v363
    %1493 = vmatprep.subr.mxu0 %v368
    %1494 = vmatpush1.msra.mxu0 %v367
    %1495 = vmatprep.subr.mxu0 %v372
    %1496 = vmatpush1.msra.mxu0 %v371
    %1497 = vmatprep.subr.mxu0 %v376
    %1498 = vmatpush1.msra.mxu0 %v375
    %1499 = vmatprep.subr.mxu0 %v380
    %1500 = vmatpush1.msra.mxu0 %v379
    %1501 = vmatprep.subr.mxu0 %v384
    %1502 = vmatpush1.msra.mxu0 %v383
    %1503 = vmatprep.subr.mxu0 %v388
    %1504 = vmatpush1.msra.mxu0 %v387
    %1505 = vmatprep.subr.mxu0 %v392
    %1506 = vmatpush1.msra.mxu0 %v391
    %1507 = vmatprep.mubr.f32.mxu0 %v138
    %1508 = vmatmul.mubr.f32.gmra.mrb[0].mxu0 %v137
    %v1509 = vpop.f32.mrb[0].mxu0
    %v1510 = vadd.f32 %v790, %v1509
    %v1511 = vpop.f32.mrb[0].mxu0
    %v1512 = vadd.f32 %v794, %v1511
    %1513 = vmatprep.mubr.f32.mxu0 %v146
    %1514 = vmatmul.mubr.f32.gmra.mrb[0].mxu0 %v145
    %v1515 = vpop.f32.mrb[0].mxu0
    %v1516 = vadd.f32 %v790, %v1515
    %v1517 = vpop.f32.mrb[0].mxu0
    %v1518 = vadd.f32 %v794, %v1517
    %1519 = vmatprep.mubr.f32.mxu0 %v154
    %1520 = vmatmul.mubr.f32.gmra.mrb[0].mxu0 %v153
    %v1521 = vpop.f32.mrb[0].mxu0
    %v1522 = vadd.f32 %v790, %v1521
    %v1523 = vpop.f32.mrb[0].mxu0
    %v1524 = vadd.f32 %v794, %v1523
    %1525 = vmatprep.mubr.f32.mxu0 %v162
    %1526 = vmatmul.mubr.f32.gmra.mrb[0].mxu0 %v161
    %v1527 = vpop.f32.mrb[0].mxu0
    %v1528 = vadd.f32 %v790, %v1527
    %v1529 = vpop.f32.mrb[0].mxu0
    %v1530 = vadd.f32 %v794, %v1529
    %1531 = vmatprep.mubr.f32.mxu0 %v170
    %1532 = vmatmul.mubr.f32.gmra.mrb[0].mxu0 %v169
    %v1533 = vpop.f32.mrb[0].mxu0
    %v1534 = vadd.f32 %v790, %v1533
    %v1535 = vpop.f32.mrb[0].mxu0
    %v1536 = vadd.f32 %v794, %v1535
    %1537 = vmatprep.mubr.f32.mxu0 %v178
    %1538 = vmatmul.mubr.f32.gmra.mrb[0].mxu0 %v177
    %v1539 = vpop.f32.mrb[0].mxu0
    %v1540 = vadd.f32 %v790, %v1539
    %v1541 = vpop.f32.mrb[0].mxu0
    %v1542 = vadd.f32 %v794, %v1541
    %1543 = vmatprep.mubr.f32.mxu0 %v186
    %1544 = vmatmul.mubr.f32.gmra.mrb[0].mxu0 %v185
    %v1545 = vpop.f32.mrb[0].mxu0
    %v1546 = vadd.f32 %v790, %v1545
    %v1547 = vpop.f32.mrb[0].mxu0
    %v1548 = vadd.f32 %v794, %v1547
    %1549 = vmatprep.mubr.f32.mxu0 %v194
    %1550 = vmatmul.mubr.f32.gmra.mrb[0].mxu0 %v193
    %v1551 = vpop.f32.mrb[0].mxu0
    %v1552 = vadd.f32 %v790, %v1551
    %v1553 = vpop.f32.mrb[0].mxu0
    %v1554 = vadd.f32 %v794, %v1553
    %1555 = vmatprep.mubr.f32.mxu0 %v202
    %1556 = vmatmul.mubr.f32.gmra.mrb[0].mxu0 %v201
    %v1557 = vpop.f32.mrb[0].mxu0
    %v1558 = vadd.f32 %v790, %v1557
    %v1559 = vpop.f32.mrb[0].mxu0
    %v1560 = vadd.f32 %v794, %v1559
    %1561 = vmatprep.mubr.f32.mxu0 %v210
    %1562 = vmatmul.mubr.f32.gmra.mrb[0].mxu0 %v209
    %v1563 = vpop.f32.mrb[0].mxu0
    %v1564 = vadd.f32 %v790, %v1563
    %v1565 = vpop.f32.mrb[0].mxu0
    %v1566 = vadd.f32 %v794, %v1565
    %1567 = vmatprep.mubr.f32.mxu0 %v218
    %1568 = vmatmul.mubr.f32.gmra.mrb[0].mxu0 %v217
    %v1569 = vpop.f32.mrb[0].mxu0
    %v1570 = vadd.f32 %v790, %v1569
    %v1571 = vpop.f32.mrb[0].mxu0
    %v1572 = vadd.f32 %v794, %v1571
    %1573 = vmatprep.mubr.f32.mxu0 %v226
    %1574 = vmatmul.mubr.f32.gmra.mrb[0].mxu0 %v225
    %v1575 = vpop.f32.mrb[0].mxu0
    %v1576 = vadd.f32 %v790, %v1575
    %v1577 = vpop.f32.mrb[0].mxu0
    %v1578 = vadd.f32 %v794, %v1577
    %1579 = vmatprep.mubr.f32.mxu0 %v234
    %1580 = vmatmul.mubr.f32.gmra.mrb[0].mxu0 %v233
    %v1581 = vpop.f32.mrb[0].mxu0
    %v1582 = vadd.f32 %v790, %v1581
    %v1583 = vpop.f32.mrb[0].mxu0
    %v1584 = vadd.f32 %v794, %v1583
    %1585 = vmatprep.mubr.f32.mxu0 %v242
    %1586 = vmatmul.mubr.f32.gmra.mrb[0].mxu0 %v241
    %v1587 = vpop.f32.mrb[0].mxu0
    %v1588 = vadd.f32 %v790, %v1587
    %v1589 = vpop.f32.mrb[0].mxu0
    %v1590 = vadd.f32 %v794, %v1589
    %1591 = vmatprep.mubr.f32.mxu0 %v250
    %1592 = vmatmul.mubr.f32.gmra.mrb[0].mxu0 %v249
    %v1593 = vpop.f32.mrb[0].mxu0
    %v1594 = vadd.f32 %v790, %v1593
    %v1595 = vpop.f32.mrb[0].mxu0
    %v1596 = vadd.f32 %v794, %v1595
    %1597 = vmatprep.mubr.f32.mxu0 %v258
    %1598 = vmatmul.mubr.f32.gmra.mrb[0].mxu0 %v257
    %v1599 = vpop.f32.mrb[0].mxu0
    %v1600 = vadd.f32 %v790, %v1599
    %v1601 = vpop.f32.mrb[0].mxu0
    %v1602 = vadd.f32 %v794, %v1601
    %1603 = vdwg.mxu0
    %1604 = vmatprep.subr.mxu0 %v396
    %1605 = vmatpush1.msra.mxu0 %v395
    %1606 = vmatprep.subr.mxu0 %v400
    %1607 = vmatpush1.msra.mxu0 %v399
    %1608 = vmatprep.subr.mxu0 %v404
    %1609 = vmatpush1.msra.mxu0 %v403
    %1610 = vmatprep.subr.mxu0 %v408
    %1611 = vmatpush1.msra.mxu0 %v407
    %1612 = vmatprep.subr.mxu0 %v412
    %1613 = vmatpush1.msra.mxu0 %v411
    %1614 = vmatprep.subr.mxu0 %v416
    %1615 = vmatpush1.msra.mxu0 %v415
    %1616 = vmatprep.subr.mxu0 %v420
    %1617 = vmatpush1.msra.mxu0 %v419
    %1618 = vmatprep.subr.mxu0 %v424
    %1619 = vmatpush1.msra.mxu0 %v423
    %1620 = vmatprep.subr.mxu0 %v428
    %1621 = vmatpush1.msra.mxu0 %v427
    %1622 = vmatprep.subr.mxu0 %v432
    %1623 = vmatpush1.msra.mxu0 %v431
    %1624 = vmatprep.subr.mxu0 %v436
    %1625 = vmatpush1.msra.mxu0 %v435
    %1626 = vmatprep.subr.mxu0 %v440
    %1627 = vmatpush1.msra.mxu0 %v439
    %1628 = vmatprep.subr.mxu0 %v444
    %1629 = vmatpush1.msra.mxu0 %v443
    %1630 = vmatprep.subr.mxu0 %v448
    %1631 = vmatpush1.msra.mxu0 %v447
    %1632 = vmatprep.subr.mxu0 %v452
    %1633 = vmatpush1.msra.mxu0 %v451
    %1634 = vmatprep.subr.mxu0 %v456
    %1635 = vmatpush1.msra.mxu0 %v455
    %1636 = vmatprep.subr.mxu0 %v460
    %1637 = vmatpush1.msra.mxu0 %v459
    %1638 = vmatprep.subr.mxu0 %v464
    %1639 = vmatpush1.msra.mxu0 %v463
    %1640 = vmatprep.subr.mxu0 %v468
    %1641 = vmatpush1.msra.mxu0 %v467
    %1642 = vmatprep.subr.mxu0 %v472
    %1643 = vmatpush1.msra.mxu0 %v471
    %1644 = vmatprep.subr.mxu0 %v476
    %1645 = vmatpush1.msra.mxu0 %v475
    %1646 = vmatprep.subr.mxu0 %v480
    %1647 = vmatpush1.msra.mxu0 %v479
    %1648 = vmatprep.subr.mxu0 %v484
    %1649 = vmatpush1.msra.mxu0 %v483
    %1650 = vmatprep.subr.mxu0 %v488
    %1651 = vmatpush1.msra.mxu0 %v487
    %1652 = vmatprep.subr.mxu0 %v492
    %1653 = vmatpush1.msra.mxu0 %v491
    %1654 = vmatprep.subr.mxu0 %v496
    %1655 = vmatpush1.msra.mxu0 %v495
    %1656 = vmatprep.subr.mxu0 %v500
    %1657 = vmatpush1.msra.mxu0 %v499
    %1658 = vmatprep.subr.mxu0 %v504
    %1659 = vmatpush1.msra.mxu0 %v503
    %1660 = vmatprep.subr.mxu0 %v508
    %1661 = vmatpush1.msra.mxu0 %v507
    %1662 = vmatprep.subr.mxu0 %v512
    %1663 = vmatpush1.msra.mxu0 %v511
    %1664 = vmatprep.subr.mxu0 %v516
    %1665 = vmatpush1.msra.mxu0 %v515
    %1666 = vmatprep.subr.mxu0 %v520
    %1667 = vmatpush1.msra.mxu0 %v519
    %1668 = vmatprep.mubr.f32.mxu0 %v140
    %1669 = vmatmul.mubr.f32.gmra.mrb[0].mxu0 %v139
    %v1670 = vpop.f32.mrb[0].mxu0
    %v1671 = vadd.f32 %v1510, %v1670
    %v1672 = vpop.f32.mrb[0].mxu0
    %v1673 = vadd.f32 %v1512, %v1672
    %1674 = vmatprep.mubr.f32.mxu0 %v148
    %1675 = vmatmul.mubr.f32.gmra.mrb[0].mxu0 %v147
    %v1676 = vpop.f32.mrb[0].mxu0
    %v1677 = vadd.f32 %v1516, %v1676
    %v1678 = vpop.f32.mrb[0].mxu0
    %v1679 = vadd.f32 %v1518, %v1678
    %1680 = vmatprep.mubr.f32.mxu0 %v156
    %1681 = vmatmul.mubr.f32.gmra.mrb[0].mxu0 %v155
    %v1682 = vpop.f32.mrb[0].mxu0
    %v1683 = vadd.f32 %v1522, %v1682
    %v1684 = vpop.f32.mrb[0].mxu0
    %v1685 = vadd.f32 %v1524, %v1684
    %1686 = vmatprep.mubr.f32.mxu0 %v164
    %1687 = vmatmul.mubr.f32.gmra.mrb[0].mxu0 %v163
    %v1688 = vpop.f32.mrb[0].mxu0
    %v1689 = vadd.f32 %v1528, %v1688
    %v1690 = vpop.f32.mrb[0].mxu0
    %v1691 = vadd.f32 %v1530, %v1690
    %1692 = vmatprep.mubr.f32.mxu0 %v172
    %1693 = vmatmul.mubr.f32.gmra.mrb[0].mxu0 %v171
    %v1694 = vpop.f32.mrb[0].mxu0
    %v1695 = vadd.f32 %v1534, %v1694
    %v1696 = vpop.f32.mrb[0].mxu0
    %v1697 = vadd.f32 %v1536, %v1696
    %1698 = vmatprep.mubr.f32.mxu0 %v180
    %1699 = vmatmul.mubr.f32.gmra.mrb[0].mxu0 %v179
    %v1700 = vpop.f32.mrb[0].mxu0
    %v1701 = vadd.f32 %v1540, %v1700
    %v1702 = vpop.f32.mrb[0].mxu0
    %v1703 = vadd.f32 %v1542, %v1702
    %1704 = vmatprep.mubr.f32.mxu0 %v188
    %1705 = vmatmul.mubr.f32.gmra.mrb[0].mxu0 %v187
    %v1706 = vpop.f32.mrb[0].mxu0
    %v1707 = vadd.f32 %v1546, %v1706
    %v1708 = vpop.f32.mrb[0].mxu0
    %v1709 = vadd.f32 %v1548, %v1708
    %1710 = vmatprep.mubr.f32.mxu0 %v196
    %1711 = vmatmul.mubr.f32.gmra.mrb[0].mxu0 %v195
    %v1712 = vpop.f32.mrb[0].mxu0
    %v1713 = vadd.f32 %v1552, %v1712
    %v1714 = vpop.f32.mrb[0].mxu0
    %v1715 = vadd.f32 %v1554, %v1714
    %1716 = vmatprep.mubr.f32.mxu0 %v204
    %1717 = vmatmul.mubr.f32.gmra.mrb[0].mxu0 %v203
    %v1718 = vpop.f32.mrb[0].mxu0
    %v1719 = vadd.f32 %v1558, %v1718
    %v1720 = vpop.f32.mrb[0].mxu0
    %v1721 = vadd.f32 %v1560, %v1720
    %1722 = vmatprep.mubr.f32.mxu0 %v212
    %1723 = vmatmul.mubr.f32.gmra.mrb[0].mxu0 %v211
    %v1724 = vpop.f32.mrb[0].mxu0
    %v1725 = vadd.f32 %v1564, %v1724
    %v1726 = vpop.f32.mrb[0].mxu0
    %v1727 = vadd.f32 %v1566, %v1726
    %1728 = vmatprep.mubr.f32.mxu0 %v220
    %1729 = vmatmul.mubr.f32.gmra.mrb[0].mxu0 %v219
    %v1730 = vpop.f32.mrb[0].mxu0
    %v1731 = vadd.f32 %v1570, %v1730
    %v1732 = vpop.f32.mrb[0].mxu0
    %v1733 = vadd.f32 %v1572, %v1732
    %1734 = vmatprep.mubr.f32.mxu0 %v228
    %1735 = vmatmul.mubr.f32.gmra.mrb[0].mxu0 %v227
    %v1736 = vpop.f32.mrb[0].mxu0
    %v1737 = vadd.f32 %v1576, %v1736
    %v1738 = vpop.f32.mrb[0].mxu0
    %v1739 = vadd.f32 %v1578, %v1738
    %1740 = vmatprep.mubr.f32.mxu0 %v236
    %1741 = vmatmul.mubr.f32.gmra.mrb[0].mxu0 %v235
    %v1742 = vpop.f32.mrb[0].mxu0
    %v1743 = vadd.f32 %v1582, %v1742
    %v1744 = vpop.f32.mrb[0].mxu0
    %v1745 = vadd.f32 %v1584, %v1744
    %1746 = vmatprep.mubr.f32.mxu0 %v244
    %1747 = vmatmul.mubr.f32.gmra.mrb[0].mxu0 %v243
    %v1748 = vpop.f32.mrb[0].mxu0
    %v1749 = vadd.f32 %v1588, %v1748
    %v1750 = vpop.f32.mrb[0].mxu0
    %v1751 = vadd.f32 %v1590, %v1750
    %1752 = vmatprep.mubr.f32.mxu0 %v252
    %1753 = vmatmul.mubr.f32.gmra.mrb[0].mxu0 %v251
    %v1754 = vpop.f32.mrb[0].mxu0
    %v1755 = vadd.f32 %v1594, %v1754
    %v1756 = vpop.f32.mrb[0].mxu0
    %v1757 = vadd.f32 %v1596, %v1756
    %1758 = vmatprep.mubr.f32.mxu0 %v260
    %1759 = vmatmul.mubr.f32.gmra.mrb[0].mxu0 %v259
    %v1760 = vpop.f32.mrb[0].mxu0
    %v1761 = vadd.f32 %v1600, %v1760
    %v1762 = vpop.f32.mrb[0].mxu0
    %v1763 = vadd.f32 %v1602, %v1762
    %1764 = vdwg.mxu0
    %1765 = vmatprep.subr.mxu0 %v524
    %1766 = vmatpush1.msra.mxu0 %v523
    %1767 = vmatprep.subr.mxu0 %v528
    %1768 = vmatpush1.msra.mxu0 %v527
    %1769 = vmatprep.subr.mxu0 %v532
    %1770 = vmatpush1.msra.mxu0 %v531
    %1771 = vmatprep.subr.mxu0 %v536
    %1772 = vmatpush1.msra.mxu0 %v535
    %1773 = vmatprep.subr.mxu0 %v540
    %1774 = vmatpush1.msra.mxu0 %v539
    %1775 = vmatprep.subr.mxu0 %v544
    %1776 = vmatpush1.msra.mxu0 %v543
    %1777 = vmatprep.subr.mxu0 %v548
    %1778 = vmatpush1.msra.mxu0 %v547
    %1779 = vmatprep.subr.mxu0 %v552
    %1780 = vmatpush1.msra.mxu0 %v551
    %1781 = vmatprep.subr.mxu0 %v556
    %1782 = vmatpush1.msra.mxu0 %v555
    %1783 = vmatprep.subr.mxu0 %v560
    %1784 = vmatpush1.msra.mxu0 %v559
    %1785 = vmatprep.subr.mxu0 %v564
    %1786 = vmatpush1.msra.mxu0 %v563
    %1787 = vmatprep.subr.mxu0 %v568
    %1788 = vmatpush1.msra.mxu0 %v567
    %1789 = vmatprep.subr.mxu0 %v572
    %1790 = vmatpush1.msra.mxu0 %v571
    %1791 = vmatprep.subr.mxu0 %v576
    %1792 = vmatpush1.msra.mxu0 %v575
    %1793 = vmatprep.subr.mxu0 %v580
    %1794 = vmatpush1.msra.mxu0 %v579
    %1795 = vmatprep.subr.mxu0 %v584
    %1796 = vmatpush1.msra.mxu0 %v583
    %1797 = vmatprep.subr.mxu0 %v588
    %1798 = vmatpush1.msra.mxu0 %v587
    %1799 = vmatprep.subr.mxu0 %v592
    %1800 = vmatpush1.msra.mxu0 %v591
    %1801 = vmatprep.subr.mxu0 %v596
    %1802 = vmatpush1.msra.mxu0 %v595
    %1803 = vmatprep.subr.mxu0 %v600
    %1804 = vmatpush1.msra.mxu0 %v599
    %1805 = vmatprep.subr.mxu0 %v604
    %1806 = vmatpush1.msra.mxu0 %v603
    %1807 = vmatprep.subr.mxu0 %v608
    %1808 = vmatpush1.msra.mxu0 %v607
    %1809 = vmatprep.subr.mxu0 %v612
    %1810 = vmatpush1.msra.mxu0 %v611
    %1811 = vmatprep.subr.mxu0 %v616
    %1812 = vmatpush1.msra.mxu0 %v615
    %1813 = vmatprep.subr.mxu0 %v620
    %1814 = vmatpush1.msra.mxu0 %v619
    %1815 = vmatprep.subr.mxu0 %v624
    %1816 = vmatpush1.msra.mxu0 %v623
    %1817 = vmatprep.subr.mxu0 %v628
    %1818 = vmatpush1.msra.mxu0 %v627
    %1819 = vmatprep.subr.mxu0 %v632
    %1820 = vmatpush1.msra.mxu0 %v631
    %1821 = vmatprep.subr.mxu0 %v636
    %1822 = vmatpush1.msra.mxu0 %v635
    %1823 = vmatprep.subr.mxu0 %v640
    %1824 = vmatpush1.msra.mxu0 %v639
    %1825 = vmatprep.subr.mxu0 %v644
    %1826 = vmatpush1.msra.mxu0 %v643
    %1827 = vmatprep.subr.mxu0 %v648
    %1828 = vmatpush1.msra.mxu0 %v647
    %1829 = vmatprep.mubr.f32.mxu0 %v142
    %1830 = vmatmul.mubr.f32.gmra.mrb[0].mxu0 %v141
    %v1831 = vpop.f32.mrb[0].mxu0
    %v1832 = vadd.f32 %v1671, %v1831
    %v1833 = vpop.f32.mrb[0].mxu0
    %v1834 = vadd.f32 %v1673, %v1833
    %1835 = vmatprep.mubr.f32.mxu0 %v150
    %1836 = vmatmul.mubr.f32.gmra.mrb[0].mxu0 %v149
    %v1837 = vpop.f32.mrb[0].mxu0
    %v1838 = vadd.f32 %v1677, %v1837
    %v1839 = vpop.f32.mrb[0].mxu0
    %v1840 = vadd.f32 %v1679, %v1839
    %1841 = vmatprep.mubr.f32.mxu0 %v158
    %1842 = vmatmul.mubr.f32.gmra.mrb[0].mxu0 %v157
    %v1843 = vpop.f32.mrb[0].mxu0
    %v1844 = vadd.f32 %v1683, %v1843
    %v1845 = vpop.f32.mrb[0].mxu0
    %v1846 = vadd.f32 %v1685, %v1845
    %1847 = vmatprep.mubr.f32.mxu0 %v166
    %1848 = vmatmul.mubr.f32.gmra.mrb[0].mxu0 %v165
    %v1849 = vpop.f32.mrb[0].mxu0
    %v1850 = vadd.f32 %v1689, %v1849
    %v1851 = vpop.f32.mrb[0].mxu0
    %v1852 = vadd.f32 %v1691, %v1851
    %1853 = vmatprep.mubr.f32.mxu0 %v174
    %1854 = vmatmul.mubr.f32.gmra.mrb[0].mxu0 %v173
    %v1855 = vpop.f32.mrb[0].mxu0
    %v1856 = vadd.f32 %v1695, %v1855
    %v1857 = vpop.f32.mrb[0].mxu0
    %v1858 = vadd.f32 %v1697, %v1857
    %1859 = vmatprep.mubr.f32.mxu0 %v182
    %1860 = vmatmul.mubr.f32.gmra.mrb[0].mxu0 %v181
    %v1861 = vpop.f32.mrb[0].mxu0
    %v1862 = vadd.f32 %v1701, %v1861
    %v1863 = vpop.f32.mrb[0].mxu0
    %v1864 = vadd.f32 %v1703, %v1863
    %1865 = vmatprep.mubr.f32.mxu0 %v190
    %1866 = vmatmul.mubr.f32.gmra.mrb[0].mxu0 %v189
    %v1867 = vpop.f32.mrb[0].mxu0
    %v1868 = vadd.f32 %v1707, %v1867
    %v1869 = vpop.f32.mrb[0].mxu0
    %v1870 = vadd.f32 %v1709, %v1869
    %1871 = vmatprep.mubr.f32.mxu0 %v198
    %1872 = vmatmul.mubr.f32.gmra.mrb[0].mxu0 %v197
    %v1873 = vpop.f32.mrb[0].mxu0
    %v1874 = vadd.f32 %v1713, %v1873
    %v1875 = vpop.f32.mrb[0].mxu0
    %v1876 = vadd.f32 %v1715, %v1875
    %1877 = vmatprep.mubr.f32.mxu0 %v206
    %1878 = vmatmul.mubr.f32.gmra.mrb[0].mxu0 %v205
    %v1879 = vpop.f32.mrb[0].mxu0
    %v1880 = vadd.f32 %v1719, %v1879
    %v1881 = vpop.f32.mrb[0].mxu0
    %v1882 = vadd.f32 %v1721, %v1881
    %1883 = vmatprep.mubr.f32.mxu0 %v214
    %1884 = vmatmul.mubr.f32.gmra.mrb[0].mxu0 %v213
    %v1885 = vpop.f32.mrb[0].mxu0
    %v1886 = vadd.f32 %v1725, %v1885
    %v1887 = vpop.f32.mrb[0].mxu0
    %v1888 = vadd.f32 %v1727, %v1887
    %1889 = vmatprep.mubr.f32.mxu0 %v222
    %1890 = vmatmul.mubr.f32.gmra.mrb[0].mxu0 %v221
    %v1891 = vpop.f32.mrb[0].mxu0
    %v1892 = vadd.f32 %v1731, %v1891
    %v1893 = vpop.f32.mrb[0].mxu0
    %v1894 = vadd.f32 %v1733, %v1893
    %1895 = vmatprep.mubr.f32.mxu0 %v230
    %1896 = vmatmul.mubr.f32.gmra.mrb[0].mxu0 %v229
    %v1897 = vpop.f32.mrb[0].mxu0
    %v1898 = vadd.f32 %v1737, %v1897
    %v1899 = vpop.f32.mrb[0].mxu0
    %v1900 = vadd.f32 %v1739, %v1899
    %1901 = vmatprep.mubr.f32.mxu0 %v238
    %1902 = vmatmul.mubr.f32.gmra.mrb[0].mxu0 %v237
    %v1903 = vpop.f32.mrb[0].mxu0
    %v1904 = vadd.f32 %v1743, %v1903
    %v1905 = vpop.f32.mrb[0].mxu0
    %v1906 = vadd.f32 %v1745, %v1905
    %1907 = vmatprep.mubr.f32.mxu0 %v246
    %1908 = vmatmul.mubr.f32.gmra.mrb[0].mxu0 %v245
    %v1909 = vpop.f32.mrb[0].mxu0
    %v1910 = vadd.f32 %v1749, %v1909
    %v1911 = vpop.f32.mrb[0].mxu0
    %v1912 = vadd.f32 %v1751, %v1911
    %1913 = vmatprep.mubr.f32.mxu0 %v254
    %1914 = vmatmul.mubr.f32.gmra.mrb[0].mxu0 %v253
    %v1915 = vpop.f32.mrb[0].mxu0
    %v1916 = vadd.f32 %v1755, %v1915
    %v1917 = vpop.f32.mrb[0].mxu0
    %v1918 = vadd.f32 %v1757, %v1917
    %1919 = vmatprep.mubr.f32.mxu0 %v262
    %1920 = vmatmul.mubr.f32.gmra.mrb[0].mxu0 %v261
    %v1921 = vpop.f32.mrb[0].mxu0
    %v1922 = vadd.f32 %v1761, %v1921
    %v1923 = vpop.f32.mrb[0].mxu0
    %v1924 = vadd.f32 %v1763, %v1923
    %1925 = vdwg.mxu0
    %1926 = vmatprep.subr.mxu0 %v652
    %1927 = vmatpush1.msra.mxu0 %v651
    %1928 = vmatprep.subr.mxu0 %v656
    %1929 = vmatpush1.msra.mxu0 %v655
    %1930 = vmatprep.subr.mxu0 %v660
    %1931 = vmatpush1.msra.mxu0 %v659
    %1932 = vmatprep.subr.mxu0 %v664
    %1933 = vmatpush1.msra.mxu0 %v663
    %1934 = vmatprep.subr.mxu0 %v668
    %1935 = vmatpush1.msra.mxu0 %v667
    %1936 = vmatprep.subr.mxu0 %v672
    %1937 = vmatpush1.msra.mxu0 %v671
    %1938 = vmatprep.subr.mxu0 %v676
    %1939 = vmatpush1.msra.mxu0 %v675
    %1940 = vmatprep.subr.mxu0 %v680
    %1941 = vmatpush1.msra.mxu0 %v679
    %1942 = vmatprep.subr.mxu0 %v684
    %1943 = vmatpush1.msra.mxu0 %v683
    %1944 = vmatprep.subr.mxu0 %v688
    %1945 = vmatpush1.msra.mxu0 %v687
    %1946 = vmatprep.subr.mxu0 %v692
    %1947 = vmatpush1.msra.mxu0 %v691
    %1948 = vmatprep.subr.mxu0 %v696
    %1949 = vmatpush1.msra.mxu0 %v695
    %1950 = vmatprep.subr.mxu0 %v700
    %1951 = vmatpush1.msra.mxu0 %v699
    %1952 = vmatprep.subr.mxu0 %v704
    %1953 = vmatpush1.msra.mxu0 %v703
    %1954 = vmatprep.subr.mxu0 %v708
    %1955 = vmatpush1.msra.mxu0 %v707
    %1956 = vmatprep.subr.mxu0 %v712
    %1957 = vmatpush1.msra.mxu0 %v711
    %1958 = vmatprep.subr.mxu0 %v716
    %1959 = vmatpush1.msra.mxu0 %v715
    %1960 = vmatprep.subr.mxu0 %v720
    %1961 = vmatpush1.msra.mxu0 %v719
    %1962 = vmatprep.subr.mxu0 %v724
    %1963 = vmatpush1.msra.mxu0 %v723
    %1964 = vmatprep.subr.mxu0 %v728
    %1965 = vmatpush1.msra.mxu0 %v727
    %1966 = vmatprep.subr.mxu0 %v732
    %1967 = vmatpush1.msra.mxu0 %v731
    %1968 = vmatprep.subr.mxu0 %v736
    %1969 = vmatpush1.msra.mxu0 %v735
    %1970 = vmatprep.subr.mxu0 %v740
    %1971 = vmatpush1.msra.mxu0 %v739
    %1972 = vmatprep.subr.mxu0 %v744
    %1973 = vmatpush1.msra.mxu0 %v743
    %1974 = vmatprep.subr.mxu0 %v748
    %1975 = vmatpush1.msra.mxu0 %v747
    %1976 = vmatprep.subr.mxu0 %v752
    %1977 = vmatpush1.msra.mxu0 %v751
    %1978 = vmatprep.subr.mxu0 %v756
    %1979 = vmatpush1.msra.mxu0 %v755
    %1980 = vmatprep.subr.mxu0 %v760
    %1981 = vmatpush1.msra.mxu0 %v759
    %1982 = vmatprep.subr.mxu0 %v764
    %1983 = vmatpush1.msra.mxu0 %v763
    %1984 = vmatprep.subr.mxu0 %v768
    %1985 = vmatpush1.msra.mxu0 %v767
    %1986 = vmatprep.subr.mxu0 %v772
    %1987 = vmatpush1.msra.mxu0 %v771
    %1988 = vmatprep.subr.mxu0 %v776
    %1989 = vmatpush1.msra.mxu0 %v775
    %1990 = vmatprep.mubr.f32.mxu0 %v144
    %1991 = vmatmul.mubr.f32.gmra.mrb[0].mxu0 %v143
    %v1992 = vpop.f32.mrb[0].mxu0
    %v1993 = vadd.f32 %v1832, %v1992
    %v1994 = vpop.f32.mrb[0].mxu0
    %v1995 = vadd.f32 %v1834, %v1994
    %1996 = vmatprep.mubr.f32.mxu0 %v152
    %1997 = vmatmul.mubr.f32.gmra.mrb[0].mxu0 %v151
    %v1998 = vpop.f32.mrb[0].mxu0
    %v1999 = vadd.f32 %v1838, %v1998
    %v2000 = vpop.f32.mrb[0].mxu0
    %v2001 = vadd.f32 %v1840, %v2000
    %2002 = vmatprep.mubr.f32.mxu0 %v160
    %2003 = vmatmul.mubr.f32.gmra.mrb[0].mxu0 %v159
    %v2004 = vpop.f32.mrb[0].mxu0
    %v2005 = vadd.f32 %v1844, %v2004
    %v2006 = vpop.f32.mrb[0].mxu0
    %v2007 = vadd.f32 %v1846, %v2006
    %2008 = vmatprep.mubr.f32.mxu0 %v168
    %2009 = vmatmul.mubr.f32.gmra.mrb[0].mxu0 %v167
    %v2010 = vpop.f32.mrb[0].mxu0
    %v2011 = vadd.f32 %v1850, %v2010
    %v2012 = vpop.f32.mrb[0].mxu0
    %v2013 = vadd.f32 %v1852, %v2012
    %2014 = vmatprep.mubr.f32.mxu0 %v176
    %2015 = vmatmul.mubr.f32.gmra.mrb[0].mxu0 %v175
    %v2016 = vpop.f32.mrb[0].mxu0
    %v2017 = vadd.f32 %v1856, %v2016
    %v2018 = vpop.f32.mrb[0].mxu0
    %v2019 = vadd.f32 %v1858, %v2018
    %2020 = vmatprep.mubr.f32.mxu0 %v184
    %2021 = vmatmul.mubr.f32.gmra.mrb[0].mxu0 %v183
    %v2022 = vpop.f32.mrb[0].mxu0
    %v2023 = vadd.f32 %v1862, %v2022
    %v2024 = vpop.f32.mrb[0].mxu0
    %v2025 = vadd.f32 %v1864, %v2024
    %2026 = vmatprep.mubr.f32.mxu0 %v192
    %2027 = vmatmul.mubr.f32.gmra.mrb[0].mxu0 %v191
    %v2028 = vpop.f32.mrb[0].mxu0
    %v2029 = vadd.f32 %v1868, %v2028
    %v2030 = vpop.f32.mrb[0].mxu0
    %v2031 = vadd.f32 %v1870, %v2030
    %2032 = vmatprep.mubr.f32.mxu0 %v200
    %2033 = vmatmul.mubr.f32.gmra.mrb[0].mxu0 %v199
    %v2034 = vpop.f32.mrb[0].mxu0
    %v2035 = vadd.f32 %v1874, %v2034
    %v2036 = vpop.f32.mrb[0].mxu0
    %v2037 = vadd.f32 %v1876, %v2036
    %2038 = vmatprep.mubr.f32.mxu0 %v208
    %2039 = vmatmul.mubr.f32.gmra.mrb[0].mxu0 %v207
    %v2040 = vpop.f32.mrb[0].mxu0
    %v2041 = vadd.f32 %v1880, %v2040
    %v2042 = vpop.f32.mrb[0].mxu0
    %v2043 = vadd.f32 %v1882, %v2042
    %2044 = vmatprep.mubr.f32.mxu0 %v216
    %2045 = vmatmul.mubr.f32.gmra.mrb[0].mxu0 %v215
    %v2046 = vpop.f32.mrb[0].mxu0
    %v2047 = vadd.f32 %v1886, %v2046
    %v2048 = vpop.f32.mrb[0].mxu0
    %v2049 = vadd.f32 %v1888, %v2048
    %2050 = vmatprep.mubr.f32.mxu0 %v224
    %2051 = vmatmul.mubr.f32.gmra.mrb[0].mxu0 %v223
    %v2052 = vpop.f32.mrb[0].mxu0
    %v2053 = vadd.f32 %v1892, %v2052
    %v2054 = vpop.f32.mrb[0].mxu0
    %v2055 = vadd.f32 %v1894, %v2054
    %2056 = vmatprep.mubr.f32.mxu0 %v232
    %2057 = vmatmul.mubr.f32.gmra.mrb[0].mxu0 %v231
    %v2058 = vpop.f32.mrb[0].mxu0
    %v2059 = vadd.f32 %v1898, %v2058
    %v2060 = vpop.f32.mrb[0].mxu0
    %v2061 = vadd.f32 %v1900, %v2060
    %2062 = vmatprep.mubr.f32.mxu0 %v240
    %2063 = vmatmul.mubr.f32.gmra.mrb[0].mxu0 %v239
    %v2064 = vpop.f32.mrb[0].mxu0
    %v2065 = vadd.f32 %v1904, %v2064
    %v2066 = vpop.f32.mrb[0].mxu0
    %v2067 = vadd.f32 %v1906, %v2066
    %2068 = vmatprep.mubr.f32.mxu0 %v248
    %2069 = vmatmul.mubr.f32.gmra.mrb[0].mxu0 %v247
    %v2070 = vpop.f32.mrb[0].mxu0
    %v2071 = vadd.f32 %v1910, %v2070
    %v2072 = vpop.f32.mrb[0].mxu0
    %v2073 = vadd.f32 %v1912, %v2072
    %2074 = vmatprep.mubr.f32.mxu0 %v256
    %2075 = vmatmul.mubr.f32.gmra.mrb[0].mxu0 %v255
    %v2076 = vpop.f32.mrb[0].mxu0
    %v2077 = vadd.f32 %v1916, %v2076
    %v2078 = vpop.f32.mrb[0].mxu0
    %v2079 = vadd.f32 %v1918, %v2078
    %2080 = vmatprep.mubr.f32.mxu0 %v264
    %2081 = vmatmul.mubr.f32.gmra.mrb[0].mxu0 %v263
    %v2082 = vpop.f32.mrb[0].mxu0
    %v2083 = vadd.f32 %v1922, %v2082
    %v2084 = vpop.f32.mrb[0].mxu0
    %v2085 = vadd.f32 %v1924, %v2084
    %2086 = vdwg.mxu0
    %v2087 = vmax.f32 %v1349, 0.0
    %v2088 = vmax.f32 %v1351, 0.0
    %v2089 = vmax.f32 %v1993, 0.0
    %v2090 = vmax.f32 %v1995, 0.0
    %v2091 = vmax.f32 %v1355, 0.0
    %v2092 = vmax.f32 %v1357, 0.0
    %v2093 = vmax.f32 %v1999, 0.0
    %v2094 = vmax.f32 %v2001, 0.0
    %v2095 = vmax.f32 %v1361, 0.0
    %v2096 = vmax.f32 %v1363, 0.0
    %v2097 = vmax.f32 %v2005, 0.0
    %v2098 = vmax.f32 %v2007, 0.0
    %v2099 = vmax.f32 %v1367, 0.0
    %v2100 = vmax.f32 %v1369, 0.0
    %v2101 = vmax.f32 %v2011, 0.0
    %v2102 = vmax.f32 %v2013, 0.0
    %v2103 = vmax.f32 %v1373, 0.0
    %v2104 = vmax.f32 %v1375, 0.0
    %v2105 = vmax.f32 %v2017, 0.0
    %v2106 = vmax.f32 %v2019, 0.0
    %v2107 = vmax.f32 %v1379, 0.0
    %v2108 = vmax.f32 %v1381, 0.0
    %v2109 = vmax.f32 %v2023, 0.0
    %v2110 = vmax.f32 %v2025, 0.0
    %v2111 = vmax.f32 %v1385, 0.0
    %v2112 = vmax.f32 %v1387, 0.0
    %v2113 = vmax.f32 %v2029, 0.0
    %v2114 = vmax.f32 %v2031, 0.0
    %v2115 = vmax.f32 %v1391, 0.0
    %v2116 = vmax.f32 %v1393, 0.0
    %v2117 = vmax.f32 %v2035, 0.0
    %v2118 = vmax.f32 %v2037, 0.0
    %v2119 = vmax.f32 %v1397, 0.0
    %v2120 = vmax.f32 %v1399, 0.0
    %v2121 = vmax.f32 %v2041, 0.0
    %v2122 = vmax.f32 %v2043, 0.0
    %v2123 = vmax.f32 %v1403, 0.0
    %v2124 = vmax.f32 %v1405, 0.0
    %v2125 = vmax.f32 %v2047, 0.0
    %v2126 = vmax.f32 %v2049, 0.0
    %v2127 = vmax.f32 %v1409, 0.0
    %v2128 = vmax.f32 %v1411, 0.0
    %v2129 = vmax.f32 %v2053, 0.0
    %v2130 = vmax.f32 %v2055, 0.0
    %v2131 = vmax.f32 %v1415, 0.0
    %v2132 = vmax.f32 %v1417, 0.0
    %v2133 = vmax.f32 %v2059, 0.0
    %v2134 = vmax.f32 %v2061, 0.0
    %v2135 = vmax.f32 %v1421, 0.0
    %v2136 = vmax.f32 %v1423, 0.0
    %v2137 = vmax.f32 %v2065, 0.0
    %v2138 = vmax.f32 %v2067, 0.0
    %v2139 = vmax.f32 %v1427, 0.0
    %v2140 = vmax.f32 %v1429, 0.0
    %v2141 = vmax.f32 %v2071, 0.0
    %v2142 = vmax.f32 %v2073, 0.0
    %v2143 = vmax.f32 %v1433, 0.0
    %v2144 = vmax.f32 %v1435, 0.0
    %v2145 = vmax.f32 %v2077, 0.0
    %v2146 = vmax.f32 %v2079, 0.0
    %v2147 = vmax.f32 %v1439, 0.0
    %v2148 = vmax.f32 %v1441, 0.0
    %v2149 = vmax.f32 %v2083, 0.0
    %v2150 = vmax.f32 %v2085, 0.0
    %v2151 = vlaneseq
    %v2152 = vshrl.u32 %v2151, 7
    %v2153 = vadd.s32 %v2152, 8
    %v2154 = vadd.s32 %v2152, 16
    %v2155 = vadd.s32 %v2152, 24
    %v2156 = vadd.s32 %v2152, 32
    %v2157 = vadd.s32 %v2152, 40
    %v2158 = vadd.s32 %v2152, 48
    %v2159 = vadd.s32 %v2152, 56
    %v2160 = vadd.s32 %v2152, 64
    %v2161 = vadd.s32 %v2152, 72
    %v2162 = vadd.s32 %v2152, 80
    %v2163 = vadd.s32 %v2152, 88
    %v2164 = vadd.s32 %v2152, 96
    %v2165 = vadd.s32 %v2152, 104
    %v2166 = vadd.s32 %v2152, 112
    %v2167 = vadd.s32 %v2152, 120
    %s2168 = smul.u32 0, 128
    %v2169 = vstv %s2168
    %v2170 = vadd.s32 %v2152, %v2169
    %v2171 = vadd.s32 %v2153, %v2169
    %v2172 = vadd.s32 %v2154, %v2169
    %v2173 = vadd.s32 %v2155, %v2169
    %v2174 = vadd.s32 %v2156, %v2169
    %v2175 = vadd.s32 %v2157, %v2169
    %v2176 = vadd.s32 %v2158, %v2169
    %v2177 = vadd.s32 %v2159, %v2169
    %v2178 = vadd.s32 %v2160, %v2169
    %v2179 = vadd.s32 %v2161, %v2169
    %v2180 = vadd.s32 %v2162, %v2169
    %v2181 = vadd.s32 %v2163, %v2169
    %v2182 = vadd.s32 %v2164, %v2169
    %v2183 = vadd.s32 %v2165, %v2169
    %v2184 = vadd.s32 %v2166, %v2169
    %v2185 = vadd.s32 %v2167, %v2169
    %vm2186 = vcmp.lt.s32.totalorder %v2170, 16
    %vm2187 = vcmp.lt.s32.totalorder %v2171, 16
    %vm2188 = vcmp.lt.s32.totalorder %v2172, 16
    %vm2189 = vcmp.lt.s32.totalorder %v2173, 16
    %vm2190 = vcmp.lt.s32.totalorder %v2174, 16
    %vm2191 = vcmp.lt.s32.totalorder %v2175, 16
    %vm2192 = vcmp.lt.s32.totalorder %v2176, 16
    %vm2193 = vcmp.lt.s32.totalorder %v2177, 16
    %vm2194 = vcmp.lt.s32.totalorder %v2178, 16
    %vm2195 = vcmp.lt.s32.totalorder %v2179, 16
    %vm2196 = vcmp.lt.s32.totalorder %v2180, 16
    %vm2197 = vcmp.lt.s32.totalorder %v2181, 16
    %vm2198 = vcmp.lt.s32.totalorder %v2182, 16
    %vm2199 = vcmp.lt.s32.totalorder %v2183, 16
    %vm2200 = vcmp.lt.s32.totalorder %v2184, 16
    %vm2201 = vcmp.lt.s32.totalorder %v2185, 16
    %v2202 = vsel %vm2186, 1, 0
    %v2203 = vsel %vm2187, 1, 0
    %v2204 = vsel %vm2188, 1, 0
    %v2205 = vsel %vm2189, 1, 0
    %v2206 = vsel %vm2190, 1, 0
    %v2207 = vsel %vm2191, 1, 0
    %v2208 = vsel %vm2192, 1, 0
    %v2209 = vsel %vm2193, 1, 0
    %v2210 = vsel %vm2194, 1, 0
    %v2211 = vsel %vm2195, 1, 0
    %v2212 = vsel %vm2196, 1, 0
    %v2213 = vsel %vm2197, 1, 0
    %v2214 = vsel %vm2198, 1, 0
    %v2215 = vsel %vm2199, 1, 0
    %v2216 = vsel %vm2200, 1, 0
    %v2217 = vsel %vm2201, 1, 0
    %vm2218 = vcmp.eq.s32.totalorder %v2202, 1
    %vm2219 = vcmp.eq.s32.totalorder %v2203, 1
    %vm2220 = vcmp.eq.s32.totalorder %v2204, 1
    %vm2221 = vcmp.eq.s32.totalorder %v2205, 1
    %vm2222 = vcmp.eq.s32.totalorder %v2206, 1
    %vm2223 = vcmp.eq.s32.totalorder %v2207, 1
    %vm2224 = vcmp.eq.s32.totalorder %v2208, 1
    %vm2225 = vcmp.eq.s32.totalorder %v2209, 1
    %vm2226 = vcmp.eq.s32.totalorder %v2210, 1
    %vm2227 = vcmp.eq.s32.totalorder %v2211, 1
    %vm2228 = vcmp.eq.s32.totalorder %v2212, 1
    %vm2229 = vcmp.eq.s32.totalorder %v2213, 1
    %vm2230 = vcmp.eq.s32.totalorder %v2214, 1
    %vm2231 = vcmp.eq.s32.totalorder %v2215, 1
    %vm2232 = vcmp.eq.s32.totalorder %v2216, 1
    %vm2233 = vcmp.eq.s32.totalorder %v2217, 1
    %v2234 = vsel %vm2218, %v2087, 0.0
    %v2235 = vsel %vm2218, %v2088, 0.0
    %v2236 = vsel %vm2218, %v2089, 0.0
    %v2237 = vsel %vm2218, %v2090, 0.0
    %v2238 = vsel %vm2219, %v2091, 0.0
    %v2239 = vsel %vm2219, %v2092, 0.0
    %v2240 = vsel %vm2219, %v2093, 0.0
    %v2241 = vsel %vm2219, %v2094, 0.0
    %v2242 = vsel %vm2220, %v2095, 0.0
    %v2243 = vsel %vm2220, %v2096, 0.0
    %v2244 = vsel %vm2220, %v2097, 0.0
    %v2245 = vsel %vm2220, %v2098, 0.0
    %v2246 = vsel %vm2221, %v2099, 0.0
    %v2247 = vsel %vm2221, %v2100, 0.0
    %v2248 = vsel %vm2221, %v2101, 0.0
    %v2249 = vsel %vm2221, %v2102, 0.0
    %v2250 = vsel %vm2222, %v2103, 0.0
    %v2251 = vsel %vm2222, %v2104, 0.0
    %v2252 = vsel %vm2222, %v2105, 0.0
    %v2253 = vsel %vm2222, %v2106, 0.0
    %v2254 = vsel %vm2223, %v2107, 0.0
    %v2255 = vsel %vm2223, %v2108, 0.0
    %v2256 = vsel %vm2223, %v2109, 0.0
    %v2257 = vsel %vm2223, %v2110, 0.0
    %v2258 = vsel %vm2224, %v2111, 0.0
    %v2259 = vsel %vm2224, %v2112, 0.0
    %v2260 = vsel %vm2224, %v2113, 0.0
    %v2261 = vsel %vm2224, %v2114, 0.0
    %v2262 = vsel %vm2225, %v2115, 0.0
    %v2263 = vsel %vm2225, %v2116, 0.0
    %v2264 = vsel %vm2225, %v2117, 0.0
    %v2265 = vsel %vm2225, %v2118, 0.0
    %v2266 = vsel %vm2226, %v2119, 0.0
    %v2267 = vsel %vm2226, %v2120, 0.0
    %v2268 = vsel %vm2226, %v2121, 0.0
    %v2269 = vsel %vm2226, %v2122, 0.0
    %v2270 = vsel %vm2227, %v2123, 0.0
    %v2271 = vsel %vm2227, %v2124, 0.0
    %v2272 = vsel %vm2227, %v2125, 0.0
    %v2273 = vsel %vm2227, %v2126, 0.0
    %v2274 = vsel %vm2228, %v2127, 0.0
    %v2275 = vsel %vm2228, %v2128, 0.0
    %v2276 = vsel %vm2228, %v2129, 0.0
    %v2277 = vsel %vm2228, %v2130, 0.0
    %v2278 = vsel %vm2229, %v2131, 0.0
    %v2279 = vsel %vm2229, %v2132, 0.0
    %v2280 = vsel %vm2229, %v2133, 0.0
    %v2281 = vsel %vm2229, %v2134, 0.0
    %v2282 = vsel %vm2230, %v2135, 0.0
    %v2283 = vsel %vm2230, %v2136, 0.0
    %v2284 = vsel %vm2230, %v2137, 0.0
    %v2285 = vsel %vm2230, %v2138, 0.0
    %v2286 = vsel %vm2231, %v2139, 0.0
    %v2287 = vsel %vm2231, %v2140, 0.0
    %v2288 = vsel %vm2231, %v2141, 0.0
    %v2289 = vsel %vm2231, %v2142, 0.0
    %v2290 = vsel %vm2232, %v2143, 0.0
    %v2291 = vsel %vm2232, %v2144, 0.0
    %v2292 = vsel %vm2232, %v2145, 0.0
    %v2293 = vsel %vm2232, %v2146, 0.0
    %v2294 = vsel %vm2233, %v2147, 0.0
    %v2295 = vsel %vm2233, %v2148, 0.0
    %v2296 = vsel %vm2233, %v2149, 0.0
    %v2297 = vsel %vm2233, %v2150, 0.0
    %v2298 = vld [vmem:[#allocation12] sm:$0xff]
    %v2299 = vld [vmem:[#allocation12 + $0x8] sm:$0xff]
    %v2300 = vld [vmem:[#allocation12 + $0x10] sm:$0xff]
    %v2301 = vld [vmem:[#allocation12 + $0x18] sm:$0xff]
    %v2302 = vld [vmem:[#allocation12 + $0x20] sm:$0xff]
    %v2303 = vld [vmem:[#allocation12 + $0x28] sm:$0xff]
    %v2304 = vld [vmem:[#allocation12 + $0x30] sm:$0xff]
    %v2305 = vld [vmem:[#allocation12 + $0x38] sm:$0xff]
    %v2306 = vld [vmem:[#allocation12 + $0x40] sm:$0xff]
    %v2307 = vld [vmem:[#allocation12 + $0x48] sm:$0xff]
    %v2308 = vld [vmem:[#allocation12 + $0x50] sm:$0xff]
    %v2309 = vld [vmem:[#allocation12 + $0x58] sm:$0xff]
    %v2310 = vld [vmem:[#allocation12 + $0x60] sm:$0xff]
    %v2311 = vld [vmem:[#allocation12 + $0x68] sm:$0xff]
    %v2312 = vld [vmem:[#allocation12 + $0x70] sm:$0xff]
    %v2313 = vld [vmem:[#allocation12 + $0x78] sm:$0xff]
    %v2314 = vld [vmem:[#allocation12 + $0x80] sm:$0xff]
    %v2315 = vld [vmem:[#allocation12 + $0x88] sm:$0xff]
    %v2316 = vld [vmem:[#allocation12 + $0x90] sm:$0xff]
    %v2317 = vld [vmem:[#allocation12 + $0x98] sm:$0xff]
    %v2318 = vld [vmem:[#allocation12 + $0xa0] sm:$0xff]
    %v2319 = vld [vmem:[#allocation12 + $0xa8] sm:$0xff]
    %v2320 = vld [vmem:[#allocation12 + $0xb0] sm:$0xff]
    %v2321 = vld [vmem:[#allocation12 + $0xb8] sm:$0xff]
    %v2322 = vld [vmem:[#allocation12 + $0xc0] sm:$0xff]
    %v2323 = vld [vmem:[#allocation12 + $0xc8] sm:$0xff]
    %v2324 = vld [vmem:[#allocation12 + $0xd0] sm:$0xff]
    %v2325 = vld [vmem:[#allocation12 + $0xd8] sm:$0xff]
    %v2326 = vld [vmem:[#allocation12 + $0xe0] sm:$0xff]
    %v2327 = vld [vmem:[#allocation12 + $0xe8] sm:$0xff]
    %v2328 = vld [vmem:[#allocation12 + $0xf0] sm:$0xff]
    %v2329 = vld [vmem:[#allocation12 + $0xf8] sm:$0xff]
    %v2330 = vld [vmem:[#allocation12 + $0x100] sm:$0xff]
    %v2331 = vld [vmem:[#allocation12 + $0x108] sm:$0xff]
    %v2332 = vld [vmem:[#allocation12 + $0x110] sm:$0xff]
    %v2333 = vld [vmem:[#allocation12 + $0x118] sm:$0xff]
    %v2334 = vld [vmem:[#allocation12 + $0x120] sm:$0xff]
    %v2335 = vld [vmem:[#allocation12 + $0x128] sm:$0xff]
    %v2336 = vld [vmem:[#allocation12 + $0x130] sm:$0xff]
    %v2337 = vld [vmem:[#allocation12 + $0x138] sm:$0xff]
    %v2338 = vld [vmem:[#allocation12 + $0x140] sm:$0xff]
    %v2339 = vld [vmem:[#allocation12 + $0x148] sm:$0xff]
    %v2340 = vld [vmem:[#allocation12 + $0x150] sm:$0xff]
    %v2341 = vld [vmem:[#allocation12 + $0x158] sm:$0xff]
    %v2342 = vld [vmem:[#allocation12 + $0x160] sm:$0xff]
    %v2343 = vld [vmem:[#allocation12 + $0x168] sm:$0xff]
    %v2344 = vld [vmem:[#allocation12 + $0x170] sm:$0xff]
    %v2345 = vld [vmem:[#allocation12 + $0x178] sm:$0xff]
    %v2346 = vld [vmem:[#allocation12 + $0x180] sm:$0xff]
    %v2347 = vld [vmem:[#allocation12 + $0x188] sm:$0xff]
    %v2348 = vld [vmem:[#allocation12 + $0x190] sm:$0xff]
    %v2349 = vld [vmem:[#allocation12 + $0x198] sm:$0xff]
    %v2350 = vld [vmem:[#allocation12 + $0x1a0] sm:$0xff]
    %v2351 = vld [vmem:[#allocation12 + $0x1a8] sm:$0xff]
    %v2352 = vld [vmem:[#allocation12 + $0x1b0] sm:$0xff]
    %v2353 = vld [vmem:[#allocation12 + $0x1b8] sm:$0xff]
    %v2354 = vld [vmem:[#allocation12 + $0x1c0] sm:$0xff]
    %v2355 = vld [vmem:[#allocation12 + $0x1c8] sm:$0xff]
    %v2356 = vld [vmem:[#allocation12 + $0x1d0] sm:$0xff]
    %v2357 = vld [vmem:[#allocation12 + $0x1d8] sm:$0xff]
    %v2358 = vld [vmem:[#allocation12 + $0x1e0] sm:$0xff]
    %v2359 = vld [vmem:[#allocation12 + $0x1e8] sm:$0xff]
    %v2360 = vld [vmem:[#allocation12 + $0x1f0] sm:$0xff]
    %v2361 = vld [vmem:[#allocation12 + $0x1f8] sm:$0xff]
    %v2362 = vld [vmem:[#allocation12 + $0x200] sm:$0xff]
    %v2363 = vld [vmem:[#allocation12 + $0x208] sm:$0xff]
    %v2364 = vld [vmem:[#allocation12 + $0x210] sm:$0xff]
    %v2365 = vld [vmem:[#allocation12 + $0x218] sm:$0xff]
    %v2366 = vld [vmem:[#allocation12 + $0x220] sm:$0xff]
    %v2367 = vld [vmem:[#allocation12 + $0x228] sm:$0xff]
    %v2368 = vld [vmem:[#allocation12 + $0x230] sm:$0xff]
    %v2369 = vld [vmem:[#allocation12 + $0x238] sm:$0xff]
    %v2370 = vld [vmem:[#allocation12 + $0x240] sm:$0xff]
    %v2371 = vld [vmem:[#allocation12 + $0x248] sm:$0xff]
    %v2372 = vld [vmem:[#allocation12 + $0x250] sm:$0xff]
    %v2373 = vld [vmem:[#allocation12 + $0x258] sm:$0xff]
    %v2374 = vld [vmem:[#allocation12 + $0x260] sm:$0xff]
    %v2375 = vld [vmem:[#allocation12 + $0x268] sm:$0xff]
    %v2376 = vld [vmem:[#allocation12 + $0x270] sm:$0xff]
    %v2377 = vld [vmem:[#allocation12 + $0x278] sm:$0xff]
    %v2378 = vld [vmem:[#allocation12 + $0x280] sm:$0xff]
    %v2379 = vld [vmem:[#allocation12 + $0x288] sm:$0xff]
    %v2380 = vld [vmem:[#allocation12 + $0x290] sm:$0xff]
    %v2381 = vld [vmem:[#allocation12 + $0x298] sm:$0xff]
    %v2382 = vld [vmem:[#allocation12 + $0x2a0] sm:$0xff]
    %v2383 = vld [vmem:[#allocation12 + $0x2a8] sm:$0xff]
    %v2384 = vld [vmem:[#allocation12 + $0x2b0] sm:$0xff]
    %v2385 = vld [vmem:[#allocation12 + $0x2b8] sm:$0xff]
    %v2386 = vld [vmem:[#allocation12 + $0x2c0] sm:$0xff]
    %v2387 = vld [vmem:[#allocation12 + $0x2c8] sm:$0xff]
    %v2388 = vld [vmem:[#allocation12 + $0x2d0] sm:$0xff]
    %v2389 = vld [vmem:[#allocation12 + $0x2d8] sm:$0xff]
    %v2390 = vld [vmem:[#allocation12 + $0x2e0] sm:$0xff]
    %v2391 = vld [vmem:[#allocation12 + $0x2e8] sm:$0xff]
    %v2392 = vld [vmem:[#allocation12 + $0x2f0] sm:$0xff]
    %v2393 = vld [vmem:[#allocation12 + $0x2f8] sm:$0xff]
    %v2394 = vld [vmem:[#allocation12 + $0x300] sm:$0xff]
    %v2395 = vld [vmem:[#allocation12 + $0x308] sm:$0xff]
    %v2396 = vld [vmem:[#allocation12 + $0x310] sm:$0xff]
    %v2397 = vld [vmem:[#allocation12 + $0x318] sm:$0xff]
    %v2398 = vld [vmem:[#allocation12 + $0x320] sm:$0xff]
    %v2399 = vld [vmem:[#allocation12 + $0x328] sm:$0xff]
    %v2400 = vld [vmem:[#allocation12 + $0x330] sm:$0xff]
    %v2401 = vld [vmem:[#allocation12 + $0x338] sm:$0xff]
    %v2402 = vld [vmem:[#allocation12 + $0x340] sm:$0xff]
    %v2403 = vld [vmem:[#allocation12 + $0x348] sm:$0xff]
    %v2404 = vld [vmem:[#allocation12 + $0x350] sm:$0xff]
    %v2405 = vld [vmem:[#allocation12 + $0x358] sm:$0xff]
    %v2406 = vld [vmem:[#allocation12 + $0x360] sm:$0xff]
    %v2407 = vld [vmem:[#allocation12 + $0x368] sm:$0xff]
    %v2408 = vld [vmem:[#allocation12 + $0x370] sm:$0xff]
    %v2409 = vld [vmem:[#allocation12 + $0x378] sm:$0xff]
    %v2410 = vld [vmem:[#allocation12 + $0x380] sm:$0xff]
    %v2411 = vld [vmem:[#allocation12 + $0x388] sm:$0xff]
    %v2412 = vld [vmem:[#allocation12 + $0x390] sm:$0xff]
    %v2413 = vld [vmem:[#allocation12 + $0x398] sm:$0xff]
    %v2414 = vld [vmem:[#allocation12 + $0x3a0] sm:$0xff]
    %v2415 = vld [vmem:[#allocation12 + $0x3a8] sm:$0xff]
    %v2416 = vld [vmem:[#allocation12 + $0x3b0] sm:$0xff]
    %v2417 = vld [vmem:[#allocation12 + $0x3b8] sm:$0xff]
    %v2418 = vld [vmem:[#allocation12 + $0x3c0] sm:$0xff]
    %v2419 = vld [vmem:[#allocation12 + $0x3c8] sm:$0xff]
    %v2420 = vld [vmem:[#allocation12 + $0x3d0] sm:$0xff]
    %v2421 = vld [vmem:[#allocation12 + $0x3d8] sm:$0xff]
    %v2422 = vld [vmem:[#allocation12 + $0x3e0] sm:$0xff]
    %v2423 = vld [vmem:[#allocation12 + $0x3e8] sm:$0xff]
    %v2424 = vld [vmem:[#allocation12 + $0x3f0] sm:$0xff]
    %v2425 = vld [vmem:[#allocation12 + $0x3f8] sm:$0xff]
    %v2426 = vld [vmem:[#allocation14] sm:$0x3]
    %v2428 = vlaneseq
    %v2429 = vshrl.u32 %v2428, 7
    %v2430 = vsub.s32 0, %v2429
    %v2431 = vrot.slane %v2426, %v2430
    %v2432 = vlaneseq
    %v2433 = vshrl.u32 %v2432, 7
    %v2434 = vsub.s32 1, %v2433
    %v2435 = vrot.slane %v2426, %v2434
    %2438 = vmatprep.subr.mxu0 %v2299
    %2439 = vmatpush1.msra.mxu0 %v2298
    %2440 = vmatprep.subr.mxu0 %v2301
    %2441 = vmatpush1.msra.mxu0 %v2300
    %2442 = vmatprep.subr.mxu0 %v2303
    %2443 = vmatpush1.msra.mxu0 %v2302
    %2444 = vmatprep.subr.mxu0 %v2305
    %2445 = vmatpush1.msra.mxu0 %v2304
    %2446 = vmatprep.subr.mxu0 %v2307
    %2447 = vmatpush1.msra.mxu0 %v2306
    %2448 = vmatprep.subr.mxu0 %v2309
    %2449 = vmatpush1.msra.mxu0 %v2308
    %2450 = vmatprep.subr.mxu0 %v2311
    %2451 = vmatpush1.msra.mxu0 %v2310
    %2452 = vmatprep.subr.mxu0 %v2313
    %2453 = vmatpush1.msra.mxu0 %v2312
    %2454 = vmatprep.subr.mxu0 %v2315
    %2455 = vmatpush1.msra.mxu0 %v2314
    %2456 = vmatprep.subr.mxu0 %v2317
    %2457 = vmatpush1.msra.mxu0 %v2316
    %2458 = vmatprep.subr.mxu0 %v2319
    %2459 = vmatpush1.msra.mxu0 %v2318
    %2460 = vmatprep.subr.mxu0 %v2321
    %2461 = vmatpush1.msra.mxu0 %v2320
    %2462 = vmatprep.subr.mxu0 %v2323
    %2463 = vmatpush1.msra.mxu0 %v2322
    %2464 = vmatprep.subr.mxu0 %v2325
    %2465 = vmatpush1.msra.mxu0 %v2324
    %2466 = vmatprep.subr.mxu0 %v2327
    %2467 = vmatpush1.msra.mxu0 %v2326
    %2468 = vmatprep.subr.mxu0 %v2329
    %2469 = vmatpush1.msra.mxu0 %v2328
    %2470 = vmatprep.subr.mxu0 %v2331
    %2471 = vmatpush1.msra.mxu0 %v2330
    %2472 = vmatprep.subr.mxu0 %v2333
    %2473 = vmatpush1.msra.mxu0 %v2332
    %2474 = vmatprep.subr.mxu0 %v2335
    %2475 = vmatpush1.msra.mxu0 %v2334
    %2476 = vmatprep.subr.mxu0 %v2337
    %2477 = vmatpush1.msra.mxu0 %v2336
    %2478 = vmatprep.subr.mxu0 %v2339
    %2479 = vmatpush1.msra.mxu0 %v2338
    %2480 = vmatprep.subr.mxu0 %v2341
    %2481 = vmatpush1.msra.mxu0 %v2340
    %2482 = vmatprep.subr.mxu0 %v2343
    %2483 = vmatpush1.msra.mxu0 %v2342
    %2484 = vmatprep.subr.mxu0 %v2345
    %2485 = vmatpush1.msra.mxu0 %v2344
    %2486 = vmatprep.subr.mxu0 %v2347
    %2487 = vmatpush1.msra.mxu0 %v2346
    %2488 = vmatprep.subr.mxu0 %v2349
    %2489 = vmatpush1.msra.mxu0 %v2348
    %2490 = vmatprep.subr.mxu0 %v2351
    %2491 = vmatpush1.msra.mxu0 %v2350
    %2492 = vmatprep.subr.mxu0 %v2353
    %2493 = vmatpush1.msra.mxu0 %v2352
    %2494 = vmatprep.subr.mxu0 %v2355
    %2495 = vmatpush1.msra.mxu0 %v2354
    %2496 = vmatprep.subr.mxu0 %v2357
    %2497 = vmatpush1.msra.mxu0 %v2356
    %2498 = vmatprep.subr.mxu0 %v2359
    %2499 = vmatpush1.msra.mxu0 %v2358
    %2500 = vmatprep.subr.mxu0 %v2361
    %2501 = vmatpush1.msra.mxu0 %v2360
    %2502 = vmatprep.mubr.f32.mxu0 %v2235
    %2503 = vmatmul.mubr.f32.gmra.mrb[0].mxu0 %v2234
    %v2504 = vpop.f32.mrb[0].mxu0
    %v2505 = vadd.f32 %v2431, %v2504
    %v2506 = vpop.f32.mrb[0].mxu0
    %v2507 = vadd.f32 %v2435, %v2506
    %2508 = vmatprep.mubr.f32.mxu0 %v2239
    %2509 = vmatmul.mubr.f32.gmra.mrb[0].mxu0 %v2238
    %v2510 = vpop.f32.mrb[0].mxu0
    %v2511 = vadd.f32 %v2431, %v2510
    %v2512 = vpop.f32.mrb[0].mxu0
    %v2513 = vadd.f32 %v2435, %v2512
    %2514 = vmatprep.mubr.f32.mxu0 %v2243
    %2515 = vmatmul.mubr.f32.gmra.mrb[0].mxu0 %v2242
    %v2516 = vpop.f32.mrb[0].mxu0
    %v2517 = vadd.f32 %v2431, %v2516
    %v2518 = vpop.f32.mrb[0].mxu0
    %v2519 = vadd.f32 %v2435, %v2518
    %2520 = vmatprep.mubr.f32.mxu0 %v2247
    %2521 = vmatmul.mubr.f32.gmra.mrb[0].mxu0 %v2246
    %v2522 = vpop.f32.mrb[0].mxu0
    %v2523 = vadd.f32 %v2431, %v2522
    %v2524 = vpop.f32.mrb[0].mxu0
    %v2525 = vadd.f32 %v2435, %v2524
    %2526 = vmatprep.mubr.f32.mxu0 %v2251
    %2527 = vmatmul.mubr.f32.gmra.mrb[0].mxu0 %v2250
    %v2528 = vpop.f32.mrb[0].mxu0
    %v2529 = vadd.f32 %v2431, %v2528
    %v2530 = vpop.f32.mrb[0].mxu0
    %v2531 = vadd.f32 %v2435, %v2530
    %2532 = vmatprep.mubr.f32.mxu0 %v2255
    %2533 = vmatmul.mubr.f32.gmra.mrb[0].mxu0 %v2254
    %v2534 = vpop.f32.mrb[0].mxu0
    %v2535 = vadd.f32 %v2431, %v2534
    %v2536 = vpop.f32.mrb[0].mxu0
    %v2537 = vadd.f32 %v2435, %v2536
    %2538 = vmatprep.mubr.f32.mxu0 %v2259
    %2539 = vmatmul.mubr.f32.gmra.mrb[0].mxu0 %v2258
    %v2540 = vpop.f32.mrb[0].mxu0
    %v2541 = vadd.f32 %v2431, %v2540
    %v2542 = vpop.f32.mrb[0].mxu0
    %v2543 = vadd.f32 %v2435, %v2542
    %2544 = vmatprep.mubr.f32.mxu0 %v2263
    %2545 = vmatmul.mubr.f32.gmra.mrb[0].mxu0 %v2262
    %v2546 = vpop.f32.mrb[0].mxu0
    %v2547 = vadd.f32 %v2431, %v2546
    %v2548 = vpop.f32.mrb[0].mxu0
    %v2549 = vadd.f32 %v2435, %v2548
    %2550 = vmatprep.mubr.f32.mxu0 %v2267
    %2551 = vmatmul.mubr.f32.gmra.mrb[0].mxu0 %v2266
    %v2552 = vpop.f32.mrb[0].mxu0
    %v2553 = vadd.f32 %v2431, %v2552
    %v2554 = vpop.f32.mrb[0].mxu0
    %v2555 = vadd.f32 %v2435, %v2554
    %2556 = vmatprep.mubr.f32.mxu0 %v2271
    %2557 = vmatmul.mubr.f32.gmra.mrb[0].mxu0 %v2270
    %v2558 = vpop.f32.mrb[0].mxu0
    %v2559 = vadd.f32 %v2431, %v2558
    %v2560 = vpop.f32.mrb[0].mxu0
    %v2561 = vadd.f32 %v2435, %v2560
    %2562 = vmatprep.mubr.f32.mxu0 %v2275
    %2563 = vmatmul.mubr.f32.gmra.mrb[0].mxu0 %v2274
    %v2564 = vpop.f32.mrb[0].mxu0
    %v2565 = vadd.f32 %v2431, %v2564
    %v2566 = vpop.f32.mrb[0].mxu0
    %v2567 = vadd.f32 %v2435, %v2566
    %2568 = vmatprep.mubr.f32.mxu0 %v2279
    %2569 = vmatmul.mubr.f32.gmra.mrb[0].mxu0 %v2278
    %v2570 = vpop.f32.mrb[0].mxu0
    %v2571 = vadd.f32 %v2431, %v2570
    %v2572 = vpop.f32.mrb[0].mxu0
    %v2573 = vadd.f32 %v2435, %v2572
    %2574 = vmatprep.mubr.f32.mxu0 %v2283
    %2575 = vmatmul.mubr.f32.gmra.mrb[0].mxu0 %v2282
    %v2576 = vpop.f32.mrb[0].mxu0
    %v2577 = vadd.f32 %v2431, %v2576
    %v2578 = vpop.f32.mrb[0].mxu0
    %v2579 = vadd.f32 %v2435, %v2578
    %2580 = vmatprep.mubr.f32.mxu0 %v2287
    %2581 = vmatmul.mubr.f32.gmra.mrb[0].mxu0 %v2286
    %v2582 = vpop.f32.mrb[0].mxu0
    %v2583 = vadd.f32 %v2431, %v2582
    %v2584 = vpop.f32.mrb[0].mxu0
    %v2585 = vadd.f32 %v2435, %v2584
    %2586 = vmatprep.mubr.f32.mxu0 %v2291
    %2587 = vmatmul.mubr.f32.gmra.mrb[0].mxu0 %v2290
    %v2588 = vpop.f32.mrb[0].mxu0
    %v2589 = vadd.f32 %v2431, %v2588
    %v2590 = vpop.f32.mrb[0].mxu0
    %v2591 = vadd.f32 %v2435, %v2590
    %2592 = vmatprep.mubr.f32.mxu0 %v2295
    %2593 = vmatmul.mubr.f32.gmra.mrb[0].mxu0 %v2294
    %v2594 = vpop.f32.mrb[0].mxu0
    %v2595 = vadd.f32 %v2431, %v2594
    %v2596 = vpop.f32.mrb[0].mxu0
    %v2597 = vadd.f32 %v2435, %v2596
    %2598 = vdwg.mxu0
    %2599 = vmatprep.subr.mxu0 %v2363
    %2600 = vmatpush1.msra.mxu0 %v2362
    %2601 = vmatprep.subr.mxu0 %v2365
    %2602 = vmatpush1.msra.mxu0 %v2364
    %2603 = vmatprep.subr.mxu0 %v2367
    %2604 = vmatpush1.msra.mxu0 %v2366
    %2605 = vmatprep.subr.mxu0 %v2369
    %2606 = vmatpush1.msra.mxu0 %v2368
    %2607 = vmatprep.subr.mxu0 %v2371
    %2608 = vmatpush1.msra.mxu0 %v2370
    %2609 = vmatprep.subr.mxu0 %v2373
    %2610 = vmatpush1.msra.mxu0 %v2372
    %2611 = vmatprep.subr.mxu0 %v2375
    %2612 = vmatpush1.msra.mxu0 %v2374
    %2613 = vmatprep.subr.mxu0 %v2377
    %2614 = vmatpush1.msra.mxu0 %v2376
    %2615 = vmatprep.subr.mxu0 %v2379
    %2616 = vmatpush1.msra.mxu0 %v2378
    %2617 = vmatprep.subr.mxu0 %v2381
    %2618 = vmatpush1.msra.mxu0 %v2380
    %2619 = vmatprep.subr.mxu0 %v2383
    %2620 = vmatpush1.msra.mxu0 %v2382
    %2621 = vmatprep.subr.mxu0 %v2385
    %2622 = vmatpush1.msra.mxu0 %v2384
    %2623 = vmatprep.subr.mxu0 %v2387
    %2624 = vmatpush1.msra.mxu0 %v2386
    %2625 = vmatprep.subr.mxu0 %v2389
    %2626 = vmatpush1.msra.mxu0 %v2388
    %2627 = vmatprep.subr.mxu0 %v2391
    %2628 = vmatpush1.msra.mxu0 %v2390
    %2629 = vmatprep.subr.mxu0 %v2393
    %2630 = vmatpush1.msra.mxu0 %v2392
    %2631 = vmatprep.subr.mxu0 %v2395
    %2632 = vmatpush1.msra.mxu0 %v2394
    %2633 = vmatprep.subr.mxu0 %v2397
    %2634 = vmatpush1.msra.mxu0 %v2396
    %2635 = vmatprep.subr.mxu0 %v2399
    %2636 = vmatpush1.msra.mxu0 %v2398
    %2637 = vmatprep.subr.mxu0 %v2401
    %2638 = vmatpush1.msra.mxu0 %v2400
    %2639 = vmatprep.subr.mxu0 %v2403
    %2640 = vmatpush1.msra.mxu0 %v2402
    %2641 = vmatprep.subr.mxu0 %v2405
    %2642 = vmatpush1.msra.mxu0 %v2404
    %2643 = vmatprep.subr.mxu0 %v2407
    %2644 = vmatpush1.msra.mxu0 %v2406
    %2645 = vmatprep.subr.mxu0 %v2409
    %2646 = vmatpush1.msra.mxu0 %v2408
    %2647 = vmatprep.subr.mxu0 %v2411
    %2648 = vmatpush1.msra.mxu0 %v2410
    %2649 = vmatprep.subr.mxu0 %v2413
    %2650 = vmatpush1.msra.mxu0 %v2412
    %2651 = vmatprep.subr.mxu0 %v2415
    %2652 = vmatpush1.msra.mxu0 %v2414
    %2653 = vmatprep.subr.mxu0 %v2417
    %2654 = vmatpush1.msra.mxu0 %v2416
    %2655 = vmatprep.subr.mxu0 %v2419
    %2656 = vmatpush1.msra.mxu0 %v2418
    %2657 = vmatprep.subr.mxu0 %v2421
    %2658 = vmatpush1.msra.mxu0 %v2420
    %2659 = vmatprep.subr.mxu0 %v2423
    %2660 = vmatpush1.msra.mxu0 %v2422
    %2661 = vmatprep.subr.mxu0 %v2425
    %2662 = vmatpush1.msra.mxu0 %v2424
    %2663 = vmatprep.mubr.f32.mxu0 %v2237
    %2664 = vmatmul.mubr.f32.gmra.mrb[0].mxu0 %v2236
    %v2665 = vpop.f32.mrb[0].mxu0
    %v2666 = vadd.f32 %v2505, %v2665
    %v2667 = vpop.f32.mrb[0].mxu0
    %v2668 = vadd.f32 %v2507, %v2667
    %2669 = vmatprep.mubr.f32.mxu0 %v2241
    %2670 = vmatmul.mubr.f32.gmra.mrb[0].mxu0 %v2240
    %v2671 = vpop.f32.mrb[0].mxu0
    %v2672 = vadd.f32 %v2511, %v2671
    %v2673 = vpop.f32.mrb[0].mxu0
    %v2674 = vadd.f32 %v2513, %v2673
    %2675 = vmatprep.mubr.f32.mxu0 %v2245
    %2676 = vmatmul.mubr.f32.gmra.mrb[0].mxu0 %v2244
    %v2677 = vpop.f32.mrb[0].mxu0
    %v2678 = vadd.f32 %v2517, %v2677
    %v2679 = vpop.f32.mrb[0].mxu0
    %v2680 = vadd.f32 %v2519, %v2679
    %2681 = vmatprep.mubr.f32.mxu0 %v2249
    %2682 = vmatmul.mubr.f32.gmra.mrb[0].mxu0 %v2248
    %v2683 = vpop.f32.mrb[0].mxu0
    %v2684 = vadd.f32 %v2523, %v2683
    %v2685 = vpop.f32.mrb[0].mxu0
    %v2686 = vadd.f32 %v2525, %v2685
    %2687 = vmatprep.mubr.f32.mxu0 %v2253
    %2688 = vmatmul.mubr.f32.gmra.mrb[0].mxu0 %v2252
    %v2689 = vpop.f32.mrb[0].mxu0
    %v2690 = vadd.f32 %v2529, %v2689
    %v2691 = vpop.f32.mrb[0].mxu0
    %v2692 = vadd.f32 %v2531, %v2691
    %2693 = vmatprep.mubr.f32.mxu0 %v2257
    %2694 = vmatmul.mubr.f32.gmra.mrb[0].mxu0 %v2256
    %v2695 = vpop.f32.mrb[0].mxu0
    %v2696 = vadd.f32 %v2535, %v2695
    %v2697 = vpop.f32.mrb[0].mxu0
    %v2698 = vadd.f32 %v2537, %v2697
    %2699 = vmatprep.mubr.f32.mxu0 %v2261
    %2700 = vmatmul.mubr.f32.gmra.mrb[0].mxu0 %v2260
    %v2701 = vpop.f32.mrb[0].mxu0
    %v2702 = vadd.f32 %v2541, %v2701
    %v2703 = vpop.f32.mrb[0].mxu0
    %v2704 = vadd.f32 %v2543, %v2703
    %2705 = vmatprep.mubr.f32.mxu0 %v2265
    %2706 = vmatmul.mubr.f32.gmra.mrb[0].mxu0 %v2264
    %v2707 = vpop.f32.mrb[0].mxu0
    %v2708 = vadd.f32 %v2547, %v2707
    %v2709 = vpop.f32.mrb[0].mxu0
    %v2710 = vadd.f32 %v2549, %v2709
    %2711 = vmatprep.mubr.f32.mxu0 %v2269
    %2712 = vmatmul.mubr.f32.gmra.mrb[0].mxu0 %v2268
    %v2713 = vpop.f32.mrb[0].mxu0
    %v2714 = vadd.f32 %v2553, %v2713
    %v2715 = vpop.f32.mrb[0].mxu0
    %v2716 = vadd.f32 %v2555, %v2715
    %2717 = vmatprep.mubr.f32.mxu0 %v2273
    %2718 = vmatmul.mubr.f32.gmra.mrb[0].mxu0 %v2272
    %v2719 = vpop.f32.mrb[0].mxu0
    %v2720 = vadd.f32 %v2559, %v2719
    %v2721 = vpop.f32.mrb[0].mxu0
    %v2722 = vadd.f32 %v2561, %v2721
    %2723 = vmatprep.mubr.f32.mxu0 %v2277
    %2724 = vmatmul.mubr.f32.gmra.mrb[0].mxu0 %v2276
    %v2725 = vpop.f32.mrb[0].mxu0
    %v2726 = vadd.f32 %v2565, %v2725
    %v2727 = vpop.f32.mrb[0].mxu0
    %v2728 = vadd.f32 %v2567, %v2727
    %2729 = vmatprep.mubr.f32.mxu0 %v2281
    %2730 = vmatmul.mubr.f32.gmra.mrb[0].mxu0 %v2280
    %v2731 = vpop.f32.mrb[0].mxu0
    %v2732 = vadd.f32 %v2571, %v2731
    %v2733 = vpop.f32.mrb[0].mxu0
    %v2734 = vadd.f32 %v2573, %v2733
    %2735 = vmatprep.mubr.f32.mxu0 %v2285
    %2736 = vmatmul.mubr.f32.gmra.mrb[0].mxu0 %v2284
    %v2737 = vpop.f32.mrb[0].mxu0
    %v2738 = vadd.f32 %v2577, %v2737
    %v2739 = vpop.f32.mrb[0].mxu0
    %v2740 = vadd.f32 %v2579, %v2739
    %2741 = vmatprep.mubr.f32.mxu0 %v2289
    %2742 = vmatmul.mubr.f32.gmra.mrb[0].mxu0 %v2288
    %v2743 = vpop.f32.mrb[0].mxu0
    %v2744 = vadd.f32 %v2583, %v2743
    %v2745 = vpop.f32.mrb[0].mxu0
    %v2746 = vadd.f32 %v2585, %v2745
    %2747 = vmatprep.mubr.f32.mxu0 %v2293
    %2748 = vmatmul.mubr.f32.gmra.mrb[0].mxu0 %v2292
    %v2749 = vpop.f32.mrb[0].mxu0
    %v2750 = vadd.f32 %v2589, %v2749
    %v2751 = vpop.f32.mrb[0].mxu0
    %v2752 = vadd.f32 %v2591, %v2751
    %2753 = vmatprep.mubr.f32.mxu0 %v2297
    %2754 = vmatmul.mubr.f32.gmra.mrb[0].mxu0 %v2296
    %v2755 = vpop.f32.mrb[0].mxu0
    %v2756 = vadd.f32 %v2595, %v2755
    %v2757 = vpop.f32.mrb[0].mxu0
    %v2758 = vadd.f32 %v2597, %v2757
    %2759 = vdwg.mxu0
    %v2760 = vtanh.pop %v2666
    %v2761 = vtanh.pop %v2672
    %v2762 = vtanh.pop %v2678
    %v2763 = vtanh.pop %v2684
    %v2764 = vtanh.pop %v2690
    %v2765 = vtanh.pop %v2696
    %v2766 = vtanh.pop %v2702
    %v2767 = vtanh.pop %v2708
    %v2768 = vtanh.pop %v2714
    %v2769 = vtanh.pop %v2720
    %v2770 = vtanh.pop %v2726
    %v2771 = vtanh.pop %v2732
    %v2772 = vtanh.pop %v2738
    %v2773 = vtanh.pop %v2744
    %v2774 = vtanh.pop %v2750
    %v2775 = vtanh.pop %v2756
    %v2776 = vxor.u32 %v2668, 2147483648
    %v2777 = vxor.u32 %v2674, 2147483648
    %v2778 = vxor.u32 %v2680, 2147483648
    %v2779 = vxor.u32 %v2686, 2147483648
    %v2780 = vxor.u32 %v2692, 2147483648
    %v2781 = vxor.u32 %v2698, 2147483648
    %v2782 = vxor.u32 %v2704, 2147483648
    %v2783 = vxor.u32 %v2710, 2147483648
    %v2784 = vxor.u32 %v2716, 2147483648
    %v2785 = vxor.u32 %v2722, 2147483648
    %v2786 = vxor.u32 %v2728, 2147483648
    %v2787 = vxor.u32 %v2734, 2147483648
    %v2788 = vxor.u32 %v2740, 2147483648
    %v2789 = vxor.u32 %v2746, 2147483648
    %v2790 = vxor.u32 %v2752, 2147483648
    %v2791 = vxor.u32 %v2758, 2147483648
    %v2792 = vmul.f32 %v2776, 1.442695
    %v2793 = vpow.pop %v2792
    %v2794 = vmul.f32 %v2777, 1.442695
    %v2795 = vpow.pop %v2794
    %v2796 = vmul.f32 %v2778, 1.442695
    %v2797 = vpow.pop %v2796
    %v2798 = vmul.f32 %v2779, 1.442695
    %v2799 = vpow.pop %v2798
    %v2800 = vmul.f32 %v2780, 1.442695
    %v2801 = vpow.pop %v2800
    %v2802 = vmul.f32 %v2781, 1.442695
    %v2803 = vpow.pop %v2802
    %v2804 = vmul.f32 %v2782, 1.442695
    %v2805 = vpow.pop %v2804
    %v2806 = vmul.f32 %v2783, 1.442695
    %v2807 = vpow.pop %v2806
    %v2808 = vmul.f32 %v2784, 1.442695
    %v2809 = vpow.pop %v2808
    %v2810 = vmul.f32 %v2785, 1.442695
    %v2811 = vpow.pop %v2810
    %v2812 = vmul.f32 %v2786, 1.442695
    %v2813 = vpow.pop %v2812
    %v2814 = vmul.f32 %v2787, 1.442695
    %v2815 = vpow.pop %v2814
    %v2816 = vmul.f32 %v2788, 1.442695
    %v2817 = vpow.pop %v2816
    %v2818 = vmul.f32 %v2789, 1.442695
    %v2819 = vpow.pop %v2818
    %v2820 = vmul.f32 %v2790, 1.442695
    %v2821 = vpow.pop %v2820
    %v2822 = vmul.f32 %v2791, 1.442695
    %v2823 = vpow.pop %v2822
    %v2824 = vadd.f32 %v2793, 1.0
    %v2825 = vadd.f32 %v2795, 1.0
    %v2826 = vadd.f32 %v2797, 1.0
    %v2827 = vadd.f32 %v2799, 1.0
    %v2828 = vadd.f32 %v2801, 1.0
    %v2829 = vadd.f32 %v2803, 1.0
    %v2830 = vadd.f32 %v2805, 1.0
    %v2831 = vadd.f32 %v2807, 1.0
    %v2832 = vadd.f32 %v2809, 1.0
    %v2833 = vadd.f32 %v2811, 1.0
    %v2834 = vadd.f32 %v2813, 1.0
    %v2835 = vadd.f32 %v2815, 1.0
    %v2836 = vadd.f32 %v2817, 1.0
    %v2837 = vadd.f32 %v2819, 1.0
    %v2838 = vadd.f32 %v2821, 1.0
    %v2839 = vadd.f32 %v2823, 1.0
    %v2840 = vrcp.pop %v2824
    %v2841 = vmul.f32 1.0, %v2840
    %v2842 = vrcp.pop %v2825
    %v2843 = vmul.f32 1.0, %v2842
    %v2844 = vrcp.pop %v2826
    %v2845 = vmul.f32 1.0, %v2844
    %v2846 = vrcp.pop %v2827
    %v2847 = vmul.f32 1.0, %v2846
    %v2848 = vrcp.pop %v2828
    %v2849 = vmul.f32 1.0, %v2848
    %v2850 = vrcp.pop %v2829
    %v2851 = vmul.f32 1.0, %v2850
    %v2852 = vrcp.pop %v2830
    %v2853 = vmul.f32 1.0, %v2852
    %v2854 = vrcp.pop %v2831
    %v2855 = vmul.f32 1.0, %v2854
    %v2856 = vrcp.pop %v2832
    %v2857 = vmul.f32 1.0, %v2856
    %v2858 = vrcp.pop %v2833
    %v2859 = vmul.f32 1.0, %v2858
    %v2860 = vrcp.pop %v2834
    %v2861 = vmul.f32 1.0, %v2860
    %v2862 = vrcp.pop %v2835
    %v2863 = vmul.f32 1.0, %v2862
    %v2864 = vrcp.pop %v2836
    %v2865 = vmul.f32 1.0, %v2864
    %v2866 = vrcp.pop %v2837
    %v2867 = vmul.f32 1.0, %v2866
    %v2868 = vrcp.pop %v2838
    %v2869 = vmul.f32 1.0, %v2868
    %v2870 = vrcp.pop %v2839
    %v2871 = vmul.f32 1.0, %v2870
    %v2872 = vmul.f32 %v2760, %v2841
    %v2873 = vmul.f32 %v2761, %v2843
    %v2874 = vmul.f32 %v2762, %v2845
    %v2875 = vmul.f32 %v2763, %v2847
    %v2876 = vmul.f32 %v2764, %v2849
    %v2877 = vmul.f32 %v2765, %v2851
    %v2878 = vmul.f32 %v2766, %v2853
    %v2879 = vmul.f32 %v2767, %v2855
    %v2880 = vmul.f32 %v2768, %v2857
    %v2881 = vmul.f32 %v2769, %v2859
    %v2882 = vmul.f32 %v2770, %v2861
    %v2883 = vmul.f32 %v2771, %v2863
    %v2884 = vmul.f32 %v2772, %v2865
    %v2885 = vmul.f32 %v2773, %v2867
    %v2886 = vmul.f32 %v2774, %v2869
    %v2887 = vmul.f32 %v2775, %v2871
    %v2888 = vld [vmem:[#allocation15] sm:$0x1]
    %v2889 = vld [vmem:[#allocation5] sm:$0x1]
    %2891 = vset.pattern.permute.xlu0 0
    %2892 = vperm.xlu0 %2891, %v2889
    %v2893 = vpop.permute.xlu0 %2892
    %v2895 = vlaneseq
    %v2896 = vshrl.u32 %v2895, 7
    %v2897 = vsub.s32 0, %v2896
    %v2898 = vrot.slane %v2893, %v2897
    %2899 = vmatprep.subr.mxu0 0.0
    %2900 = vmatpush1.xpose.msra.mxu0 %v2872
    %2901 = vmatprep.subr.mxu0 0.0
    %2902 = vmatpush1.xpose.msra.mxu0 %v2873
    %2903 = vmatprep.subr.mxu0 0.0
    %2904 = vmatpush1.xpose.msra.mxu0 %v2874
    %2905 = vmatprep.subr.mxu0 0.0
    %2906 = vmatpush1.xpose.msra.mxu0 %v2875
    %2907 = vmatprep.subr.mxu0 0.0
    %2908 = vmatpush1.xpose.msra.mxu0 %v2876
    %2909 = vmatprep.subr.mxu0 0.0
    %2910 = vmatpush1.xpose.msra.mxu0 %v2877
    %2911 = vmatprep.subr.mxu0 0.0
    %2912 = vmatpush1.xpose.msra.mxu0 %v2878
    %2913 = vmatprep.subr.mxu0 0.0
    %2914 = vmatpush1.xpose.msra.mxu0 %v2879
    %2915 = vmatprep.subr.mxu0 0.0
    %2916 = vmatpush1.xpose.msra.mxu0 %v2880
    %2917 = vmatprep.subr.mxu0 0.0
    %2918 = vmatpush1.xpose.msra.mxu0 %v2881
    %2919 = vmatprep.subr.mxu0 0.0
    %2920 = vmatpush1.xpose.msra.mxu0 %v2882
    %2921 = vmatprep.subr.mxu0 0.0
    %2922 = vmatpush1.xpose.msra.mxu0 %v2883
    %2923 = vmatprep.subr.mxu0 0.0
    %2924 = vmatpush1.xpose.msra.mxu0 %v2884
    %2925 = vmatprep.subr.mxu0 0.0
    %2926 = vmatpush1.xpose.msra.mxu0 %v2885
    %2927 = vmatprep.subr.mxu0 0.0
    %2928 = vmatpush1.xpose.msra.mxu0 %v2886
    %2929 = vmatprep.subr.mxu0 0.0
    %2930 = vmatpush1.xpose.msra.mxu0 %v2887
    %2931 = vmatprep.subr.mxu0 0.0
    %2932 = vmatpush1.xpose.msra.mxu0 0.0
    %2933 = vmatprep.subr.mxu0 0.0
    %2934 = vmatpush1.xpose.msra.mxu0 0.0
    %2935 = vmatprep.subr.mxu0 0.0
    %2936 = vmatpush1.xpose.msra.mxu0 0.0
    %2937 = vmatprep.subr.mxu0 0.0
    %2938 = vmatpush1.xpose.msra.mxu0 0.0
    %2939 = vmatprep.subr.mxu0 0.0
    %2940 = vmatpush1.xpose.msra.mxu0 0.0
    %2941 = vmatprep.subr.mxu0 0.0
    %2942 = vmatpush1.xpose.msra.mxu0 0.0
    %2943 = vmatprep.subr.mxu0 0.0
    %2944 = vmatpush1.xpose.msra.mxu0 0.0
    %2945 = vmatprep.subr.mxu0 0.0
    %2946 = vmatpush1.xpose.msra.mxu0 0.0
    %2947 = vmatprep.subr.mxu0 0.0
    %2948 = vmatpush1.xpose.msra.mxu0 0.0
    %2949 = vmatprep.subr.mxu0 0.0
    %2950 = vmatpush1.xpose.msra.mxu0 0.0
    %2951 = vmatprep.subr.mxu0 0.0
    %2952 = vmatpush1.xpose.msra.mxu0 0.0
    %2953 = vmatprep.subr.mxu0 0.0
    %2954 = vmatpush1.xpose.msra.mxu0 0.0
    %2955 = vmatprep.subr.mxu0 0.0
    %2956 = vmatpush1.xpose.msra.mxu0 0.0
    %2957 = vmatprep.subr.mxu0 0.0
    %2958 = vmatpush1.xpose.msra.mxu0 0.0
    %2959 = vmatprep.subr.mxu0 0.0
    %2960 = vmatpush1.xpose.msra.mxu0 0.0
    %2961 = vmatprep.subr.mxu0 0.0
    %2962 = vmatpush1.xpose.msra.mxu0 0.0
    %2963 = vmatprep.mubr.f32.mxu0 0.0
    %2964 = vmatmul.mubr.f32.gmra.mrb[0].mxu0 %v2888
    %v2965 = vpop.f32.mrb[0].mxu0
    %v2966 = vadd.f32 %v2898, %v2965
    %v2967 = vpop.f32.mrb[0].mxu0
    %2968 = vdwg.mxu0
    %v2969 = vlaneseq
    %v2970 = vand.u32 %v2969, 127
    %v2971 = vadd.s32 %v2970, %v2169
    %vm2972 = vcmp.lt.s32.totalorder %v2971, 16
    %v2973 = vsel %vm2972, %v2966, -1e+30
    %s2974 = sshra.s32 %s2168, 7
    %s2975 = sand.u32 %s2168, 127
    %s2976 = scalar_lea.vmem [#allocation19], %s2974
    %2977 = vst [vmem:[%s2976] sm:$0x1] %v2973
    %v2978 = vld [vmem:[#allocation2] sm:$0x1]
    %vm2979 = vcmask 1040384
    %v2980 = vsel %vm2979, %v2973, -inf
    %2981 = vmax.xlane.f32.xlu0 %v2980
    %v2982 = vpop.xlane.xlu0 %2981
    %v2983 = vmax.f32 %v2978, %v2982
    %v2984 = vsub.f32 %v2978, %v2983
    %v2985 = vmul.f32 %v2984, 1.442695
    %v2986 = vpow.pop %v2985
    %2988 = vset.pattern.permute.xlu0 0
    %2989 = vperm.xlu0 %2988, %v2983
    %v2990 = vpop.permute.xlu0 %2989
    %v2992 = vlaneseq
    %v2993 = vshrl.u32 %v2992, 7
    %v2994 = vsub.s32 0, %v2993
    %v2995 = vrot.slane %v2990, %v2994
    %v2996 = vsub.f32 %v2973, %v2995
    %v2997 = vmul.f32 %v2996, 1.442695
    %v2998 = vpow.pop %v2997
    %v2999 = vld [vmem:[#allocation3] sm:$0x1]
    %v3000 = vmul.f32 %v2986, %v2999
    %v3001 = vsel %vm2979, %v2998, 0.0
    %3002 = vadd.xlane.f32.xlu0 %v3001
    %v3003 = vpop.xlane.xlu0 %3002
    %v3004 = vadd.f32 %v3000, %v3003
    %vm3005 = vcmask 0
    %3006 = vst.msk [vmem:[#allocation3] sm:$0x1] %vm3005, %v3004
    %v3007 = vld [vmem:[#allocation4] sm:$0xf]
    %3009 = vset.pattern.permute.xlu0 0
    %3010 = vperm.xlu0 %3009, %v2986
    %v3011 = vpop.permute.xlu0 %3010
    %v3013 = vlaneseq
    %v3014 = vshrl.u32 %v3013, 7
    %v3015 = vsub.s32 0, %v3014
    %v3016 = vrot.slane %v3011, %v3015
    %v3017 = vmul.f32 %v3016, %v3007
    %3018 = vmatprep.subr.mxu0 %v2235
    %3019 = vmatpush1.msra.mxu0 %v2234
    %3020 = vmatprep.subr.mxu0 %v2239
    %3021 = vmatpush1.msra.mxu0 %v2238
    %3022 = vmatprep.subr.mxu0 %v2243
    %3023 = vmatpush1.msra.mxu0 %v2242
    %3024 = vmatprep.subr.mxu0 %v2247
    %3025 = vmatpush1.msra.mxu0 %v2246
    %3026 = vmatprep.subr.mxu0 %v2251
    %3027 = vmatpush1.msra.mxu0 %v2250
    %3028 = vmatprep.subr.mxu0 %v2255
    %3029 = vmatpush1.msra.mxu0 %v2254
    %3030 = vmatprep.subr.mxu0 %v2259
    %3031 = vmatpush1.msra.mxu0 %v2258
    %3032 = vmatprep.subr.mxu0 %v2263
    %3033 = vmatpush1.msra.mxu0 %v2262
    %3034 = vmatprep.subr.mxu0 %v2267
    %3035 = vmatpush1.msra.mxu0 %v2266
    %3036 = vmatprep.subr.mxu0 %v2271
    %3037 = vmatpush1.msra.mxu0 %v2270
    %3038 = vmatprep.subr.mxu0 %v2275
    %3039 = vmatpush1.msra.mxu0 %v2274
    %3040 = vmatprep.subr.mxu0 %v2279
    %3041 = vmatpush1.msra.mxu0 %v2278
    %3042 = vmatprep.subr.mxu0 %v2283
    %3043 = vmatpush1.msra.mxu0 %v2282
    %3044 = vmatprep.subr.mxu0 %v2287
    %3045 = vmatpush1.msra.mxu0 %v2286
    %3046 = vmatprep.subr.mxu0 %v2291
    %3047 = vmatpush1.msra.mxu0 %v2290
    %3048 = vmatprep.subr.mxu0 %v2295
    %3049 = vmatpush1.msra.mxu0 %v2294
    %3050 = vmatprep.subr.mxu0 0.0
    %3051 = vmatpush1.msra.mxu0 0.0
    %3052 = vmatprep.subr.mxu0 0.0
    %3053 = vmatpush1.msra.mxu0 0.0
    %3054 = vmatprep.subr.mxu0 0.0
    %3055 = vmatpush1.msra.mxu0 0.0
    %3056 = vmatprep.subr.mxu0 0.0
    %3057 = vmatpush1.msra.mxu0 0.0
    %3058 = vmatprep.subr.mxu0 0.0
    %3059 = vmatpush1.msra.mxu0 0.0
    %3060 = vmatprep.subr.mxu0 0.0
    %3061 = vmatpush1.msra.mxu0 0.0
    %3062 = vmatprep.subr.mxu0 0.0
    %3063 = vmatpush1.msra.mxu0 0.0
    %3064 = vmatprep.subr.mxu0 0.0
    %3065 = vmatpush1.msra.mxu0 0.0
    %3066 = vmatprep.subr.mxu0 0.0
    %3067 = vmatpush1.msra.mxu0 0.0
    %3068 = vmatprep.subr.mxu0 0.0
    %3069 = vmatpush1.msra.mxu0 0.0
    %3070 = vmatprep.subr.mxu0 0.0
    %3071 = vmatpush1.msra.mxu0 0.0
    %3072 = vmatprep.subr.mxu0 0.0
    %3073 = vmatpush1.msra.mxu0 0.0
    %3074 = vmatprep.subr.mxu0 0.0
    %3075 = vmatpush1.msra.mxu0 0.0
    %3076 = vmatprep.subr.mxu0 0.0
    %3077 = vmatpush1.msra.mxu0 0.0
    %3078 = vmatprep.subr.mxu0 0.0
    %3079 = vmatpush1.msra.mxu0 0.0
    %3080 = vmatprep.subr.mxu0 0.0
    %3081 = vmatpush1.msra.mxu0 0.0
    %3082 = vmatprep.mubr.f32.mxu0 0.0
    %3083 = vmatmul.mubr.f32.gmra.mrb[0].mxu0 %v2998
    %v3084 = vpop.f32.mrb[0].mxu0
    %v3085 = vadd.f32 0.0, %v3084
    %v3086 = vpop.f32.mrb[0].mxu0
    %v3087 = vadd.f32 0.0, %v3086
    %3088 = vdwg.mxu0
    %3089 = vmatprep.subr.mxu0 %v2237
    %3090 = vmatpush1.msra.mxu0 %v2236
    %3091 = vmatprep.subr.mxu0 %v2241
    %3092 = vmatpush1.msra.mxu0 %v2240
    %3093 = vmatprep.subr.mxu0 %v2245
    %3094 = vmatpush1.msra.mxu0 %v2244
    %3095 = vmatprep.subr.mxu0 %v2249
    %3096 = vmatpush1.msra.mxu0 %v2248
    %3097 = vmatprep.subr.mxu0 %v2253
    %3098 = vmatpush1.msra.mxu0 %v2252
    %3099 = vmatprep.subr.mxu0 %v2257
    %3100 = vmatpush1.msra.mxu0 %v2256
    %3101 = vmatprep.subr.mxu0 %v2261
    %3102 = vmatpush1.msra.mxu0 %v2260
    %3103 = vmatprep.subr.mxu0 %v2265
    %3104 = vmatpush1.msra.mxu0 %v2264
    %3105 = vmatprep.subr.mxu0 %v2269
    %3106 = vmatpush1.msra.mxu0 %v2268
    %3107 = vmatprep.subr.mxu0 %v2273
    %3108 = vmatpush1.msra.mxu0 %v2272
    %3109 = vmatprep.subr.mxu0 %v2277
    %3110 = vmatpush1.msra.mxu0 %v2276
    %3111 = vmatprep.subr.mxu0 %v2281
    %3112 = vmatpush1.msra.mxu0 %v2280
    %3113 = vmatprep.subr.mxu0 %v2285
    %3114 = vmatpush1.msra.mxu0 %v2284
    %3115 = vmatprep.subr.mxu0 %v2289
    %3116 = vmatpush1.msra.mxu0 %v2288
    %3117 = vmatprep.subr.mxu0 %v2293
    %3118 = vmatpush1.msra.mxu0 %v2292
    %3119 = vmatprep.subr.mxu0 %v2297
    %3120 = vmatpush1.msra.mxu0 %v2296
    %3121 = vmatprep.subr.mxu0 0.0
    %3122 = vmatpush1.msra.mxu0 0.0
    %3123 = vmatprep.subr.mxu0 0.0
    %3124 = vmatpush1.msra.mxu0 0.0
    %3125 = vmatprep.subr.mxu0 0.0
    %3126 = vmatpush1.msra.mxu0 0.0
    %3127 = vmatprep.subr.mxu0 0.0
    %3128 = vmatpush1.msra.mxu0 0.0
    %3129 = vmatprep.subr.mxu0 0.0
    %3130 = vmatpush1.msra.mxu0 0.0
    %3131 = vmatprep.subr.mxu0 0.0
    %3132 = vmatpush1.msra.mxu0 0.0
    %3133 = vmatprep.subr.mxu0 0.0
    %3134 = vmatpush1.msra.mxu0 0.0
    %3135 = vmatprep.subr.mxu0 0.0
    %3136 = vmatpush1.msra.mxu0 0.0
    %3137 = vmatprep.subr.mxu0 0.0
    %3138 = vmatpush1.msra.mxu0 0.0
    %3139 = vmatprep.subr.mxu0 0.0
    %3140 = vmatpush1.msra.mxu0 0.0
    %3141 = vmatprep.subr.mxu0 0.0
    %3142 = vmatpush1.msra.mxu0 0.0
    %3143 = vmatprep.subr.mxu0 0.0
    %3144 = vmatpush1.msra.mxu0 0.0
    %3145 = vmatprep.subr.mxu0 0.0
    %3146 = vmatpush1.msra.mxu0 0.0
    %3147 = vmatprep.subr.mxu0 0.0
    %3148 = vmatpush1.msra.mxu0 0.0
    %3149 = vmatprep.subr.mxu0 0.0
    %3150 = vmatpush1.msra.mxu0 0.0
    %3151 = vmatprep.subr.mxu0 0.0
    %3152 = vmatpush1.msra.mxu0 0.0
    %3153 = vmatprep.mubr.f32.mxu0 0.0
    %3154 = vmatmul.mubr.f32.gmra.mrb[0].mxu0 %v2998
    %v3155 = vpop.f32.mrb[0].mxu0
    %v3156 = vadd.f32 0.0, %v3155
    %v3157 = vpop.f32.mrb[0].mxu0
    %v3158 = vadd.f32 0.0, %v3157
    %3159 = vdwg.mxu0
    %v3164 = vcombine.low %v3085, %v3087
    %v3165 = vcombine.low %v3156, %v3158
    %v3167 = vunpack.c.l.s4 1966171168
    %v3168 = vunpack.c.0.s8 %v3167
    %v3169 = vlaneseq
    %v3170 = vshrl.u32 %v3169, 7
    %v3171 = vsub.s32 %v3168, %v3170
    %v3172 = vrot.slane %v3164, %v3171
    %v3174 = vunpack.c.l.s4 1966171168
    %v3175 = vunpack.c.0.s8 %v3174
    %v3176 = vlaneseq
    %v3177 = vshrl.u32 %v3176, 7
    %v3178 = vsub.s32 %v3175, %v3177
    %v3179 = vrot.slane %v3165, %v3178
    %v3180 = vcombine.low %v3172, %v3179
    %v3182 = vunpack.c.l.s4 1966171168
    %v3183 = vunpack.c.0.s8 %v3182
    %v3184 = vlaneseq
    %v3185 = vshrl.u32 %v3184, 7
    %v3186 = vsub.s32 %v3183, %v3185
    %v3187 = vrot.slane %v3180, %v3186
    %v3189 = vadd.f32 %v3017, %v3187
    %v3190 = vlaneseq
    %vm3191 = vcmp.ge.s32.totalorder %v3190, 0
    %vm3192 = vcmp.lt.s32.totalorder %v3190, 512
    %vm3193 = vmand %vm3191, %vm3192
    %3194 = vst.msk [vmem:[#allocation4] sm:$0xf] %vm3193, %v3189
    %3195 = vst.msk [vmem:[#allocation2] sm:$0x1] %vm3005, %v2983
    // Predicated region
    $region70: #{tpu_custom_call.1} parent=1 // pred_check
      %p3196 = pneg %p125
    $region71: #{tpu_custom_call.1} parent=1 // pred_check_branch
      %3198 = sbr.rel (%p3196) target = $region73
    $region72: #{tpu_custom_call.1} parent=1 // pred_region
      %v3199 = vld [vmem:[#allocation3] sm:$0x1]
      %v3200 = vrcp.pop %v3199
      %v3201 = vld [vmem:[#allocation19] sm:$0x1]
      %v3202 = vld [vmem:[#allocation2] sm:$0x1]
      %3204 = vset.pattern.permute.xlu0 0
      %3205 = vperm.xlu0 %3204, %v3202
      %v3206 = vpop.permute.xlu0 %3205
      %v3208 = vlaneseq
      %v3209 = vshrl.u32 %v3208, 7
      %v3210 = vsub.s32 0, %v3209
      %v3211 = vrot.slane %v3206, %v3210
      %v3212 = vsub.f32 %v3201, %v3211
      %v3213 = vmul.f32 %v3212, 1.442695
      %v3214 = vpow.pop %v3213
      %3216 = vset.pattern.permute.xlu0 0
      %3217 = vperm.xlu0 %3216, %v3200
      %v3218 = vpop.permute.xlu0 %3217
      %v3220 = vlaneseq
      %v3221 = vshrl.u32 %v3220, 7
      %v3222 = vsub.s32 0, %v3221
      %v3223 = vrot.slane %v3218, %v3222
      %v3224 = vmul.f32 %v3214, %v3223
      %3225 = vst [vmem:[#allocation19] sm:$0x1] %v3224
      %v3226 = vld [vmem:[#allocation4] sm:$0xf]
      %v3227 = vmul.f32 %v3226, %v3223
      %v3228 = vld [vmem:[%s7] sm:$0xff]
      %v3229 = vld [vmem:[%s7 + $0x8] sm:$0xff]
      %v3230 = vld [vmem:[%s7 + $0x10] sm:$0xff]
      %v3231 = vld [vmem:[%s7 + $0x18] sm:$0xff]
      %v3232 = vld [vmem:[%s7 + $0x20] sm:$0xff]
      %v3233 = vld [vmem:[%s7 + $0x28] sm:$0xff]
      %v3234 = vld [vmem:[%s7 + $0x30] sm:$0xff]
      %v3235 = vld [vmem:[%s7 + $0x38] sm:$0xff]
      %v3236 = vld [vmem:[%s7 + $0x40] sm:$0xff]
      %v3237 = vld [vmem:[%s7 + $0x48] sm:$0xff]
      %v3238 = vld [vmem:[%s7 + $0x50] sm:$0xff]
      %v3239 = vld [vmem:[%s7 + $0x58] sm:$0xff]
      %v3240 = vld [vmem:[%s7 + $0x60] sm:$0xff]
      %v3241 = vld [vmem:[%s7 + $0x68] sm:$0xff]
      %v3242 = vld [vmem:[%s7 + $0x70] sm:$0xff]
      %v3243 = vld [vmem:[%s7 + $0x78] sm:$0xff]
      %v3244 = vld [vmem:[%s7 + $0x80] sm:$0xff]
      %v3245 = vld [vmem:[%s7 + $0x88] sm:$0xff]
      %v3246 = vld [vmem:[%s7 + $0x90] sm:$0xff]
      %v3247 = vld [vmem:[%s7 + $0x98] sm:$0xff]
      %v3248 = vld [vmem:[%s7 + $0xa0] sm:$0xff]
      %v3249 = vld [vmem:[%s7 + $0xa8] sm:$0xff]
      %v3250 = vld [vmem:[%s7 + $0xb0] sm:$0xff]
      %v3251 = vld [vmem:[%s7 + $0xb8] sm:$0xff]
      %v3252 = vld [vmem:[%s7 + $0xc0] sm:$0xff]
      %v3253 = vld [vmem:[%s7 + $0xc8] sm:$0xff]
      %v3254 = vld [vmem:[%s7 + $0xd0] sm:$0xff]
      %v3255 = vld [vmem:[%s7 + $0xd8] sm:$0xff]
      %v3256 = vld [vmem:[%s7 + $0xe0] sm:$0xff]
      %v3257 = vld [vmem:[%s7 + $0xe8] sm:$0xff]
      %v3258 = vld [vmem:[%s7 + $0xf0] sm:$0xff]
      %v3259 = vld [vmem:[%s7 + $0xf8] sm:$0xff]
      %v3260 = vld [vmem:[%s7 + $0x100] sm:$0xff]
      %v3261 = vld [vmem:[%s7 + $0x108] sm:$0xff]
      %v3262 = vld [vmem:[%s7 + $0x110] sm:$0xff]
      %v3263 = vld [vmem:[%s7 + $0x118] sm:$0xff]
      %v3264 = vld [vmem:[%s7 + $0x120] sm:$0xff]
      %v3265 = vld [vmem:[%s7 + $0x128] sm:$0xff]
      %v3266 = vld [vmem:[%s7 + $0x130] sm:$0xff]
      %v3267 = vld [vmem:[%s7 + $0x138] sm:$0xff]
      %v3268 = vld [vmem:[%s7 + $0x140] sm:$0xff]
      %v3269 = vld [vmem:[%s7 + $0x148] sm:$0xff]
      %v3270 = vld [vmem:[%s7 + $0x150] sm:$0xff]
      %v3271 = vld [vmem:[%s7 + $0x158] sm:$0xff]
      %v3272 = vld [vmem:[%s7 + $0x160] sm:$0xff]
      %v3273 = vld [vmem:[%s7 + $0x168] sm:$0xff]
      %v3274 = vld [vmem:[%s7 + $0x170] sm:$0xff]
      %v3275 = vld [vmem:[%s7 + $0x178] sm:$0xff]
      %v3276 = vld [vmem:[%s7 + $0x180] sm:$0xff]
      %v3277 = vld [vmem:[%s7 + $0x188] sm:$0xff]
      %v3278 = vld [vmem:[%s7 + $0x190] sm:$0xff]
      %v3279 = vld [vmem:[%s7 + $0x198] sm:$0xff]
      %v3280 = vld [vmem:[%s7 + $0x1a0] sm:$0xff]
      %v3281 = vld [vmem:[%s7 + $0x1a8] sm:$0xff]
      %v3282 = vld [vmem:[%s7 + $0x1b0] sm:$0xff]
      %v3283 = vld [vmem:[%s7 + $0x1b8] sm:$0xff]
      %v3284 = vld [vmem:[%s7 + $0x1c0] sm:$0xff]
      %v3285 = vld [vmem:[%s7 + $0x1c8] sm:$0xff]
      %v3286 = vld [vmem:[%s7 + $0x1d0] sm:$0xff]
      %v3287 = vld [vmem:[%s7 + $0x1d8] sm:$0xff]
      %v3288 = vld [vmem:[%s7 + $0x1e0] sm:$0xff]
      %v3289 = vld [vmem:[%s7 + $0x1e8] sm:$0xff]
      %v3290 = vld [vmem:[%s7 + $0x1f0] sm:$0xff]
      %v3291 = vld [vmem:[%s7 + $0x1f8] sm:$0xff]
      %v3292 = vld [vmem:[#allocation17] sm:$0x1]
      %v3294 = vlaneseq
      %v3295 = vshrl.u32 %v3294, 7
      %v3296 = vsub.s32 0, %v3295
      %v3297 = vrot.slane %v3227, %v3296
      %v3298 = vlaneseq
      %v3299 = vshrl.u32 %v3298, 7
      %v3300 = vsub.s32 1, %v3299
      %v3301 = vrot.slane %v3227, %v3300
      %v3302 = vlaneseq
      %v3303 = vshrl.u32 %v3302, 7
      %v3304 = vsub.s32 2, %v3303
      %v3305 = vrot.slane %v3227, %v3304
      %v3306 = vlaneseq
      %v3307 = vshrl.u32 %v3306, 7
      %v3308 = vsub.s32 3, %v3307
      %v3309 = vrot.slane %v3227, %v3308
      %3314 = vmatprep.subr.mxu0 0.0
      %3315 = vmatpush1.msra.mxu0 %v3228
      %3316 = vmatprep.subr.mxu0 0.0
      %3317 = vmatpush1.msra.mxu0 %v3229
      %3318 = vmatprep.subr.mxu0 0.0
      %3319 = vmatpush1.msra.mxu0 %v3230
      %3320 = vmatprep.subr.mxu0 0.0
      %3321 = vmatpush1.msra.mxu0 %v3231
      %3322 = vmatprep.subr.mxu0 0.0
      %3323 = vmatpush1.msra.mxu0 %v3232
      %3324 = vmatprep.subr.mxu0 0.0
      %3325 = vmatpush1.msra.mxu0 %v3233
      %3326 = vmatprep.subr.mxu0 0.0
      %3327 = vmatpush1.msra.mxu0 %v3234
      %3328 = vmatprep.subr.mxu0 0.0
      %3329 = vmatpush1.msra.mxu0 %v3235
      %3330 = vmatprep.subr.mxu0 0.0
      %3331 = vmatpush1.msra.mxu0 %v3236
      %3332 = vmatprep.subr.mxu0 0.0
      %3333 = vmatpush1.msra.mxu0 %v3237
      %3334 = vmatprep.subr.mxu0 0.0
      %3335 = vmatpush1.msra.mxu0 %v3238
      %3336 = vmatprep.subr.mxu0 0.0
      %3337 = vmatpush1.msra.mxu0 %v3239
      %3338 = vmatprep.subr.mxu0 0.0
      %3339 = vmatpush1.msra.mxu0 %v3240
      %3340 = vmatprep.subr.mxu0 0.0
      %3341 = vmatpush1.msra.mxu0 %v3241
      %3342 = vmatprep.subr.mxu0 0.0
      %3343 = vmatpush1.msra.mxu0 %v3242
      %3344 = vmatprep.subr.mxu0 0.0
      %3345 = vmatpush1.msra.mxu0 %v3243
      %3346 = vmatprep.subr.mxu0 0.0
      %3347 = vmatpush1.msra.mxu0 %v3244
      %3348 = vmatprep.subr.mxu0 0.0
      %3349 = vmatpush1.msra.mxu0 %v3245
      %3350 = vmatprep.subr.mxu0 0.0
      %3351 = vmatpush1.msra.mxu0 %v3246
      %3352 = vmatprep.subr.mxu0 0.0
      %3353 = vmatpush1.msra.mxu0 %v3247
      %3354 = vmatprep.subr.mxu0 0.0
      %3355 = vmatpush1.msra.mxu0 %v3248
      %3356 = vmatprep.subr.mxu0 0.0
      %3357 = vmatpush1.msra.mxu0 %v3249
      %3358 = vmatprep.subr.mxu0 0.0
      %3359 = vmatpush1.msra.mxu0 %v3250
      %3360 = vmatprep.subr.mxu0 0.0
      %3361 = vmatpush1.msra.mxu0 %v3251
      %3362 = vmatprep.subr.mxu0 0.0
      %3363 = vmatpush1.msra.mxu0 %v3252
      %3364 = vmatprep.subr.mxu0 0.0
      %3365 = vmatpush1.msra.mxu0 %v3253
      %3366 = vmatprep.subr.mxu0 0.0
      %3367 = vmatpush1.msra.mxu0 %v3254
      %3368 = vmatprep.subr.mxu0 0.0
      %3369 = vmatpush1.msra.mxu0 %v3255
      %3370 = vmatprep.subr.mxu0 0.0
      %3371 = vmatpush1.msra.mxu0 %v3256
      %3372 = vmatprep.subr.mxu0 0.0
      %3373 = vmatpush1.msra.mxu0 %v3257
      %3374 = vmatprep.subr.mxu0 0.0
      %3375 = vmatpush1.msra.mxu0 %v3258
      %3376 = vmatprep.subr.mxu0 0.0
      %3377 = vmatpush1.msra.mxu0 %v3259
      %3378 = vmatprep.mubr.f32.mxu0 %v3301
      %3379 = vmatmul.mubr.f32.gmra.mrb[0].mxu0 %v3297
      %v3380 = vpop.f32.mrb[0].mxu0
      %v3381 = vadd.f32 %v3292, %v3380
      %v3382 = vpop.f32.mrb[0].mxu0
      %3383 = vdwg.mxu0
      %3384 = vmatprep.subr.mxu0 0.0
      %3385 = vmatpush1.msra.mxu0 %v3260
      %3386 = vmatprep.subr.mxu0 0.0
      %3387 = vmatpush1.msra.mxu0 %v3261
      %3388 = vmatprep.subr.mxu0 0.0
      %3389 = vmatpush1.msra.mxu0 %v3262
      %3390 = vmatprep.subr.mxu0 0.0
      %3391 = vmatpush1.msra.mxu0 %v3263
      %3392 = vmatprep.subr.mxu0 0.0
      %3393 = vmatpush1.msra.mxu0 %v3264
      %3394 = vmatprep.subr.mxu0 0.0
      %3395 = vmatpush1.msra.mxu0 %v3265
      %3396 = vmatprep.subr.mxu0 0.0
      %3397 = vmatpush1.msra.mxu0 %v3266
      %3398 = vmatprep.subr.mxu0 0.0
      %3399 = vmatpush1.msra.mxu0 %v3267
      %3400 = vmatprep.subr.mxu0 0.0
      %3401 = vmatpush1.msra.mxu0 %v3268
      %3402 = vmatprep.subr.mxu0 0.0
      %3403 = vmatpush1.msra.mxu0 %v3269
      %3404 = vmatprep.subr.mxu0 0.0
      %3405 = vmatpush1.msra.mxu0 %v3270
      %3406 = vmatprep.subr.mxu0 0.0
      %3407 = vmatpush1.msra.mxu0 %v3271
      %3408 = vmatprep.subr.mxu0 0.0
      %3409 = vmatpush1.msra.mxu0 %v3272
      %3410 = vmatprep.subr.mxu0 0.0
      %3411 = vmatpush1.msra.mxu0 %v3273
      %3412 = vmatprep.subr.mxu0 0.0
      %3413 = vmatpush1.msra.mxu0 %v3274
      %3414 = vmatprep.subr.mxu0 0.0
      %3415 = vmatpush1.msra.mxu0 %v3275
      %3416 = vmatprep.subr.mxu0 0.0
      %3417 = vmatpush1.msra.mxu0 %v3276
      %3418 = vmatprep.subr.mxu0 0.0
      %3419 = vmatpush1.msra.mxu0 %v3277
      %3420 = vmatprep.subr.mxu0 0.0
      %3421 = vmatpush1.msra.mxu0 %v3278
      %3422 = vmatprep.subr.mxu0 0.0
      %3423 = vmatpush1.msra.mxu0 %v3279
      %3424 = vmatprep.subr.mxu0 0.0
      %3425 = vmatpush1.msra.mxu0 %v3280
      %3426 = vmatprep.subr.mxu0 0.0
      %3427 = vmatpush1.msra.mxu0 %v3281
      %3428 = vmatprep.subr.mxu0 0.0
      %3429 = vmatpush1.msra.mxu0 %v3282
      %3430 = vmatprep.subr.mxu0 0.0
      %3431 = vmatpush1.msra.mxu0 %v3283
      %3432 = vmatprep.subr.mxu0 0.0
      %3433 = vmatpush1.msra.mxu0 %v3284
      %3434 = vmatprep.subr.mxu0 0.0
      %3435 = vmatpush1.msra.mxu0 %v3285
      %3436 = vmatprep.subr.mxu0 0.0
      %3437 = vmatpush1.msra.mxu0 %v3286
      %3438 = vmatprep.subr.mxu0 0.0
      %3439 = vmatpush1.msra.mxu0 %v3287
      %3440 = vmatprep.subr.mxu0 0.0
      %3441 = vmatpush1.msra.mxu0 %v3288
      %3442 = vmatprep.subr.mxu0 0.0
      %3443 = vmatpush1.msra.mxu0 %v3289
      %3444 = vmatprep.subr.mxu0 0.0
      %3445 = vmatpush1.msra.mxu0 %v3290
      %3446 = vmatprep.subr.mxu0 0.0
      %3447 = vmatpush1.msra.mxu0 %v3291
      %3448 = vmatprep.mubr.f32.mxu0 %v3309
      %3449 = vmatmul.mubr.f32.gmra.mrb[0].mxu0 %v3305
      %v3450 = vpop.f32.mrb[0].mxu0
      %v3451 = vadd.f32 %v3381, %v3450
      %v3452 = vpop.f32.mrb[0].mxu0
      %3453 = vdwg.mxu0
      %v3454 = vxor.u32 %v3451, 2147483648
      %v3455 = vmul.f32 %v3454, 1.442695
      %v3456 = vpow.pop %v3455
      %v3457 = vadd.f32 %v3456, 1.0
      %v3458 = vrcp.pop %v3457
      %v3459 = vmul.f32 1.0, %v3458
      %vm3460 = vcmask 24576
      %3461 = vst.msk [vmem:[#allocation18] sm:$0x1] %vm3460, %v3459
    $region73: #{tpu_custom_call.1} parent=1 // pred_fallthru
      _
    // Predicated region
    $region74: #{tpu_custom_call.1} parent=1 // pred_check
      _
    $region75: #{tpu_custom_call.1} parent=1 // pred_check_branch
      %3463 = sbr.rel (0) target = $region77
    $region76: #{tpu_custom_call.1} parent=1 // pred_region
      %s3465 = ssub.s32 16, 16
      %3466 = vsyncadd [#allocation8], %s3465
      %s3468 = sshll.u32 [#allocation18], 4
      %s3469 = int_to_ptr.vmem [resolvable:$true] %s3468
      %3471 = dma.vmem_to_hbm [thread:$0]  %s3469, 16, %s9, [#allocation8]
    $region77: #{tpu_custom_call.1} parent=1 // pred_fallthru
      _
    // Predicated region
    $region78: #{tpu_custom_call.1} parent=1 // pred_check
      _
    $region79: #{tpu_custom_call.1} parent=1 // pred_check_branch
      %3473 = sbr.rel (0) target = $region81
    $region80: #{tpu_custom_call.1} parent=1 // pred_region
      %s3475 = ssub.s32 16, 16
      %3476 = vsyncadd [#allocation20], %s3475
      %s3478 = sshll.u32 [#allocation19], 4
      %s3479 = int_to_ptr.vmem [resolvable:$true] %s3478
      %3481 = dma.vmem_to_hbm [thread:$0]  %s3479, 16, %s10, [#allocation20]
    $region81: #{tpu_custom_call.1} parent=1 // pred_fallthru
      _
    // Predicated region
    $region82: #{tpu_custom_call.1} parent=1 // pred_check
      _
    $region83: #{tpu_custom_call.1} parent=1 // pred_check_branch
      %3483 = sbr.rel (0) target = $region85
    $region84: #{tpu_custom_call.1} parent=1 // pred_region
      %3484 = dma.done [#allocation8], 16
    $region85: #{tpu_custom_call.1} parent=1 // pred_fallthru
      _
    // Predicated region
    $region86: #{tpu_custom_call.1} parent=1 // pred_check
      _
    $region87: #{tpu_custom_call.1} parent=1 // pred_check_branch
      %3486 = sbr.rel (0) target = $region89
    $region88: #{tpu_custom_call.1} parent=1 // pred_region
      %3487 = dma.done [#allocation20], 16
    $region89: #{tpu_custom_call.1} parent=1 // pred_fallthru
      _
    %3488 = vsyncpa [#allocation7], 1
    %3489 = vsyncpa [#allocation10], 1
    %3490 = vsyncpa [#allocation13], 1
    %3491 = vsyncpa [#allocation16], 1
    %3492 = vsyncpa [#allocation8], 1
    %3493 = vsyncpa [#allocation20], 1

</llo_original>
